<compile_context>
chip_gen: v5e
topology: v5e:2x2
jax: 0.10.0
libtpu: 0.0.40
codegen_flags: <defaults>
</compile_context>

<pallas_src>
import functools

import jax
import jax.numpy as jnp
from jax.experimental import pallas as pl
from jax.experimental.pallas import tpu as pltpu

EPS = 1e-5          # PyTorch GroupNorm default eps
GROUPS = 32


# ------------------------------ kernel helpers ------------------------------ #

def _gn_silu(v, gamma, beta, m_cg, m_gc, count):
    """GroupNorm(32)+SiLU over the rows of v (zero rows are ignored via count).

    v: (L, C) f32, gamma/beta: (1, C), m_cg: (C, 32), m_gc: (32, C).
    """
    inv_n = 1.0 / count
    s = jnp.sum(v, axis=0, keepdims=True)                           # (1, C)
    ss = jnp.sum(v * v, axis=0, keepdims=True)                      # (1, C)
    mean = jnp.dot(jnp.dot(s, m_cg, preferred_element_type=jnp.float32),
                   m_gc, preferred_element_type=jnp.float32) * inv_n
    ex2 = jnp.dot(jnp.dot(ss, m_cg, preferred_element_type=jnp.float32),
                  m_gc, preferred_element_type=jnp.float32) * inv_n
    # E[x^2]-mean^2 (same formulation as the reference; fine at these scales).
    var = ex2 - mean * mean
    scale = jax.lax.rsqrt(var + EPS) * gamma                        # (1, C)
    y = (v - mean) * scale + beta
    return y * jax.nn.sigmoid(y)                                    # SiLU


def _conv3x3_flat(p_ref, w_ref, bias, Wp, Lc):
    """3x3 conv over a flattened zero-padded frame held in VMEM scratch.

    p_ref: ((H+6)*Wp, Cin) with data pixel (i,j) stored at row (3+i)*Wp + 1+j
    and zeros everywhere else.  Returns (Lc, Cout) f32 in the "padded centre"
    frame: row yc*Wp+xc is the conv output centred at padded coord (yc, xc);
    only centres with yc in [1,H], xc in [1,W] are real outputs.
    Every tap is a sublane-offset 2-D slice -> matmul (no (H,W,C) relayouts).
    """
    cout = w_ref.shape[-1]
    acc = jnp.zeros((Lc, cout), jnp.float32)
    for ky in range(3):
        for kx in range(3):
            off = (ky + 1) * Wp + (kx - 1)
            acc = acc + jnp.dot(p_ref[off:off + Lc, :], w_ref[ky * 3 + kx],
                                preferred_element_type=jnp.float32)
    return acc + bias


def _resblock_kernel(x_ref, g1_ref, be1_ref, w1_ref, b1_ref,
                     g2_ref, be2_ref, w2_ref, b2_ref,
                     mcg_i_ref, mgc_i_ref, mcg_o_ref, mgc_o_ref, vmask_ref,
                     *rest, H, W, cg_in, cg_out, has_up):
    if has_up:
        wu_ref, bu_ref, o_ref, p1_ref, p2_ref = rest
    else:
        o_ref, p1_ref, p2_ref = rest

    Wp = W + 2
    Lc = (H + 2) * Wp            # padded-centre frame length
    HW = H * W

    x2 = x_ref[0].astype(jnp.float32)                               # (H*W, Cin)

    # ---- GroupNorm1 + SiLU ------------------------------------------------ #
    h1 = _gn_silu(x2, g1_ref[...], be1_ref[...],
                  mcg_i_ref[...], mgc_i_ref[...], float(HW * cg_in))

    # ---- place h1 into the zero-padded flat frame (halo done in VMEM) ----- #
    p1_ref[...] = jnp.zeros_like(p1_ref)
    for i in range(H):
        r = (3 + i) * Wp + 1
        p1_ref[r:r + W, :] = h1[i * W:(i + 1) * W, :]

    # ---- Conv3x3 #1 -------------------------------------------------------- #
    a1 = _conv3x3_flat(p1_ref, w1_ref, b1_ref[...], Wp, Lc)         # (Lc, Cout)

    # ---- GroupNorm2 + SiLU (nn.Dropout == identity at inference) ----------- #
    vmask = vmask_ref[...]                                          # (Lc, 1)
    z = a1 * vmask                                                  # zero halo / garbage centres
    h2 = _gn_silu(z, g2_ref[...], be2_ref[...],
                  mcg_o_ref[...], mgc_o_ref[...], float(HW * cg_out)) * vmask

    # ---- Conv3x3 #2: same frame, shifted by the 2-row top margin ----------- #
    cout = p2_ref.shape[1]
    p2_ref[0:2 * Wp, :] = jnp.zeros((2 * Wp, cout), jnp.float32)
    p2_ref[2 * Wp:2 * Wp + Lc, :] = h2
    p2_ref[2 * Wp + Lc:2 * Wp + Lc + 2 * Wp, :] = jnp.zeros((2 * Wp, cout),
                                                            jnp.float32)
    a2 = _conv3x3_flat(p2_ref, w2_ref, b2_ref[...], Wp, Lc)         # (Lc, Cout)

    # ---- residual (channel_up fused in when Cin != Cout) ------------------- #
    if has_up:
        res = jnp.dot(x2, wu_ref[...],
                      preferred_element_type=jnp.float32) + bu_ref[...]
    else:
        res = x2

    # ---- gather the valid centres, add residual, write out ----------------- #
    for i in range(H):
        r = (1 + i) * Wp + 1
        o_ref[0, i * W:(i + 1) * W, :] = (
            a2[r:r + W, :] + res[i * W:(i + 1) * W, :]).astype(o_ref.dtype)


# --------------------------- pallas wrapper --------------------------------- #

def _group_maps(c):
    cg = c // GROUPS
    gid = jnp.arange(c) // cg
    m_cg = (gid[:, None] == jnp.arange(GROUPS)[None, :]).astype(jnp.float32)
    return m_cg, m_cg.T                                             # (C,32), (32,C)


def _valid_mask(H, W):
    Hp, Wp = H + 2, W + 2
    yc = jnp.arange(Hp)[:, None]
    xc = jnp.arange(Wp)[None, :]
    m = (yc >= 1) & (yc <= H) & (xc >= 1) & (xc <= W)
    return m.astype(jnp.float32).reshape(Hp * Wp, 1)


def residual_block_forward(x_nchw, params, c_in, c_out):
    """Public entry point: NCHW in / NCHW out, like the PyTorch module."""
    assert c_in % GROUPS == 0 and c_out % GROUPS == 0
    N, _, H, W = x_nchw.shape
    Wp = W + 2
    Lc = (H + 2) * Wp
    Lp = (H + 6) * Wp
    has_up = c_in != c_out

    # layout glue: NCHW -> channels-last with flattened spatial (N, H*W, C).
    x = jnp.transpose(x_nchw, (0, 2, 3, 1)).reshape(N, H * W, c_in)

    mcg_i, mgc_i = _group_maps(c_in)
    mcg_o, mgc_o = _group_maps(c_out)
    vmask = _valid_mask(H, W)

    const = lambda n: (0, 0)
    const3 = lambda n: (0, 0, 0)
    inputs = [x, params["g1"], params["be1"], params["w1"], params["b1"],
              params["g2"], params["be2"], params["w2"], params["b2"],
              mcg_i, mgc_i, mcg_o, mgc_o, vmask]
    in_specs = [
        pl.BlockSpec((1, H * W, c_in), lambda n: (n, 0, 0)),
        pl.BlockSpec((1, c_in), const),
        pl.BlockSpec((1, c_in), const),
        pl.BlockSpec((9, c_in, c_out), const3),
        pl.BlockSpec((1, c_out), const),
        pl.BlockSpec((1, c_out), const),
        pl.BlockSpec((1, c_out), const),
        pl.BlockSpec((9, c_out, c_out), const3),
        pl.BlockSpec((1, c_out), const),
        pl.BlockSpec((c_in, GROUPS), const),
        pl.BlockSpec((GROUPS, c_in), const),
        pl.BlockSpec((c_out, GROUPS), const),
        pl.BlockSpec((GROUPS, c_out), const),
        pl.BlockSpec((Lc, 1), const),
    ]
    if has_up:
        inputs += [params["wu"], params["bu"]]
        in_specs += [pl.BlockSpec((c_in, c_out), const),
                     pl.BlockSpec((1, c_out), const)]

    kern = functools.partial(_resblock_kernel, H=H, W=W,
                             cg_in=c_in // GROUPS, cg_out=c_out // GROUPS,
                             has_up=has_up)
    out = pl.pallas_call(
        kern,
        out_shape=jax.ShapeDtypeStruct((N, H * W, c_out), x_nchw.dtype),
        grid=(N,),
        in_specs=in_specs,
        out_specs=pl.BlockSpec((1, H * W, c_out), lambda n: (n, 0, 0)),
        scratch_shapes=[pltpu.VMEM((Lp, c_in), jnp.float32),
                        pltpu.VMEM((Lp, c_out), jnp.float32)],
        compiler_params=pltpu.CompilerParams(
            dimension_semantics=("parallel",)),
    )(*inputs)
    return jnp.transpose(out.reshape(N, H, W, c_out), (0, 3, 1, 2))


# ------------------------------ parameters ----------------------------------- #

def init_params(key, c_in, c_out):
    ks = jax.random.split(key, 10)
    sc = 0.05
    p = {
        "g1": 1.0 + 0.1 * jax.random.normal(ks[0], (1, c_in), jnp.float32),
        "be1": 0.1 * jax.random.normal(ks[1], (1, c_in), jnp.float32),
        # conv weights built in torch OIHW then converted to HWIO -> (9, I, O)
        "w1": jnp.transpose(sc * jax.random.normal(ks[2], (c_out, c_in, 3, 3),
                                                   jnp.float32),
                            (2, 3, 1, 0)).reshape(9, c_in, c_out),
        "b1": 0.1 * jax.random.normal(ks[3], (1, c_out), jnp.float32),
        "g2": 1.0 + 0.1 * jax.random.normal(ks[4], (1, c_out), jnp.float32),
        "be2": 0.1 * jax.random.normal(ks[5], (1, c_out), jnp.float32),
        "w2": jnp.transpose(sc * jax.random.normal(ks[6], (c_out, c_out, 3, 3),
                                                   jnp.float32),
                            (2, 3, 1, 0)).reshape(9, c_out, c_out),
        "b2": 0.1 * jax.random.normal(ks[7], (1, c_out), jnp.float32),
    }
    if c_in != c_out:
        p["wu"] = sc * jax.random.normal(ks[8], (c_in, c_out), jnp.float32)
        p["bu"] = 0.1 * jax.random.normal(ks[9], (1, c_out), jnp.float32)
    return p


# --------------------------- pure-JAX reference ------------------------------ #

def _ref_gn_silu(x, gamma, beta):
    N, H, W, C = x.shape
    cg = C // GROUPS
    xg = x.reshape(N, H, W, GROUPS, cg)
    mean = jnp.mean(xg, axis=(1, 2, 4), keepdims=True)
    var = jnp.mean(xg * xg, axis=(1, 2, 4), keepdims=True) - mean * mean
    y = ((xg - mean) * jax.lax.rsqrt(var + EPS)).reshape(N, H, W, C)
    y = y * gamma.reshape(1, 1, 1, C) + beta.reshape(1, 1, 1, C)
    return y * jax.nn.sigmoid(y)


def _ref_conv(x, w_hwio, b, pad):
    y = jax.lax.conv_general_dilated(
        x, w_hwio, (1, 1), [(pad, pad), (pad, pad)],
        dimension_numbers=("NHWC", "HWIO", "NHWC"))
    return y + b.reshape(1, 1, 1, -1)


def residual_block_reference(x_nchw, params, c_in, c_out):
    x = jnp.transpose(x_nchw, (0, 2, 3, 1))
    h = _ref_gn_silu(x, params["g1"], params["be1"])
    h = _ref_conv(h, params["w1"].reshape(3, 3, c_in, c_out), params["b1"], 1)
    h = _ref_gn_silu(h, params["g2"], params["be2"])
    h = _ref_conv(h, params["w2"].reshape(3, 3, c_out, c_out), params["b2"], 1)
    if c_in != c_out:
        res = _ref_conv(x, params["wu"].reshape(1, 1, c_in, c_out),
                        params["bu"], 0)
    else:
        res = x
    return jnp.transpose(res + h, (0, 3, 1, 2))


# ---------------------------------- main -------------------------------------- #

if __name__ == "__main__":
    N, C_IN, C_OUT, H, W = 2, 32, 64, 8, 8   # GroupNorm(32, C) needs C % 32 == 0
    key = jax.random.PRNGKey(0)
    kx, kp = jax.random.split(key)
    x = jax.random.normal(kx, (N, C_IN, H, W), jnp.float32)   # NCHW like PyTorch
    params = init_params(kp, C_IN, C_OUT)

    out = jax.block_until_ready(residual_block_forward(x, params, C_IN, C_OUT))
    ref = jax.block_until_ready(residual_block_reference(x, params, C_IN, C_OUT))

    assert out.shape == (N, C_OUT, H, W)
    assert jnp.allclose(out, ref, atol=2e-3, rtol=2e-3), "mismatch vs reference"
    print("KERNEL_OK")
</pallas_src>

<mosaic_0001>
module attributes {stable_mosaic.version = 11 : i64} {
  func.func @_resblock_kernel(%arg0: i32, %arg1: memref<1x64x32xf32, #tpu.memory_space<vmem>>, %arg2: memref<1x32xf32, #tpu.memory_space<vmem>>, %arg3: memref<1x32xf32, #tpu.memory_space<vmem>>, %arg4: memref<9x32x64xf32, #tpu.memory_space<vmem>>, %arg5: memref<1x64xf32, #tpu.memory_space<vmem>>, %arg6: memref<1x64xf32, #tpu.memory_space<vmem>>, %arg7: memref<1x64xf32, #tpu.memory_space<vmem>>, %arg8: memref<9x64x64xf32, #tpu.memory_space<vmem>>, %arg9: memref<1x64xf32, #tpu.memory_space<vmem>>, %arg10: memref<32x32xf32, #tpu.memory_space<vmem>>, %arg11: memref<32x32xf32, #tpu.memory_space<vmem>>, %arg12: memref<64x32xf32, #tpu.memory_space<vmem>>, %arg13: memref<32x64xf32, #tpu.memory_space<vmem>>, %arg14: memref<100x1xf32, #tpu.memory_space<vmem>>, %arg15: memref<32x64xf32, #tpu.memory_space<vmem>>, %arg16: memref<1x64xf32, #tpu.memory_space<vmem>>, %arg17: memref<1x64x64xf32, #tpu.memory_space<vmem>>, %arg18: memref<140x32xf32, #tpu.memory_space<vmem>>, %arg19: memref<140x64xf32, #tpu.memory_space<vmem>>) attributes {dimension_semantics = [#tpu.dimension_semantics<parallel>], iteration_bounds = array<i64: 2>, scalar_prefetch = 0 : i64, scratch_operands = 2 : i64, tpu.core_type = #tpu.core_type<tc>, window_params = [{transform_indices = @transform_0, window_bounds = array<i64: 1, 64, 32>}, {pipeline_mode = #tpu.pipeline_mode<synchronous>, transform_indices = @transform_1, window_bounds = array<i64: 1, 32>}, {pipeline_mode = #tpu.pipeline_mode<synchronous>, transform_indices = @transform_2, window_bounds = array<i64: 1, 32>}, {pipeline_mode = #tpu.pipeline_mode<synchronous>, transform_indices = @transform_3, window_bounds = array<i64: 9, 32, 64>}, {pipeline_mode = #tpu.pipeline_mode<synchronous>, transform_indices = @transform_4, window_bounds = array<i64: 1, 64>}, {pipeline_mode = #tpu.pipeline_mode<synchronous>, transform_indices = @transform_5, window_bounds = array<i64: 1, 64>}, {pipeline_mode = #tpu.pipeline_mode<synchronous>, transform_indices = @transform_6, window_bounds = array<i64: 1, 64>}, {pipeline_mode = #tpu.pipeline_mode<synchronous>, transform_indices = @transform_7, window_bounds = array<i64: 9, 64, 64>}, {pipeline_mode = #tpu.pipeline_mode<synchronous>, transform_indices = @transform_8, window_bounds = array<i64: 1, 64>}, {pipeline_mode = #tpu.pipeline_mode<synchronous>, transform_indices = @transform_9, window_bounds = array<i64: 32, 32>}, {pipeline_mode = #tpu.pipeline_mode<synchronous>, transform_indices = @transform_10, window_bounds = array<i64: 32, 32>}, {pipeline_mode = #tpu.pipeline_mode<synchronous>, transform_indices = @transform_11, window_bounds = array<i64: 64, 32>}, {pipeline_mode = #tpu.pipeline_mode<synchronous>, transform_indices = @transform_12, window_bounds = array<i64: 32, 64>}, {pipeline_mode = #tpu.pipeline_mode<synchronous>, transform_indices = @transform_13, window_bounds = array<i64: 100, 1>}, {pipeline_mode = #tpu.pipeline_mode<synchronous>, transform_indices = @transform_14, window_bounds = array<i64: 32, 64>}, {pipeline_mode = #tpu.pipeline_mode<synchronous>, transform_indices = @transform_15, window_bounds = array<i64: 1, 64>}, {transform_indices = @transform_16, window_bounds = array<i64: 1, 64, 64>}]} {
    %c0 = arith.constant 0 : index
    %c0_0 = arith.constant 0 : index
    %c0_1 = arith.constant 0 : index
    %0 = vector.load %arg1[%c0, %c0_0, %c0_1] : memref<1x64x32xf32, #tpu.memory_space<vmem>>, vector<1x64x32xf32>
    %1 = vector.shape_cast %0 : vector<1x64x32xf32> to vector<64x32xf32>
    %c0_2 = arith.constant 0 : index
    %c0_3 = arith.constant 0 : index
    %2 = vector.load %arg2[%c0_2, %c0_3] : memref<1x32xf32, #tpu.memory_space<vmem>>, vector<1x32xf32>
    %c0_4 = arith.constant 0 : index
    %c0_5 = arith.constant 0 : index
    %3 = vector.load %arg3[%c0_4, %c0_5] : memref<1x32xf32, #tpu.memory_space<vmem>>, vector<1x32xf32>
    %c0_6 = arith.constant 0 : index
    %c0_7 = arith.constant 0 : index
    %4 = vector.load %arg10[%c0_6, %c0_7] : memref<32x32xf32, #tpu.memory_space<vmem>>, vector<32x32xf32>
    %c0_8 = arith.constant 0 : index
    %c0_9 = arith.constant 0 : index
    %5 = vector.load %arg11[%c0_8, %c0_9] : memref<32x32xf32, #tpu.memory_space<vmem>>, vector<32x32xf32>
    %cst = arith.constant dense<0.000000e+00> : vector<32xf32>
    %6 = vector.multi_reduction <add>, %1, %cst [0] : vector<64x32xf32> to vector<32xf32>
    %7 = vector.shape_cast %6 : vector<32xf32> to vector<1x32xf32>
    %8 = arith.mulf %1, %1 : vector<64x32xf32>
    %cst_10 = arith.constant dense<0.000000e+00> : vector<32xf32>
    %9 = vector.multi_reduction <add>, %8, %cst_10 [0] : vector<64x32xf32> to vector<32xf32>
    %10 = vector.shape_cast %9 : vector<32xf32> to vector<1x32xf32>
    %cst_11 = arith.constant dense<0.000000e+00> : vector<1x32xf32>
    %11 = tpu.matmul %7, %4, %cst_11 {dimension_numbers = #tpu.dot_dimension_numbers<[1], [0], [0], [1], [0, 0, 1, 1], [], []>} : vector<1x32xf32>, vector<32x32xf32>, vector<1x32xf32> -> vector<1x32xf32>
    %cst_12 = arith.constant dense<0.000000e+00> : vector<1x32xf32>
    %12 = tpu.matmul %11, %5, %cst_12 {dimension_numbers = #tpu.dot_dimension_numbers<[1], [0], [0], [1], [0, 0, 1, 1], [], []>} : vector<1x32xf32>, vector<32x32xf32>, vector<1x32xf32> -> vector<1x32xf32>
    %cst_13 = arith.constant 1.562500e-02 : f32
    %13 = vector.broadcast %cst_13 : f32 to vector<1x32xf32>
    %14 = arith.mulf %12, %13 : vector<1x32xf32>
    %cst_14 = arith.constant dense<0.000000e+00> : vector<1x32xf32>
    %15 = tpu.matmul %10, %4, %cst_14 {dimension_numbers = #tpu.dot_dimension_numbers<[1], [0], [0], [1], [0, 0, 1, 1], [], []>} : vector<1x32xf32>, vector<32x32xf32>, vector<1x32xf32> -> vector<1x32xf32>
    %cst_15 = arith.constant dense<0.000000e+00> : vector<1x32xf32>
    %16 = tpu.matmul %15, %5, %cst_15 {dimension_numbers = #tpu.dot_dimension_numbers<[1], [0], [0], [1], [0, 0, 1, 1], [], []>} : vector<1x32xf32>, vector<32x32xf32>, vector<1x32xf32> -> vector<1x32xf32>
    %cst_16 = arith.constant 1.562500e-02 : f32
    %17 = vector.broadcast %cst_16 : f32 to vector<1x32xf32>
    %18 = arith.mulf %16, %17 : vector<1x32xf32>
    %19 = arith.mulf %14, %14 : vector<1x32xf32>
    %20 = arith.subf %18, %19 : vector<1x32xf32>
    %cst_17 = arith.constant 9.99999974E-6 : f32
    %21 = vector.broadcast %cst_17 : f32 to vector<1x32xf32>
    %22 = arith.addf %20, %21 : vector<1x32xf32>
    %23 = math.rsqrt %22 : vector<1x32xf32>
    %24 = arith.mulf %23, %2 : vector<1x32xf32>
    %25 = vector.broadcast %14 : vector<1x32xf32> to vector<64x32xf32>
    %26 = arith.subf %1, %25 : vector<64x32xf32>
    %27 = vector.broadcast %24 : vector<1x32xf32> to vector<64x32xf32>
    %28 = arith.mulf %26, %27 : vector<64x32xf32>
    %29 = vector.broadcast %3 : vector<1x32xf32> to vector<64x32xf32>
    %30 = arith.addf %28, %29 : vector<64x32xf32>
    %31 = arith.negf %30 : vector<64x32xf32>
    %32 = math.exp %31 : vector<64x32xf32>
    %cst_18 = arith.constant 1.000000e+00 : f32
    %33 = vector.broadcast %cst_18 : f32 to vector<64x32xf32>
    %34 = arith.addf %33, %32 : vector<64x32xf32>
    %35 = arith.divf %33, %34 : vector<64x32xf32>
    %36 = arith.mulf %30, %35 : vector<64x32xf32>
    %cst_19 = arith.constant 0.000000e+00 : f32
    %37 = vector.broadcast %cst_19 : f32 to vector<140x32xf32>
    %c0_20 = arith.constant 0 : index
    %c0_21 = arith.constant 0 : index
    %38 = vector.load %arg18[%c0_20, %c0_21] : memref<140x32xf32, #tpu.memory_space<vmem>>, vector<140x32xf32>
    tpu.vector_store %arg18[%c0_20, %c0_21], %37 {strides = array<i32>} : memref<140x32xf32, #tpu.memory_space<vmem>>, vector<140x32xf32>,
    %39 = vector.extract_strided_slice %36 {offsets = [0, 0], sizes = [8, 32], strides = [1, 1]} : vector<64x32xf32> to vector<8x32xf32>
    %c31 = arith.constant 31 : index
    %c0_22 = arith.constant 0 : index
    %40 = vector.load %arg18[%c31, %c0_22] : memref<140x32xf32, #tpu.memory_space<vmem>>, vector<8x32xf32>
    tpu.vector_store %arg18[%c31, %c0_22], %39 {strides = array<i32>} : memref<140x32xf32, #tpu.memory_space<vmem>>, vector<8x32xf32>,
    %41 = vector.extract_strided_slice %36 {offsets = [8, 0], sizes = [8, 32], strides = [1, 1]} : vector<64x32xf32> to vector<8x32xf32>
    %c41 = arith.constant 41 : index
    %c0_23 = arith.constant 0 : index
    %42 = vector.load %arg18[%c41, %c0_23] : memref<140x32xf32, #tpu.memory_space<vmem>>, vector<8x32xf32>
    tpu.vector_store %arg18[%c41, %c0_23], %41 {strides = array<i32>} : memref<140x32xf32, #tpu.memory_space<vmem>>, vector<8x32xf32>,
    %43 = vector.extract_strided_slice %36 {offsets = [16, 0], sizes = [8, 32], strides = [1, 1]} : vector<64x32xf32> to vector<8x32xf32>
    %c51 = arith.constant 51 : index
    %c0_24 = arith.constant 0 : index
    %44 = vector.load %arg18[%c51, %c0_24] : memref<140x32xf32, #tpu.memory_space<vmem>>, vector<8x32xf32>
    tpu.vector_store %arg18[%c51, %c0_24], %43 {strides = array<i32>} : memref<140x32xf32, #tpu.memory_space<vmem>>, vector<8x32xf32>,
    %45 = vector.extract_strided_slice %36 {offsets = [24, 0], sizes = [8, 32], strides = [1, 1]} : vector<64x32xf32> to vector<8x32xf32>
    %c61 = arith.constant 61 : index
    %c0_25 = arith.constant 0 : index
    %46 = vector.load %arg18[%c61, %c0_25] : memref<140x32xf32, #tpu.memory_space<vmem>>, vector<8x32xf32>
    tpu.vector_store %arg18[%c61, %c0_25], %45 {strides = array<i32>} : memref<140x32xf32, #tpu.memory_space<vmem>>, vector<8x32xf32>,
    %47 = vector.extract_strided_slice %36 {offsets = [32, 0], sizes = [8, 32], strides = [1, 1]} : vector<64x32xf32> to vector<8x32xf32>
    %c71 = arith.constant 71 : index
    %c0_26 = arith.constant 0 : index
    %48 = vector.load %arg18[%c71, %c0_26] : memref<140x32xf32, #tpu.memory_space<vmem>>, vector<8x32xf32>
    tpu.vector_store %arg18[%c71, %c0_26], %47 {strides = array<i32>} : memref<140x32xf32, #tpu.memory_space<vmem>>, vector<8x32xf32>,
    %49 = vector.extract_strided_slice %36 {offsets = [40, 0], sizes = [8, 32], strides = [1, 1]} : vector<64x32xf32> to vector<8x32xf32>
    %c81 = arith.constant 81 : index
    %c0_27 = arith.constant 0 : index
    %50 = vector.load %arg18[%c81, %c0_27] : memref<140x32xf32, #tpu.memory_space<vmem>>, vector<8x32xf32>
    tpu.vector_store %arg18[%c81, %c0_27], %49 {strides = array<i32>} : memref<140x32xf32, #tpu.memory_space<vmem>>, vector<8x32xf32>,
    %51 = vector.extract_strided_slice %36 {offsets = [48, 0], sizes = [8, 32], strides = [1, 1]} : vector<64x32xf32> to vector<8x32xf32>
    %c91 = arith.constant 91 : index
    %c0_28 = arith.constant 0 : index
    %52 = vector.load %arg18[%c91, %c0_28] : memref<140x32xf32, #tpu.memory_space<vmem>>, vector<8x32xf32>
    tpu.vector_store %arg18[%c91, %c0_28], %51 {strides = array<i32>} : memref<140x32xf32, #tpu.memory_space<vmem>>, vector<8x32xf32>,
    %53 = vector.extract_strided_slice %36 {offsets = [56, 0], sizes = [8, 32], strides = [1, 1]} : vector<64x32xf32> to vector<8x32xf32>
    %c101 = arith.constant 101 : index
    %c0_29 = arith.constant 0 : index
    %54 = vector.load %arg18[%c101, %c0_29] : memref<140x32xf32, #tpu.memory_space<vmem>>, vector<8x32xf32>
    tpu.vector_store %arg18[%c101, %c0_29], %53 {strides = array<i32>} : memref<140x32xf32, #tpu.memory_space<vmem>>, vector<8x32xf32>,
    %c0_30 = arith.constant 0 : index
    %c0_31 = arith.constant 0 : index
    %55 = vector.load %arg5[%c0_30, %c0_31] : memref<1x64xf32, #tpu.memory_space<vmem>>, vector<1x64xf32>
    %cst_32 = arith.constant 0.000000e+00 : f32
    %56 = vector.broadcast %cst_32 : f32 to vector<100x64xf32>
    %c9 = arith.constant 9 : index
    %c0_33 = arith.constant 0 : index
    %57 = vector.load %arg18[%c9, %c0_33] : memref<140x32xf32, #tpu.memory_space<vmem>>, vector<100x32xf32>
    %c0_34 = arith.constant 0 : index
    %c0_35 = arith.constant 0 : index
    %c0_36 = arith.constant 0 : index
    %58 = vector.load %arg4[%c0_34, %c0_35, %c0_36] : memref<9x32x64xf32, #tpu.memory_space<vmem>>, vector<1x32x64xf32>
    %59 = vector.shape_cast %58 : vector<1x32x64xf32> to vector<32x64xf32>
    %cst_37 = arith.constant dense<0.000000e+00> : vector<100x64xf32>
    %60 = tpu.matmul %57, %59, %cst_37 {dimension_numbers = #tpu.dot_dimension_numbers<[1], [0], [0], [1], [0, 0, 1, 1], [], []>} : vector<100x32xf32>, vector<32x64xf32>, vector<100x64xf32> -> vector<100x64xf32>
    %61 = arith.addf %56, %60 : vector<100x64xf32>
    %c10 = arith.constant 10 : index
    %c0_38 = arith.constant 0 : index
    %62 = vector.load %arg18[%c10, %c0_38] : memref<140x32xf32, #tpu.memory_space<vmem>>, vector<100x32xf32>
    %c1 = arith.constant 1 : index
    %c0_39 = arith.constant 0 : index
    %c0_40 = arith.constant 0 : index
    %63 = vector.load %arg4[%c1, %c0_39, %c0_40] : memref<9x32x64xf32, #tpu.memory_space<vmem>>, vector<1x32x64xf32>
    %64 = vector.shape_cast %63 : vector<1x32x64xf32> to vector<32x64xf32>
    %cst_41 = arith.constant dense<0.000000e+00> : vector<100x64xf32>
    %65 = tpu.matmul %62, %64, %cst_41 {dimension_numbers = #tpu.dot_dimension_numbers<[1], [0], [0], [1], [0, 0, 1, 1], [], []>} : vector<100x32xf32>, vector<32x64xf32>, vector<100x64xf32> -> vector<100x64xf32>
    %66 = arith.addf %61, %65 : vector<100x64xf32>
    %c11 = arith.constant 11 : index
    %c0_42 = arith.constant 0 : index
    %67 = vector.load %arg18[%c11, %c0_42] : memref<140x32xf32, #tpu.memory_space<vmem>>, vector<100x32xf32>
    %c2 = arith.constant 2 : index
    %c0_43 = arith.constant 0 : index
    %c0_44 = arith.constant 0 : index
    %68 = vector.load %arg4[%c2, %c0_43, %c0_44] : memref<9x32x64xf32, #tpu.memory_space<vmem>>, vector<1x32x64xf32>
    %69 = vector.shape_cast %68 : vector<1x32x64xf32> to vector<32x64xf32>
    %cst_45 = arith.constant dense<0.000000e+00> : vector<100x64xf32>
    %70 = tpu.matmul %67, %69, %cst_45 {dimension_numbers = #tpu.dot_dimension_numbers<[1], [0], [0], [1], [0, 0, 1, 1], [], []>} : vector<100x32xf32>, vector<32x64xf32>, vector<100x64xf32> -> vector<100x64xf32>
    %71 = arith.addf %66, %70 : vector<100x64xf32>
    %c19 = arith.constant 19 : index
    %c0_46 = arith.constant 0 : index
    %72 = vector.load %arg18[%c19, %c0_46] : memref<140x32xf32, #tpu.memory_space<vmem>>, vector<100x32xf32>
    %c3 = arith.constant 3 : index
    %c0_47 = arith.constant 0 : index
    %c0_48 = arith.constant 0 : index
    %73 = vector.load %arg4[%c3, %c0_47, %c0_48] : memref<9x32x64xf32, #tpu.memory_space<vmem>>, vector<1x32x64xf32>
    %74 = vector.shape_cast %73 : vector<1x32x64xf32> to vector<32x64xf32>
    %cst_49 = arith.constant dense<0.000000e+00> : vector<100x64xf32>
    %75 = tpu.matmul %72, %74, %cst_49 {dimension_numbers = #tpu.dot_dimension_numbers<[1], [0], [0], [1], [0, 0, 1, 1], [], []>} : vector<100x32xf32>, vector<32x64xf32>, vector<100x64xf32> -> vector<100x64xf32>
    %76 = arith.addf %71, %75 : vector<100x64xf32>
    %c20 = arith.constant 20 : index
    %c0_50 = arith.constant 0 : index
    %77 = vector.load %arg18[%c20, %c0_50] : memref<140x32xf32, #tpu.memory_space<vmem>>, vector<100x32xf32>
    %c4 = arith.constant 4 : index
    %c0_51 = arith.constant 0 : index
    %c0_52 = arith.constant 0 : index
    %78 = vector.load %arg4[%c4, %c0_51, %c0_52] : memref<9x32x64xf32, #tpu.memory_space<vmem>>, vector<1x32x64xf32>
    %79 = vector.shape_cast %78 : vector<1x32x64xf32> to vector<32x64xf32>
    %cst_53 = arith.constant dense<0.000000e+00> : vector<100x64xf32>
    %80 = tpu.matmul %77, %79, %cst_53 {dimension_numbers = #tpu.dot_dimension_numbers<[1], [0], [0], [1], [0, 0, 1, 1], [], []>} : vector<100x32xf32>, vector<32x64xf32>, vector<100x64xf32> -> vector<100x64xf32>
    %81 = arith.addf %76, %80 : vector<100x64xf32>
    %c21 = arith.constant 21 : index
    %c0_54 = arith.constant 0 : index
    %82 = vector.load %arg18[%c21, %c0_54] : memref<140x32xf32, #tpu.memory_space<vmem>>, vector<100x32xf32>
    %c5 = arith.constant 5 : index
    %c0_55 = arith.constant 0 : index
    %c0_56 = arith.constant 0 : index
    %83 = vector.load %arg4[%c5, %c0_55, %c0_56] : memref<9x32x64xf32, #tpu.memory_space<vmem>>, vector<1x32x64xf32>
    %84 = vector.shape_cast %83 : vector<1x32x64xf32> to vector<32x64xf32>
    %cst_57 = arith.constant dense<0.000000e+00> : vector<100x64xf32>
    %85 = tpu.matmul %82, %84, %cst_57 {dimension_numbers = #tpu.dot_dimension_numbers<[1], [0], [0], [1], [0, 0, 1, 1], [], []>} : vector<100x32xf32>, vector<32x64xf32>, vector<100x64xf32> -> vector<100x64xf32>
    %86 = arith.addf %81, %85 : vector<100x64xf32>
    %c29 = arith.constant 29 : index
    %c0_58 = arith.constant 0 : index
    %87 = vector.load %arg18[%c29, %c0_58] : memref<140x32xf32, #tpu.memory_space<vmem>>, vector<100x32xf32>
    %c6 = arith.constant 6 : index
    %c0_59 = arith.constant 0 : index
    %c0_60 = arith.constant 0 : index
    %88 = vector.load %arg4[%c6, %c0_59, %c0_60] : memref<9x32x64xf32, #tpu.memory_space<vmem>>, vector<1x32x64xf32>
    %89 = vector.shape_cast %88 : vector<1x32x64xf32> to vector<32x64xf32>
    %cst_61 = arith.constant dense<0.000000e+00> : vector<100x64xf32>
    %90 = tpu.matmul %87, %89, %cst_61 {dimension_numbers = #tpu.dot_dimension_numbers<[1], [0], [0], [1], [0, 0, 1, 1], [], []>} : vector<100x32xf32>, vector<32x64xf32>, vector<100x64xf32> -> vector<100x64xf32>
    %91 = arith.addf %86, %90 : vector<100x64xf32>
    %c30 = arith.constant 30 : index
    %c0_62 = arith.constant 0 : index
    %92 = vector.load %arg18[%c30, %c0_62] : memref<140x32xf32, #tpu.memory_space<vmem>>, vector<100x32xf32>
    %c7 = arith.constant 7 : index
    %c0_63 = arith.constant 0 : index
    %c0_64 = arith.constant 0 : index
    %93 = vector.load %arg4[%c7, %c0_63, %c0_64] : memref<9x32x64xf32, #tpu.memory_space<vmem>>, vector<1x32x64xf32>
    %94 = vector.shape_cast %93 : vector<1x32x64xf32> to vector<32x64xf32>
    %cst_65 = arith.constant dense<0.000000e+00> : vector<100x64xf32>
    %95 = tpu.matmul %92, %94, %cst_65 {dimension_numbers = #tpu.dot_dimension_numbers<[1], [0], [0], [1], [0, 0, 1, 1], [], []>} : vector<100x32xf32>, vector<32x64xf32>, vector<100x64xf32> -> vector<100x64xf32>
    %96 = arith.addf %91, %95 : vector<100x64xf32>
    %c31_66 = arith.constant 31 : index
    %c0_67 = arith.constant 0 : index
    %97 = vector.load %arg18[%c31_66, %c0_67] : memref<140x32xf32, #tpu.memory_space<vmem>>, vector<100x32xf32>
    %c8 = arith.constant 8 : index
    %c0_68 = arith.constant 0 : index
    %c0_69 = arith.constant 0 : index
    %98 = vector.load %arg4[%c8, %c0_68, %c0_69] : memref<9x32x64xf32, #tpu.memory_space<vmem>>, vector<1x32x64xf32>
    %99 = vector.shape_cast %98 : vector<1x32x64xf32> to vector<32x64xf32>
    %cst_70 = arith.constant dense<0.000000e+00> : vector<100x64xf32>
    %100 = tpu.matmul %97, %99, %cst_70 {dimension_numbers = #tpu.dot_dimension_numbers<[1], [0], [0], [1], [0, 0, 1, 1], [], []>} : vector<100x32xf32>, vector<32x64xf32>, vector<100x64xf32> -> vector<100x64xf32>
    %101 = arith.addf %96, %100 : vector<100x64xf32>
    %102 = vector.broadcast %55 : vector<1x64xf32> to vector<100x64xf32>
    %103 = arith.addf %101, %102 : vector<100x64xf32>
    %c0_71 = arith.constant 0 : index
    %c0_72 = arith.constant 0 : index
    %104 = vector.load %arg14[%c0_71, %c0_72] : memref<100x1xf32, #tpu.memory_space<vmem>>, vector<100x1xf32>
    %105 = vector.broadcast %104 : vector<100x1xf32> to vector<100x64xf32>
    %106 = arith.mulf %103, %105 : vector<100x64xf32>
    %c0_73 = arith.constant 0 : index
    %c0_74 = arith.constant 0 : index
    %107 = vector.load %arg6[%c0_73, %c0_74] : memref<1x64xf32, #tpu.memory_space<vmem>>, vector<1x64xf32>
    %c0_75 = arith.constant 0 : index
    %c0_76 = arith.constant 0 : index
    %108 = vector.load %arg7[%c0_75, %c0_76] : memref<1x64xf32, #tpu.memory_space<vmem>>, vector<1x64xf32>
    %c0_77 = arith.constant 0 : index
    %c0_78 = arith.constant 0 : index
    %109 = vector.load %arg12[%c0_77, %c0_78] : memref<64x32xf32, #tpu.memory_space<vmem>>, vector<64x32xf32>
    %c0_79 = arith.constant 0 : index
    %c0_80 = arith.constant 0 : index
    %110 = vector.load %arg13[%c0_79, %c0_80] : memref<32x64xf32, #tpu.memory_space<vmem>>, vector<32x64xf32>
    %cst_81 = arith.constant dense<0.000000e+00> : vector<64xf32>
    %111 = vector.multi_reduction <add>, %106, %cst_81 [0] : vector<100x64xf32> to vector<64xf32>
    %112 = vector.shape_cast %111 : vector<64xf32> to vector<1x64xf32>
    %113 = arith.mulf %106, %106 : vector<100x64xf32>
    %cst_82 = arith.constant dense<0.000000e+00> : vector<64xf32>
    %114 = vector.multi_reduction <add>, %113, %cst_82 [0] : vector<100x64xf32> to vector<64xf32>
    %115 = vector.shape_cast %114 : vector<64xf32> to vector<1x64xf32>
    %cst_83 = arith.constant dense<0.000000e+00> : vector<1x32xf32>
    %116 = tpu.matmul %112, %109, %cst_83 {dimension_numbers = #tpu.dot_dimension_numbers<[1], [0], [0], [1], [0, 0, 1, 1], [], []>} : vector<1x64xf32>, vector<64x32xf32>, vector<1x32xf32> -> vector<1x32xf32>
    %cst_84 = arith.constant dense<0.000000e+00> : vector<1x64xf32>
    %117 = tpu.matmul %116, %110, %cst_84 {dimension_numbers = #tpu.dot_dimension_numbers<[1], [0], [0], [1], [0, 0, 1, 1], [], []>} : vector<1x32xf32>, vector<32x64xf32>, vector<1x64xf32> -> vector<1x64xf32>
    %cst_85 = arith.constant 7.812500e-03 : f32
    %118 = vector.broadcast %cst_85 : f32 to vector<1x64xf32>
    %119 = arith.mulf %117, %118 : vector<1x64xf32>
    %cst_86 = arith.constant dense<0.000000e+00> : vector<1x32xf32>
    %120 = tpu.matmul %115, %109, %cst_86 {dimension_numbers = #tpu.dot_dimension_numbers<[1], [0], [0], [1], [0, 0, 1, 1], [], []>} : vector<1x64xf32>, vector<64x32xf32>, vector<1x32xf32> -> vector<1x32xf32>
    %cst_87 = arith.constant dense<0.000000e+00> : vector<1x64xf32>
    %121 = tpu.matmul %120, %110, %cst_87 {dimension_numbers = #tpu.dot_dimension_numbers<[1], [0], [0], [1], [0, 0, 1, 1], [], []>} : vector<1x32xf32>, vector<32x64xf32>, vector<1x64xf32> -> vector<1x64xf32>
    %cst_88 = arith.constant 7.812500e-03 : f32
    %122 = vector.broadcast %cst_88 : f32 to vector<1x64xf32>
    %123 = arith.mulf %121, %122 : vector<1x64xf32>
    %124 = arith.mulf %119, %119 : vector<1x64xf32>
    %125 = arith.subf %123, %124 : vector<1x64xf32>
    %cst_89 = arith.constant 9.99999974E-6 : f32
    %126 = vector.broadcast %cst_89 : f32 to vector<1x64xf32>
    %127 = arith.addf %125, %126 : vector<1x64xf32>
    %128 = math.rsqrt %127 : vector<1x64xf32>
    %129 = arith.mulf %128, %107 : vector<1x64xf32>
    %130 = vector.broadcast %119 : vector<1x64xf32> to vector<100x64xf32>
    %131 = arith.subf %106, %130 : vector<100x64xf32>
    %132 = vector.broadcast %129 : vector<1x64xf32> to vector<100x64xf32>
    %133 = arith.mulf %131, %132 : vector<100x64xf32>
    %134 = vector.broadcast %108 : vector<1x64xf32> to vector<100x64xf32>
    %135 = arith.addf %133, %134 : vector<100x64xf32>
    %136 = arith.negf %135 : vector<100x64xf32>
    %137 = math.exp %136 : vector<100x64xf32>
    %cst_90 = arith.constant 1.000000e+00 : f32
    %138 = vector.broadcast %cst_90 : f32 to vector<100x64xf32>
    %139 = arith.addf %138, %137 : vector<100x64xf32>
    %140 = arith.divf %138, %139 : vector<100x64xf32>
    %141 = arith.mulf %135, %140 : vector<100x64xf32>
    %142 = vector.broadcast %104 : vector<100x1xf32> to vector<100x64xf32>
    %143 = arith.mulf %141, %142 : vector<100x64xf32>
    %cst_91 = arith.constant 0.000000e+00 : f32
    %144 = vector.broadcast %cst_91 : f32 to vector<20x64xf32>
    %c0_92 = arith.constant 0 : index
    %c0_93 = arith.constant 0 : index
    %145 = vector.load %arg19[%c0_92, %c0_93] : memref<140x64xf32, #tpu.memory_space<vmem>>, vector<20x64xf32>
    tpu.vector_store %arg19[%c0_92, %c0_93], %144 {strides = array<i32>} : memref<140x64xf32, #tpu.memory_space<vmem>>, vector<20x64xf32>,
    %c20_94 = arith.constant 20 : index
    %c0_95 = arith.constant 0 : index
    %146 = vector.load %arg19[%c20_94, %c0_95] : memref<140x64xf32, #tpu.memory_space<vmem>>, vector<100x64xf32>
    tpu.vector_store %arg19[%c20_94, %c0_95], %143 {strides = array<i32>} : memref<140x64xf32, #tpu.memory_space<vmem>>, vector<100x64xf32>,
    %cst_96 = arith.constant 0.000000e+00 : f32
    %147 = vector.broadcast %cst_96 : f32 to vector<20x64xf32>
    %c120 = arith.constant 120 : index
    %c0_97 = arith.constant 0 : index
    %148 = vector.load %arg19[%c120, %c0_97] : memref<140x64xf32, #tpu.memory_space<vmem>>, vector<20x64xf32>
    tpu.vector_store %arg19[%c120, %c0_97], %147 {strides = array<i32>} : memref<140x64xf32, #tpu.memory_space<vmem>>, vector<20x64xf32>,
    %c0_98 = arith.constant 0 : index
    %c0_99 = arith.constant 0 : index
    %149 = vector.load %arg9[%c0_98, %c0_99] : memref<1x64xf32, #tpu.memory_space<vmem>>, vector<1x64xf32>
    %cst_100 = arith.constant 0.000000e+00 : f32
    %150 = vector.broadcast %cst_100 : f32 to vector<100x64xf32>
    %c9_101 = arith.constant 9 : index
    %c0_102 = arith.constant 0 : index
    %151 = vector.load %arg19[%c9_101, %c0_102] : memref<140x64xf32, #tpu.memory_space<vmem>>, vector<100x64xf32>
    %c0_103 = arith.constant 0 : index
    %c0_104 = arith.constant 0 : index
    %c0_105 = arith.constant 0 : index
    %152 = vector.load %arg8[%c0_103, %c0_104, %c0_105] : memref<9x64x64xf32, #tpu.memory_space<vmem>>, vector<1x64x64xf32>
    %153 = vector.shape_cast %152 : vector<1x64x64xf32> to vector<64x64xf32>
    %cst_106 = arith.constant dense<0.000000e+00> : vector<100x64xf32>
    %154 = tpu.matmul %151, %153, %cst_106 {dimension_numbers = #tpu.dot_dimension_numbers<[1], [0], [0], [1], [0, 0, 1, 1], [], []>} : vector<100x64xf32>, vector<64x64xf32>, vector<100x64xf32> -> vector<100x64xf32>
    %155 = arith.addf %150, %154 : vector<100x64xf32>
    %c10_107 = arith.constant 10 : index
    %c0_108 = arith.constant 0 : index
    %156 = vector.load %arg19[%c10_107, %c0_108] : memref<140x64xf32, #tpu.memory_space<vmem>>, vector<100x64xf32>
    %c1_109 = arith.constant 1 : index
    %c0_110 = arith.constant 0 : index
    %c0_111 = arith.constant 0 : index
    %157 = vector.load %arg8[%c1_109, %c0_110, %c0_111] : memref<9x64x64xf32, #tpu.memory_space<vmem>>, vector<1x64x64xf32>
    %158 = vector.shape_cast %157 : vector<1x64x64xf32> to vector<64x64xf32>
    %cst_112 = arith.constant dense<0.000000e+00> : vector<100x64xf32>
    %159 = tpu.matmul %156, %158, %cst_112 {dimension_numbers = #tpu.dot_dimension_numbers<[1], [0], [0], [1], [0, 0, 1, 1], [], []>} : vector<100x64xf32>, vector<64x64xf32>, vector<100x64xf32> -> vector<100x64xf32>
    %160 = arith.addf %155, %159 : vector<100x64xf32>
    %c11_113 = arith.constant 11 : index
    %c0_114 = arith.constant 0 : index
    %161 = vector.load %arg19[%c11_113, %c0_114] : memref<140x64xf32, #tpu.memory_space<vmem>>, vector<100x64xf32>
    %c2_115 = arith.constant 2 : index
    %c0_116 = arith.constant 0 : index
    %c0_117 = arith.constant 0 : index
    %162 = vector.load %arg8[%c2_115, %c0_116, %c0_117] : memref<9x64x64xf32, #tpu.memory_space<vmem>>, vector<1x64x64xf32>
    %163 = vector.shape_cast %162 : vector<1x64x64xf32> to vector<64x64xf32>
    %cst_118 = arith.constant dense<0.000000e+00> : vector<100x64xf32>
    %164 = tpu.matmul %161, %163, %cst_118 {dimension_numbers = #tpu.dot_dimension_numbers<[1], [0], [0], [1], [0, 0, 1, 1], [], []>} : vector<100x64xf32>, vector<64x64xf32>, vector<100x64xf32> -> vector<100x64xf32>
    %165 = arith.addf %160, %164 : vector<100x64xf32>
    %c19_119 = arith.constant 19 : index
    %c0_120 = arith.constant 0 : index
    %166 = vector.load %arg19[%c19_119, %c0_120] : memref<140x64xf32, #tpu.memory_space<vmem>>, vector<100x64xf32>
    %c3_121 = arith.constant 3 : index
    %c0_122 = arith.constant 0 : index
    %c0_123 = arith.constant 0 : index
    %167 = vector.load %arg8[%c3_121, %c0_122, %c0_123] : memref<9x64x64xf32, #tpu.memory_space<vmem>>, vector<1x64x64xf32>
    %168 = vector.shape_cast %167 : vector<1x64x64xf32> to vector<64x64xf32>
    %cst_124 = arith.constant dense<0.000000e+00> : vector<100x64xf32>
    %169 = tpu.matmul %166, %168, %cst_124 {dimension_numbers = #tpu.dot_dimension_numbers<[1], [0], [0], [1], [0, 0, 1, 1], [], []>} : vector<100x64xf32>, vector<64x64xf32>, vector<100x64xf32> -> vector<100x64xf32>
    %170 = arith.addf %165, %169 : vector<100x64xf32>
    %c20_125 = arith.constant 20 : index
    %c0_126 = arith.constant 0 : index
    %171 = vector.load %arg19[%c20_125, %c0_126] : memref<140x64xf32, #tpu.memory_space<vmem>>, vector<100x64xf32>
    %c4_127 = arith.constant 4 : index
    %c0_128 = arith.constant 0 : index
    %c0_129 = arith.constant 0 : index
    %172 = vector.load %arg8[%c4_127, %c0_128, %c0_129] : memref<9x64x64xf32, #tpu.memory_space<vmem>>, vector<1x64x64xf32>
    %173 = vector.shape_cast %172 : vector<1x64x64xf32> to vector<64x64xf32>
    %cst_130 = arith.constant dense<0.000000e+00> : vector<100x64xf32>
    %174 = tpu.matmul %171, %173, %cst_130 {dimension_numbers = #tpu.dot_dimension_numbers<[1], [0], [0], [1], [0, 0, 1, 1], [], []>} : vector<100x64xf32>, vector<64x64xf32>, vector<100x64xf32> -> vector<100x64xf32>
    %175 = arith.addf %170, %174 : vector<100x64xf32>
    %c21_131 = arith.constant 21 : index
    %c0_132 = arith.constant 0 : index
    %176 = vector.load %arg19[%c21_131, %c0_132] : memref<140x64xf32, #tpu.memory_space<vmem>>, vector<100x64xf32>
    %c5_133 = arith.constant 5 : index
    %c0_134 = arith.constant 0 : index
    %c0_135 = arith.constant 0 : index
    %177 = vector.load %arg8[%c5_133, %c0_134, %c0_135] : memref<9x64x64xf32, #tpu.memory_space<vmem>>, vector<1x64x64xf32>
    %178 = vector.shape_cast %177 : vector<1x64x64xf32> to vector<64x64xf32>
    %cst_136 = arith.constant dense<0.000000e+00> : vector<100x64xf32>
    %179 = tpu.matmul %176, %178, %cst_136 {dimension_numbers = #tpu.dot_dimension_numbers<[1], [0], [0], [1], [0, 0, 1, 1], [], []>} : vector<100x64xf32>, vector<64x64xf32>, vector<100x64xf32> -> vector<100x64xf32>
    %180 = arith.addf %175, %179 : vector<100x64xf32>
    %c29_137 = arith.constant 29 : index
    %c0_138 = arith.constant 0 : index
    %181 = vector.load %arg19[%c29_137, %c0_138] : memref<140x64xf32, #tpu.memory_space<vmem>>, vector<100x64xf32>
    %c6_139 = arith.constant 6 : index
    %c0_140 = arith.constant 0 : index
    %c0_141 = arith.constant 0 : index
    %182 = vector.load %arg8[%c6_139, %c0_140, %c0_141] : memref<9x64x64xf32, #tpu.memory_space<vmem>>, vector<1x64x64xf32>
    %183 = vector.shape_cast %182 : vector<1x64x64xf32> to vector<64x64xf32>
    %cst_142 = arith.constant dense<0.000000e+00> : vector<100x64xf32>
    %184 = tpu.matmul %181, %183, %cst_142 {dimension_numbers = #tpu.dot_dimension_numbers<[1], [0], [0], [1], [0, 0, 1, 1], [], []>} : vector<100x64xf32>, vector<64x64xf32>, vector<100x64xf32> -> vector<100x64xf32>
    %185 = arith.addf %180, %184 : vector<100x64xf32>
    %c30_143 = arith.constant 30 : index
    %c0_144 = arith.constant 0 : index
    %186 = vector.load %arg19[%c30_143, %c0_144] : memref<140x64xf32, #tpu.memory_space<vmem>>, vector<100x64xf32>
    %c7_145 = arith.constant 7 : index
    %c0_146 = arith.constant 0 : index
    %c0_147 = arith.constant 0 : index
    %187 = vector.load %arg8[%c7_145, %c0_146, %c0_147] : memref<9x64x64xf32, #tpu.memory_space<vmem>>, vector<1x64x64xf32>
    %188 = vector.shape_cast %187 : vector<1x64x64xf32> to vector<64x64xf32>
    %cst_148 = arith.constant dense<0.000000e+00> : vector<100x64xf32>
    %189 = tpu.matmul %186, %188, %cst_148 {dimension_numbers = #tpu.dot_dimension_numbers<[1], [0], [0], [1], [0, 0, 1, 1], [], []>} : vector<100x64xf32>, vector<64x64xf32>, vector<100x64xf32> -> vector<100x64xf32>
    %190 = arith.addf %185, %189 : vector<100x64xf32>
    %c31_149 = arith.constant 31 : index
    %c0_150 = arith.constant 0 : index
    %191 = vector.load %arg19[%c31_149, %c0_150] : memref<140x64xf32, #tpu.memory_space<vmem>>, vector<100x64xf32>
    %c8_151 = arith.constant 8 : index
    %c0_152 = arith.constant 0 : index
    %c0_153 = arith.constant 0 : index
    %192 = vector.load %arg8[%c8_151, %c0_152, %c0_153] : memref<9x64x64xf32, #tpu.memory_space<vmem>>, vector<1x64x64xf32>
    %193 = vector.shape_cast %192 : vector<1x64x64xf32> to vector<64x64xf32>
    %cst_154 = arith.constant dense<0.000000e+00> : vector<100x64xf32>
    %194 = tpu.matmul %191, %193, %cst_154 {dimension_numbers = #tpu.dot_dimension_numbers<[1], [0], [0], [1], [0, 0, 1, 1], [], []>} : vector<100x64xf32>, vector<64x64xf32>, vector<100x64xf32> -> vector<100x64xf32>
    %195 = arith.addf %190, %194 : vector<100x64xf32>
    %196 = vector.broadcast %149 : vector<1x64xf32> to vector<100x64xf32>
    %197 = arith.addf %195, %196 : vector<100x64xf32>
    %c0_155 = arith.constant 0 : index
    %c0_156 = arith.constant 0 : index
    %198 = vector.load %arg15[%c0_155, %c0_156] : memref<32x64xf32, #tpu.memory_space<vmem>>, vector<32x64xf32>
    %cst_157 = arith.constant dense<0.000000e+00> : vector<64x64xf32>
    %199 = tpu.matmul %1, %198, %cst_157 {dimension_numbers = #tpu.dot_dimension_numbers<[1], [0], [0], [1], [0, 0, 1, 1], [], []>} : vector<64x32xf32>, vector<32x64xf32>, vector<64x64xf32> -> vector<64x64xf32>
    %c0_158 = arith.constant 0 : index
    %c0_159 = arith.constant 0 : index
    %200 = vector.load %arg16[%c0_158, %c0_159] : memref<1x64xf32, #tpu.memory_space<vmem>>, vector<1x64xf32>
    %201 = vector.broadcast %200 : vector<1x64xf32> to vector<64x64xf32>
    %202 = arith.addf %199, %201 : vector<64x64xf32>
    %203 = vector.extract_strided_slice %197 {offsets = [11, 0], sizes = [8, 64], strides = [1, 1]} : vector<100x64xf32> to vector<8x64xf32>
    %204 = vector.extract_strided_slice %202 {offsets = [0, 0], sizes = [8, 64], strides = [1, 1]} : vector<64x64xf32> to vector<8x64xf32>
    %205 = arith.addf %203, %204 : vector<8x64xf32>
    %c0_160 = arith.constant 0 : index
    %c0_161 = arith.constant 0 : index
    %c0_162 = arith.constant 0 : index
    %206 = vector.load %arg17[%c0_160, %c0_161, %c0_162] : memref<1x64x64xf32, #tpu.memory_space<vmem>>, vector<1x8x64xf32>
    %207 = vector.shape_cast %206 : vector<1x8x64xf32> to vector<8x64xf32>
    %208 = vector.shape_cast %205 : vector<8x64xf32> to vector<1x8x64xf32>
    tpu.vector_store %arg17[%c0_160, %c0_161, %c0_162], %208 {strides = array<i32>} : memref<1x64x64xf32, #tpu.memory_space<vmem>>, vector<1x8x64xf32>,
    %209 = vector.extract_strided_slice %197 {offsets = [21, 0], sizes = [8, 64], strides = [1, 1]} : vector<100x64xf32> to vector<8x64xf32>
    %210 = vector.extract_strided_slice %202 {offsets = [8, 0], sizes = [8, 64], strides = [1, 1]} : vector<64x64xf32> to vector<8x64xf32>
    %211 = arith.addf %209, %210 : vector<8x64xf32>
    %c0_163 = arith.constant 0 : index
    %c8_164 = arith.constant 8 : index
    %c0_165 = arith.constant 0 : index
    %212 = vector.load %arg17[%c0_163, %c8_164, %c0_165] : memref<1x64x64xf32, #tpu.memory_space<vmem>>, vector<1x8x64xf32>
    %213 = vector.shape_cast %212 : vector<1x8x64xf32> to vector<8x64xf32>
    %214 = vector.shape_cast %211 : vector<8x64xf32> to vector<1x8x64xf32>
    tpu.vector_store %arg17[%c0_163, %c8_164, %c0_165], %214 {strides = array<i32>} : memref<1x64x64xf32, #tpu.memory_space<vmem>>, vector<1x8x64xf32>,
    %215 = vector.extract_strided_slice %197 {offsets = [31, 0], sizes = [8, 64], strides = [1, 1]} : vector<100x64xf32> to vector<8x64xf32>
    %216 = vector.extract_strided_slice %202 {offsets = [16, 0], sizes = [8, 64], strides = [1, 1]} : vector<64x64xf32> to vector<8x64xf32>
    %217 = arith.addf %215, %216 : vector<8x64xf32>
    %c0_166 = arith.constant 0 : index
    %c16 = arith.constant 16 : index
    %c0_167 = arith.constant 0 : index
    %218 = vector.load %arg17[%c0_166, %c16, %c0_167] : memref<1x64x64xf32, #tpu.memory_space<vmem>>, vector<1x8x64xf32>
    %219 = vector.shape_cast %218 : vector<1x8x64xf32> to vector<8x64xf32>
    %220 = vector.shape_cast %217 : vector<8x64xf32> to vector<1x8x64xf32>
    tpu.vector_store %arg17[%c0_166, %c16, %c0_167], %220 {strides = array<i32>} : memref<1x64x64xf32, #tpu.memory_space<vmem>>, vector<1x8x64xf32>,
    %221 = vector.extract_strided_slice %197 {offsets = [41, 0], sizes = [8, 64], strides = [1, 1]} : vector<100x64xf32> to vector<8x64xf32>
    %222 = vector.extract_strided_slice %202 {offsets = [24, 0], sizes = [8, 64], strides = [1, 1]} : vector<64x64xf32> to vector<8x64xf32>
    %223 = arith.addf %221, %222 : vector<8x64xf32>
    %c0_168 = arith.constant 0 : index
    %c24 = arith.constant 24 : index
    %c0_169 = arith.constant 0 : index
    %224 = vector.load %arg17[%c0_168, %c24, %c0_169] : memref<1x64x64xf32, #tpu.memory_space<vmem>>, vector<1x8x64xf32>
    %225 = vector.shape_cast %224 : vector<1x8x64xf32> to vector<8x64xf32>
    %226 = vector.shape_cast %223 : vector<8x64xf32> to vector<1x8x64xf32>
    tpu.vector_store %arg17[%c0_168, %c24, %c0_169], %226 {strides = array<i32>} : memref<1x64x64xf32, #tpu.memory_space<vmem>>, vector<1x8x64xf32>,
    %227 = vector.extract_strided_slice %197 {offsets = [51, 0], sizes = [8, 64], strides = [1, 1]} : vector<100x64xf32> to vector<8x64xf32>
    %228 = vector.extract_strided_slice %202 {offsets = [32, 0], sizes = [8, 64], strides = [1, 1]} : vector<64x64xf32> to vector<8x64xf32>
    %229 = arith.addf %227, %228 : vector<8x64xf32>
    %c0_170 = arith.constant 0 : index
    %c32 = arith.constant 32 : index
    %c0_171 = arith.constant 0 : index
    %230 = vector.load %arg17[%c0_170, %c32, %c0_171] : memref<1x64x64xf32, #tpu.memory_space<vmem>>, vector<1x8x64xf32>
    %231 = vector.shape_cast %230 : vector<1x8x64xf32> to vector<8x64xf32>
    %232 = vector.shape_cast %229 : vector<8x64xf32> to vector<1x8x64xf32>
    tpu.vector_store %arg17[%c0_170, %c32, %c0_171], %232 {strides = array<i32>} : memref<1x64x64xf32, #tpu.memory_space<vmem>>, vector<1x8x64xf32>,
    %233 = vector.extract_strided_slice %197 {offsets = [61, 0], sizes = [8, 64], strides = [1, 1]} : vector<100x64xf32> to vector<8x64xf32>
    %234 = vector.extract_strided_slice %202 {offsets = [40, 0], sizes = [8, 64], strides = [1, 1]} : vector<64x64xf32> to vector<8x64xf32>
    %235 = arith.addf %233, %234 : vector<8x64xf32>
    %c0_172 = arith.constant 0 : index
    %c40 = arith.constant 40 : index
    %c0_173 = arith.constant 0 : index
    %236 = vector.load %arg17[%c0_172, %c40, %c0_173] : memref<1x64x64xf32, #tpu.memory_space<vmem>>, vector<1x8x64xf32>
    %237 = vector.shape_cast %236 : vector<1x8x64xf32> to vector<8x64xf32>
    %238 = vector.shape_cast %235 : vector<8x64xf32> to vector<1x8x64xf32>
    tpu.vector_store %arg17[%c0_172, %c40, %c0_173], %238 {strides = array<i32>} : memref<1x64x64xf32, #tpu.memory_space<vmem>>, vector<1x8x64xf32>,
    %239 = vector.extract_strided_slice %197 {offsets = [71, 0], sizes = [8, 64], strides = [1, 1]} : vector<100x64xf32> to vector<8x64xf32>
    %240 = vector.extract_strided_slice %202 {offsets = [48, 0], sizes = [8, 64], strides = [1, 1]} : vector<64x64xf32> to vector<8x64xf32>
    %241 = arith.addf %239, %240 : vector<8x64xf32>
    %c0_174 = arith.constant 0 : index
    %c48 = arith.constant 48 : index
    %c0_175 = arith.constant 0 : index
    %242 = vector.load %arg17[%c0_174, %c48, %c0_175] : memref<1x64x64xf32, #tpu.memory_space<vmem>>, vector<1x8x64xf32>
    %243 = vector.shape_cast %242 : vector<1x8x64xf32> to vector<8x64xf32>
    %244 = vector.shape_cast %241 : vector<8x64xf32> to vector<1x8x64xf32>
    tpu.vector_store %arg17[%c0_174, %c48, %c0_175], %244 {strides = array<i32>} : memref<1x64x64xf32, #tpu.memory_space<vmem>>, vector<1x8x64xf32>,
    %245 = vector.extract_strided_slice %197 {offsets = [81, 0], sizes = [8, 64], strides = [1, 1]} : vector<100x64xf32> to vector<8x64xf32>
    %246 = vector.extract_strided_slice %202 {offsets = [56, 0], sizes = [8, 64], strides = [1, 1]} : vector<64x64xf32> to vector<8x64xf32>
    %247 = arith.addf %245, %246 : vector<8x64xf32>
    %c0_176 = arith.constant 0 : index
    %c56 = arith.constant 56 : index
    %c0_177 = arith.constant 0 : index
    %248 = vector.load %arg17[%c0_176, %c56, %c0_177] : memref<1x64x64xf32, #tpu.memory_space<vmem>>, vector<1x8x64xf32>
    %249 = vector.shape_cast %248 : vector<1x8x64xf32> to vector<8x64xf32>
    %250 = vector.shape_cast %247 : vector<8x64xf32> to vector<1x8x64xf32>
    tpu.vector_store %arg17[%c0_176, %c56, %c0_177], %250 {strides = array<i32>} : memref<1x64x64xf32, #tpu.memory_space<vmem>>, vector<1x8x64xf32>,
    return
  }
  func.func @transform_0(%arg0: i32) -> (i32, i32, i32) {
    %c0_i32 = arith.constant 0 : i32
    %c0_i32_0 = arith.constant 0 : i32
    %c0_i32_1 = arith.constant 0 : i32
    return %arg0, %c0_i32, %c0_i32_0 : i32, i32, i32
  }
  func.func @transform_1(%arg0: i32) -> (i32, i32) {
    %c0_i32 = arith.constant 0 : i32
    %c0_i32_0 = arith.constant 0 : i32
    %c0_i32_1 = arith.constant 0 : i32
    return %c0_i32, %c0_i32_0 : i32, i32
  }
  func.func @transform_2(%arg0: i32) -> (i32, i32) {
    %c0_i32 = arith.constant 0 : i32
    %c0_i32_0 = arith.constant 0 : i32
    %c0_i32_1 = arith.constant 0 : i32
    return %c0_i32, %c0_i32_0 : i32, i32
  }
  func.func @transform_3(%arg0: i32) -> (i32, i32, i32) {
    %c0_i32 = arith.constant 0 : i32
    %c0_i32_0 = arith.constant 0 : i32
    %c0_i32_1 = arith.constant 0 : i32
    %c0_i32_2 = arith.constant 0 : i32
    return %c0_i32, %c0_i32_0, %c0_i32_1 : i32, i32, i32
  }
  func.func @transform_4(%arg0: i32) -> (i32, i32) {
    %c0_i32 = arith.constant 0 : i32
    %c0_i32_0 = arith.constant 0 : i32
    %c0_i32_1 = arith.constant 0 : i32
    return %c0_i32, %c0_i32_0 : i32, i32
  }
  func.func @transform_5(%arg0: i32) -> (i32, i32) {
    %c0_i32 = arith.constant 0 : i32
    %c0_i32_0 = arith.constant 0 : i32
    %c0_i32_1 = arith.constant 0 : i32
    return %c0_i32, %c0_i32_0 : i32, i32
  }
  func.func @transform_6(%arg0: i32) -> (i32, i32) {
    %c0_i32 = arith.constant 0 : i32
    %c0_i32_0 = arith.constant 0 : i32
    %c0_i32_1 = arith.constant 0 : i32
    return %c0_i32, %c0_i32_0 : i32, i32
  }
  func.func @transform_7(%arg0: i32) -> (i32, i32, i32) {
    %c0_i32 = arith.constant 0 : i32
    %c0_i32_0 = arith.constant 0 : i32
    %c0_i32_1 = arith.constant 0 : i32
    %c0_i32_2 = arith.constant 0 : i32
    return %c0_i32, %c0_i32_0, %c0_i32_1 : i32, i32, i32
  }
  func.func @transform_8(%arg0: i32) -> (i32, i32) {
    %c0_i32 = arith.constant 0 : i32
    %c0_i32_0 = arith.constant 0 : i32
    %c0_i32_1 = arith.constant 0 : i32
    return %c0_i32, %c0_i32_0 : i32, i32
  }
  func.func @transform_9(%arg0: i32) -> (i32, i32) {
    %c0_i32 = arith.constant 0 : i32
    %c0_i32_0 = arith.constant 0 : i32
    %c0_i32_1 = arith.constant 0 : i32
    return %c0_i32, %c0_i32_0 : i32, i32
  }
  func.func @transform_10(%arg0: i32) -> (i32, i32) {
    %c0_i32 = arith.constant 0 : i32
    %c0_i32_0 = arith.constant 0 : i32
    %c0_i32_1 = arith.constant 0 : i32
    return %c0_i32, %c0_i32_0 : i32, i32
  }
  func.func @transform_11(%arg0: i32) -> (i32, i32) {
    %c0_i32 = arith.constant 0 : i32
    %c0_i32_0 = arith.constant 0 : i32
    %c0_i32_1 = arith.constant 0 : i32
    return %c0_i32, %c0_i32_0 : i32, i32
  }
  func.func @transform_12(%arg0: i32) -> (i32, i32) {
    %c0_i32 = arith.constant 0 : i32
    %c0_i32_0 = arith.constant 0 : i32
    %c0_i32_1 = arith.constant 0 : i32
    return %c0_i32, %c0_i32_0 : i32, i32
  }
  func.func @transform_13(%arg0: i32) -> (i32, i32) {
    %c0_i32 = arith.constant 0 : i32
    %c0_i32_0 = arith.constant 0 : i32
    %c0_i32_1 = arith.constant 0 : i32
    return %c0_i32, %c0_i32_0 : i32, i32
  }
  func.func @transform_14(%arg0: i32) -> (i32, i32) {
    %c0_i32 = arith.constant 0 : i32
    %c0_i32_0 = arith.constant 0 : i32
    %c0_i32_1 = arith.constant 0 : i32
    return %c0_i32, %c0_i32_0 : i32, i32
  }
  func.func @transform_15(%arg0: i32) -> (i32, i32) {
    %c0_i32 = arith.constant 0 : i32
    %c0_i32_0 = arith.constant 0 : i32
    %c0_i32_1 = arith.constant 0 : i32
    return %c0_i32, %c0_i32_0 : i32, i32
  }
  func.func @transform_16(%arg0: i32) -> (i32, i32, i32) {
    %c0_i32 = arith.constant 0 : i32
    %c0_i32_0 = arith.constant 0 : i32
    %c0_i32_1 = arith.constant 0 : i32
    return %arg0, %c0_i32, %c0_i32_0 : i32, i32, i32
  }
}

</mosaic_0001>

<llo_original>
// kernel: tpu_custom_call.1
$region0: #{tpu_custom_call.1}
  #allocation0 [shape = 'u32[]', space=smem, size = 0x4, offset = 0x4, fixed_abs, tag = 'smem constant byte address 0x4 - core index']
  #allocation1 [shape = 'u32[72,128]{1,0:T(1,128)}', space=vmem, size = 0x9000, scoped, tag = 'internal scratch']
  #allocation2 [shape = 'f32[140,32]{1,0:T(8,128)}', space=vmem, size = 0x12000, scoped, tag = 'scratch operand']
  #allocation3 [shape = 'f32[140,64]{1,0:T(8,128)}', space=vmem, size = 0x12000, scoped, tag = 'scratch operand']
  %s0 = inlined_call_operand.vmem [shape: f32[2,64,32], index: 0, kind: input, shape index: {}]
  %s1 = inlined_call_operand.vmem [shape: f32[1,32], index: 1, kind: input, shape index: {}]
  %s2 = inlined_call_operand.vmem [shape: f32[1,32], index: 2, kind: input, shape index: {}]
  %s3 = inlined_call_operand.hbm [shape: f32[9,32,64], index: 3, kind: input, shape index: {}]
  %s4 = inlined_call_operand.vmem [shape: f32[1,64], index: 4, kind: input, shape index: {}]
  %s5 = inlined_call_operand.vmem [shape: f32[1,64], index: 5, kind: input, shape index: {}]
  %s6 = inlined_call_operand.vmem [shape: f32[1,64], index: 6, kind: input, shape index: {}]
  %s7 = inlined_call_operand.hbm [shape: f32[9,64,64], index: 7, kind: input, shape index: {}]
  %s8 = inlined_call_operand.vmem [shape: f32[1,64], index: 8, kind: input, shape index: {}]
  %s9 = inlined_call_operand.vmem [shape: f32[32,32], index: 9, kind: input, shape index: {}]
  %s10 = inlined_call_operand.vmem [shape: f32[32,32], index: 10, kind: input, shape index: {}]
  %s11 = inlined_call_operand.vmem [shape: f32[64,32], index: 11, kind: input, shape index: {}]
  %s12 = inlined_call_operand.vmem [shape: f32[32,64], index: 12, kind: input, shape index: {}]
  %s13 = inlined_call_operand.vmem [shape: f32[100,1], index: 13, kind: input, shape index: {}]
  %s14 = inlined_call_operand.vmem [shape: f32[32,64], index: 14, kind: input, shape index: {}]
  %s15 = inlined_call_operand.vmem [shape: f32[1,64], index: 15, kind: input, shape index: {}]
  %s16 = inlined_call_operand.hbm [shape: f32[2,64,64], index: 16, kind: output, shape index: {}]
  %s17 = sld [smem:[#allocation0]]
  $region105: #{tpu_custom_call.1} parent=0
    _
  %s19 = ssub.s32 1, %s17
  %s20 = scalar_select 0, %s19, %s17
  $region1: #{tpu_custom_call.1} parent=0
    #allocation4 [shape = 'u8[147456]{0}', space=vmem, size = 0x24000, scoped, tag = 'input window, operand 3, single buffered']
    #allocation5 [shape = 's32[2]{0}', space=sflag, size = 0x8, scoped, tag = 'scoped memory for tpu_custom_call.1']
    #allocation6 [shape = 's32[2]{0}', space=sflag, size = 0x8, scoped, tag = 'scoped memory for tpu_custom_call.1']
    #allocation7 [shape = 'u8[294912]{0}', space=vmem, size = 0x48000, scoped, tag = 'input window, operand 7, single buffered']
    #allocation8 [shape = 's32[1]{0}', space=sflag, size = 0x4, scoped, tag = 'scoped memory for tpu_custom_call.1']
    #allocation9 [shape = 'u8[65536]{0}', space=vmem, size = 0x10000, scoped, tag = 'output window, operand 0']
    %21 = vsyncpa [#allocation5], 0
    %22 = vsyncpa [#allocation8], 0
    %23 = vsyncpa [#allocation6], 0
    %s24 = scalar_lea.sflag [#allocation6], 1
    %25 = vsyncpa %s24, 0
    loop: start=0, step=1, limit=4
    $region2: #{tpu_custom_call.1} parent=1 // loop_pre_header
      _
    $region3: #{tpu_custom_call.1} parent=1 // loop_header
      %s27 = sphi 0, %s31
      %p28 = scmp.ge.s32.totalorder %s27, 4
      %s37 = sphi 0, %s39
      %s40 = sphi 0, %s37
      %s41 = sphi 0, %s40
      %s57 = sphi 0, %s41
      %s61 = sphi 0, %s61
      %s63 = sphi 0, %s61
      %s64 = sphi 0, %s63
      %s78 = sphi 0, %s64
      %s82 = sphi 0, %s82
      %s84 = sphi 0, %s82
      %s85 = sphi 0, %s84
      %s99 = sphi 0, %s85
      %s103 = sphi 0, %s103
      %s105 = sphi 0, %s103
      %s106 = sphi 0, %s105
      %s120 = sphi 0, %s106
      %s124 = sphi 0, %s124
      %s126 = sphi 0, %s124
      %s127 = sphi 0, %s126
      %s141 = sphi 0, %s127
      %s145 = sphi 0, %s145
      %s147 = sphi 0, %s145
      %s148 = sphi 0, %s147
      %s162 = sphi 0, %s148
      %s166 = sphi 0, %s166
      %s168 = sphi 0, %s166
      %s169 = sphi 0, %s168
      %s183 = sphi 0, %s169
      %s187 = sphi 0, %s187
      %s189 = sphi 0, %s187
      %s190 = sphi 0, %s189
      %s204 = sphi 0, %s190
      %s208 = sphi 0, %s208
      %s210 = sphi 0, %s208
      %s211 = sphi 0, %s210
      %s225 = sphi 0, %s211
      %s229 = sphi 0, %s229
      %s231 = sphi 0, %s229
      %s232 = sphi 0, %s231
      %s246 = sphi 0, %s232
      %s250 = sphi 0, %s250
      %s252 = sphi 0, %s250
      %s253 = sphi 0, %s252
      %s267 = sphi 0, %s253
      %s271 = sphi 0, %s271
      %s273 = sphi 0, %s271
      %s274 = sphi 0, %s273
      %s288 = sphi 0, %s274
      %s292 = sphi 0, %s292
      %s294 = sphi 0, %s292
      %s295 = sphi 0, %s294
      %s309 = sphi 0, %s295
      %s313 = sphi 0, %s313
      %s315 = sphi 0, %s313
      %s316 = sphi 0, %s315
      %s330 = sphi 0, %s316
      %s334 = sphi 0, %s334
      %s336 = sphi 0, %s334
      %s337 = sphi 0, %s336
      %s351 = sphi 0, %s337
      %s355 = sphi 0, %s355
      %s357 = sphi 0, %s355
      %s358 = sphi 0, %s357
      %s372 = sphi 0, %s358
      %s378 = sphi 0, %s380
      %s381 = sphi 0, %s378
      %s382 = sphi 0, %s381
      %s398 = sphi 0, %s382
    $region4: #{tpu_custom_call.1} parent=1 // loop_header_branch
      %30 = sbr.rel (%p28) target = $region8
    $region5: #{tpu_custom_call.1} parent=1 // loop_body
      %s32 = ssub.s32 %s27, 1
      %s33 = ssub.s32 %s27, 2
      %s34 = sadd.s32 %s27, 1
      %s35 = ssub.s32 %s27, %s34
      %p36 = scmp.eq.s32.totalorder %s35, 0
      %s38 = sadd.s32 %s37, 1
      %s39 = scalar_select %p36, %s37, %s38
      %p42 = pneg %p36
      %p43 = scmp.eq.s32.totalorder %s27, 1
      %p44 = por %p42, %p43
      %p45 = scmp.ne.s32.totalorder %s37, %s40
      %p46 = scmp.eq.s32.totalorder %s27, 0
      %p47 = por %p45, %p46
      %p48 = scmp.ne.s32.totalorder %s37, %s40
      %p49 = scmp.eq.s32.totalorder %s32, 1
      %p50 = por %p48, %p49
      %p51 = scmp.ne.s32.totalorder %s40, %s41
      %p52 = scmp.eq.s32.totalorder %s32, 0
      %p53 = por %p51, %p52
      %p54 = scmp.ne.s32.totalorder %s40, %s41
      %p55 = scmp.eq.s32.totalorder %s33, 1
      %p56 = por %p54, %p55
      %p58 = scmp.ne.s32.totalorder %s41, %s57
      %p59 = scmp.eq.s32.totalorder %s33, 0
      %p60 = por %p58, %p59
      %s62 = sadd.s32 %s61, 1
      %p65 = scmp.eq.s32.totalorder %s27, 1
      %p66 = scmp.ne.s32.totalorder %s61, %s63
      %p67 = scmp.eq.s32.totalorder %s27, 0
      %p68 = por %p66, %p67
      %p69 = scmp.ne.s32.totalorder %s61, %s63
      %p70 = scmp.eq.s32.totalorder %s32, 1
      %p71 = por %p69, %p70
      %p72 = scmp.ne.s32.totalorder %s63, %s64
      %p73 = scmp.eq.s32.totalorder %s32, 0
      %p74 = por %p72, %p73
      %p75 = scmp.ne.s32.totalorder %s63, %s64
      %p76 = scmp.eq.s32.totalorder %s33, 1
      %p77 = por %p75, %p76
      %p79 = scmp.ne.s32.totalorder %s64, %s78
      %p80 = scmp.eq.s32.totalorder %s33, 0
      %p81 = por %p79, %p80
      %s83 = sadd.s32 %s82, 1
      %p86 = scmp.eq.s32.totalorder %s27, 1
      %p87 = scmp.ne.s32.totalorder %s82, %s84
      %p88 = scmp.eq.s32.totalorder %s27, 0
      %p89 = por %p87, %p88
      %p90 = scmp.ne.s32.totalorder %s82, %s84
      %p91 = scmp.eq.s32.totalorder %s32, 1
      %p92 = por %p90, %p91
      %p93 = scmp.ne.s32.totalorder %s84, %s85
      %p94 = scmp.eq.s32.totalorder %s32, 0
      %p95 = por %p93, %p94
      %p96 = scmp.ne.s32.totalorder %s84, %s85
      %p97 = scmp.eq.s32.totalorder %s33, 1
      %p98 = por %p96, %p97
      %p100 = scmp.ne.s32.totalorder %s85, %s99
      %p101 = scmp.eq.s32.totalorder %s33, 0
      %p102 = por %p100, %p101
      %s104 = sadd.s32 %s103, 1
      %p107 = scmp.eq.s32.totalorder %s27, 1
      %p108 = scmp.ne.s32.totalorder %s103, %s105
      %p109 = scmp.eq.s32.totalorder %s27, 0
      %p110 = por %p108, %p109
      %p111 = scmp.ne.s32.totalorder %s103, %s105
      %p112 = scmp.eq.s32.totalorder %s32, 1
      %p113 = por %p111, %p112
      %p114 = scmp.ne.s32.totalorder %s105, %s106
      %p115 = scmp.eq.s32.totalorder %s32, 0
      %p116 = por %p114, %p115
      %p117 = scmp.ne.s32.totalorder %s105, %s106
      %p118 = scmp.eq.s32.totalorder %s33, 1
      %p119 = por %p117, %p118
      %p121 = scmp.ne.s32.totalorder %s106, %s120
      %p122 = scmp.eq.s32.totalorder %s33, 0
      %p123 = por %p121, %p122
      %s125 = sadd.s32 %s124, 1
      %p128 = scmp.eq.s32.totalorder %s27, 1
      %p129 = scmp.ne.s32.totalorder %s124, %s126
      %p130 = scmp.eq.s32.totalorder %s27, 0
      %p131 = por %p129, %p130
      %p132 = scmp.ne.s32.totalorder %s124, %s126
      %p133 = scmp.eq.s32.totalorder %s32, 1
      %p134 = por %p132, %p133
      %p135 = scmp.ne.s32.totalorder %s126, %s127
      %p136 = scmp.eq.s32.totalorder %s32, 0
      %p137 = por %p135, %p136
      %p138 = scmp.ne.s32.totalorder %s126, %s127
      %p139 = scmp.eq.s32.totalorder %s33, 1
      %p140 = por %p138, %p139
      %p142 = scmp.ne.s32.totalorder %s127, %s141
      %p143 = scmp.eq.s32.totalorder %s33, 0
      %p144 = por %p142, %p143
      %s146 = sadd.s32 %s145, 1
      %p149 = scmp.eq.s32.totalorder %s27, 1
      %p150 = scmp.ne.s32.totalorder %s145, %s147
      %p151 = scmp.eq.s32.totalorder %s27, 0
      %p152 = por %p150, %p151
      %p153 = scmp.ne.s32.totalorder %s145, %s147
      %p154 = scmp.eq.s32.totalorder %s32, 1
      %p155 = por %p153, %p154
      %p156 = scmp.ne.s32.totalorder %s147, %s148
      %p157 = scmp.eq.s32.totalorder %s32, 0
      %p158 = por %p156, %p157
      %p159 = scmp.ne.s32.totalorder %s147, %s148
      %p160 = scmp.eq.s32.totalorder %s33, 1
      %p161 = por %p159, %p160
      %p163 = scmp.ne.s32.totalorder %s148, %s162
      %p164 = scmp.eq.s32.totalorder %s33, 0
      %p165 = por %p163, %p164
      %s167 = sadd.s32 %s166, 1
      %p170 = scmp.eq.s32.totalorder %s27, 1
      %p171 = scmp.ne.s32.totalorder %s166, %s168
      %p172 = scmp.eq.s32.totalorder %s27, 0
      %p173 = por %p171, %p172
      %p174 = scmp.ne.s32.totalorder %s166, %s168
      %p175 = scmp.eq.s32.totalorder %s32, 1
      %p176 = por %p174, %p175
      %p177 = scmp.ne.s32.totalorder %s168, %s169
      %p178 = scmp.eq.s32.totalorder %s32, 0
      %p179 = por %p177, %p178
      %p180 = scmp.ne.s32.totalorder %s168, %s169
      %p181 = scmp.eq.s32.totalorder %s33, 1
      %p182 = por %p180, %p181
      %p184 = scmp.ne.s32.totalorder %s169, %s183
      %p185 = scmp.eq.s32.totalorder %s33, 0
      %p186 = por %p184, %p185
      %s188 = sadd.s32 %s187, 1
      %p191 = scmp.eq.s32.totalorder %s27, 1
      %p192 = scmp.ne.s32.totalorder %s187, %s189
      %p193 = scmp.eq.s32.totalorder %s27, 0
      %p194 = por %p192, %p193
      %p195 = scmp.ne.s32.totalorder %s187, %s189
      %p196 = scmp.eq.s32.totalorder %s32, 1
      %p197 = por %p195, %p196
      %p198 = scmp.ne.s32.totalorder %s189, %s190
      %p199 = scmp.eq.s32.totalorder %s32, 0
      %p200 = por %p198, %p199
      %p201 = scmp.ne.s32.totalorder %s189, %s190
      %p202 = scmp.eq.s32.totalorder %s33, 1
      %p203 = por %p201, %p202
      %p205 = scmp.ne.s32.totalorder %s190, %s204
      %p206 = scmp.eq.s32.totalorder %s33, 0
      %p207 = por %p205, %p206
      %s209 = sadd.s32 %s208, 1
      %p212 = scmp.eq.s32.totalorder %s27, 1
      %p213 = scmp.ne.s32.totalorder %s208, %s210
      %p214 = scmp.eq.s32.totalorder %s27, 0
      %p215 = por %p213, %p214
      %p216 = scmp.ne.s32.totalorder %s208, %s210
      %p217 = scmp.eq.s32.totalorder %s32, 1
      %p218 = por %p216, %p217
      %p219 = scmp.ne.s32.totalorder %s210, %s211
      %p220 = scmp.eq.s32.totalorder %s32, 0
      %p221 = por %p219, %p220
      %p222 = scmp.ne.s32.totalorder %s210, %s211
      %p223 = scmp.eq.s32.totalorder %s33, 1
      %p224 = por %p222, %p223
      %p226 = scmp.ne.s32.totalorder %s211, %s225
      %p227 = scmp.eq.s32.totalorder %s33, 0
      %p228 = por %p226, %p227
      %s230 = sadd.s32 %s229, 1
      %p233 = scmp.eq.s32.totalorder %s27, 1
      %p234 = scmp.ne.s32.totalorder %s229, %s231
      %p235 = scmp.eq.s32.totalorder %s27, 0
      %p236 = por %p234, %p235
      %p237 = scmp.ne.s32.totalorder %s229, %s231
      %p238 = scmp.eq.s32.totalorder %s32, 1
      %p239 = por %p237, %p238
      %p240 = scmp.ne.s32.totalorder %s231, %s232
      %p241 = scmp.eq.s32.totalorder %s32, 0
      %p242 = por %p240, %p241
      %p243 = scmp.ne.s32.totalorder %s231, %s232
      %p244 = scmp.eq.s32.totalorder %s33, 1
      %p245 = por %p243, %p244
      %p247 = scmp.ne.s32.totalorder %s232, %s246
      %p248 = scmp.eq.s32.totalorder %s33, 0
      %p249 = por %p247, %p248
      %s251 = sadd.s32 %s250, 1
      %p254 = scmp.eq.s32.totalorder %s27, 1
      %p255 = scmp.ne.s32.totalorder %s250, %s252
      %p256 = scmp.eq.s32.totalorder %s27, 0
      %p257 = por %p255, %p256
      %p258 = scmp.ne.s32.totalorder %s250, %s252
      %p259 = scmp.eq.s32.totalorder %s32, 1
      %p260 = por %p258, %p259
      %p261 = scmp.ne.s32.totalorder %s252, %s253
      %p262 = scmp.eq.s32.totalorder %s32, 0
      %p263 = por %p261, %p262
      %p264 = scmp.ne.s32.totalorder %s252, %s253
      %p265 = scmp.eq.s32.totalorder %s33, 1
      %p266 = por %p264, %p265
      %p268 = scmp.ne.s32.totalorder %s253, %s267
      %p269 = scmp.eq.s32.totalorder %s33, 0
      %p270 = por %p268, %p269
      %s272 = sadd.s32 %s271, 1
      %p275 = scmp.eq.s32.totalorder %s27, 1
      %p276 = scmp.ne.s32.totalorder %s271, %s273
      %p277 = scmp.eq.s32.totalorder %s27, 0
      %p278 = por %p276, %p277
      %p279 = scmp.ne.s32.totalorder %s271, %s273
      %p280 = scmp.eq.s32.totalorder %s32, 1
      %p281 = por %p279, %p280
      %p282 = scmp.ne.s32.totalorder %s273, %s274
      %p283 = scmp.eq.s32.totalorder %s32, 0
      %p284 = por %p282, %p283
      %p285 = scmp.ne.s32.totalorder %s273, %s274
      %p286 = scmp.eq.s32.totalorder %s33, 1
      %p287 = por %p285, %p286
      %p289 = scmp.ne.s32.totalorder %s274, %s288
      %p290 = scmp.eq.s32.totalorder %s33, 0
      %p291 = por %p289, %p290
      %s293 = sadd.s32 %s292, 1
      %p296 = scmp.eq.s32.totalorder %s27, 1
      %p297 = scmp.ne.s32.totalorder %s292, %s294
      %p298 = scmp.eq.s32.totalorder %s27, 0
      %p299 = por %p297, %p298
      %p300 = scmp.ne.s32.totalorder %s292, %s294
      %p301 = scmp.eq.s32.totalorder %s32, 1
      %p302 = por %p300, %p301
      %p303 = scmp.ne.s32.totalorder %s294, %s295
      %p304 = scmp.eq.s32.totalorder %s32, 0
      %p305 = por %p303, %p304
      %p306 = scmp.ne.s32.totalorder %s294, %s295
      %p307 = scmp.eq.s32.totalorder %s33, 1
      %p308 = por %p306, %p307
      %p310 = scmp.ne.s32.totalorder %s295, %s309
      %p311 = scmp.eq.s32.totalorder %s33, 0
      %p312 = por %p310, %p311
      %s314 = sadd.s32 %s313, 1
      %p317 = scmp.eq.s32.totalorder %s27, 1
      %p318 = scmp.ne.s32.totalorder %s313, %s315
      %p319 = scmp.eq.s32.totalorder %s27, 0
      %p320 = por %p318, %p319
      %p321 = scmp.ne.s32.totalorder %s313, %s315
      %p322 = scmp.eq.s32.totalorder %s32, 1
      %p323 = por %p321, %p322
      %p324 = scmp.ne.s32.totalorder %s315, %s316
      %p325 = scmp.eq.s32.totalorder %s32, 0
      %p326 = por %p324, %p325
      %p327 = scmp.ne.s32.totalorder %s315, %s316
      %p328 = scmp.eq.s32.totalorder %s33, 1
      %p329 = por %p327, %p328
      %p331 = scmp.ne.s32.totalorder %s316, %s330
      %p332 = scmp.eq.s32.totalorder %s33, 0
      %p333 = por %p331, %p332
      %s335 = sadd.s32 %s334, 1
      %p338 = scmp.eq.s32.totalorder %s27, 1
      %p339 = scmp.ne.s32.totalorder %s334, %s336
      %p340 = scmp.eq.s32.totalorder %s27, 0
      %p341 = por %p339, %p340
      %p342 = scmp.ne.s32.totalorder %s334, %s336
      %p343 = scmp.eq.s32.totalorder %s32, 1
      %p344 = por %p342, %p343
      %p345 = scmp.ne.s32.totalorder %s336, %s337
      %p346 = scmp.eq.s32.totalorder %s32, 0
      %p347 = por %p345, %p346
      %p348 = scmp.ne.s32.totalorder %s336, %s337
      %p349 = scmp.eq.s32.totalorder %s33, 1
      %p350 = por %p348, %p349
      %p352 = scmp.ne.s32.totalorder %s337, %s351
      %p353 = scmp.eq.s32.totalorder %s33, 0
      %p354 = por %p352, %p353
      %s356 = sadd.s32 %s355, 1
      %p359 = scmp.eq.s32.totalorder %s27, 1
      %p360 = scmp.ne.s32.totalorder %s355, %s357
      %p361 = scmp.eq.s32.totalorder %s27, 0
      %p362 = por %p360, %p361
      %p363 = scmp.ne.s32.totalorder %s355, %s357
      %p364 = scmp.eq.s32.totalorder %s32, 1
      %p365 = por %p363, %p364
      %p366 = scmp.ne.s32.totalorder %s357, %s358
      %p367 = scmp.eq.s32.totalorder %s32, 0
      %p368 = por %p366, %p367
      %p369 = scmp.ne.s32.totalorder %s357, %s358
      %p370 = scmp.eq.s32.totalorder %s33, 1
      %p371 = por %p369, %p370
      %p373 = scmp.ne.s32.totalorder %s358, %s372
      %p374 = scmp.eq.s32.totalorder %s33, 0
      %p375 = por %p373, %p374
      %s376 = ssub.s32 %s27, %s34
      %p377 = scmp.eq.s32.totalorder %s376, 0
      %s379 = sadd.s32 %s378, 1
      %s380 = scalar_select %p377, %s378, %s379
      %p383 = pneg %p377
      %p384 = scmp.eq.s32.totalorder %s27, 1
      %p385 = por %p383, %p384
      %p386 = scmp.ne.s32.totalorder %s378, %s381
      %p387 = scmp.eq.s32.totalorder %s27, 0
      %p388 = por %p386, %p387
      %p389 = scmp.ne.s32.totalorder %s378, %s381
      %p390 = scmp.eq.s32.totalorder %s32, 1
      %p391 = por %p389, %p390
      %p392 = scmp.ne.s32.totalorder %s381, %s382
      %p393 = scmp.eq.s32.totalorder %s32, 0
      %p394 = por %p392, %p393
      %p395 = scmp.ne.s32.totalorder %s381, %s382
      %p396 = scmp.eq.s32.totalorder %s33, 1
      %p397 = por %p395, %p396
      %p399 = scmp.ne.s32.totalorder %s382, %s398
      %p400 = scmp.eq.s32.totalorder %s33, 0
      %p401 = por %p399, %p400
      %p402 = scmp.le.s32.totalorder 1, %s27
      %p403 = scmp.lt.s32.totalorder %s27, 3
      %p404 = pnand %p402, %p403
      %p405 = pneg %p404
      // Predicated region
      $region9: #{tpu_custom_call.1} parent=5 // pred_check
        _
      $region10: #{tpu_custom_call.1} parent=5 // pred_check_branch
        %407 = sbr.rel (%p404) target = $region12
      $region11: #{tpu_custom_call.1} parent=5 // pred_region
        %s408 = ssub.s32 %s27, 1
        // Predicated region
        $region13: #{tpu_custom_call.1} parent=11 // pred_check
          %p409 = pneg %p74
        $region14: #{tpu_custom_call.1} parent=11 // pred_check_branch
          %411 = sbr.rel (%p409) target = $region16
        $region15: #{tpu_custom_call.1} parent=11 // pred_region
          _
        $region16: #{tpu_custom_call.1} parent=11 // pred_fallthru
          _
        // Predicated region
        $region17: #{tpu_custom_call.1} parent=11 // pred_check
          %p412 = pneg %p95
        $region18: #{tpu_custom_call.1} parent=11 // pred_check_branch
          %414 = sbr.rel (%p412) target = $region20
        $region19: #{tpu_custom_call.1} parent=11 // pred_region
          _
        $region20: #{tpu_custom_call.1} parent=11 // pred_fallthru
          _
        // Predicated region
        $region21: #{tpu_custom_call.1} parent=11 // pred_check
          %p415 = pneg %p116
        $region22: #{tpu_custom_call.1} parent=11 // pred_check_branch
          %417 = sbr.rel (%p415) target = $region24
        $region23: #{tpu_custom_call.1} parent=11 // pred_region
          %419 = vsyncadd [#allocation5], 0
          %s420 = sshll.u32 %s3, 4
          %s421 = int_to_ptr.hbm [resolvable:$true] %s420
          %s422 = sshll.u32 [#allocation4], 4
          %s423 = int_to_ptr.vmem [resolvable:$true] %s422
          %428 = dma.hbm_to_vmem [thread:$0]  %s421, 4608, %s423, [#allocation5], 128, 128, 8
        $region24: #{tpu_custom_call.1} parent=11 // pred_fallthru
          _
        // Predicated region
        $region25: #{tpu_custom_call.1} parent=11 // pred_check
          %p429 = pneg %p137
        $region26: #{tpu_custom_call.1} parent=11 // pred_check_branch
          %431 = sbr.rel (%p429) target = $region28
        $region27: #{tpu_custom_call.1} parent=11 // pred_region
          _
        $region28: #{tpu_custom_call.1} parent=11 // pred_fallthru
          _
        // Predicated region
        $region29: #{tpu_custom_call.1} parent=11 // pred_check
          %p432 = pneg %p158
        $region30: #{tpu_custom_call.1} parent=11 // pred_check_branch
          %434 = sbr.rel (%p432) target = $region32
        $region31: #{tpu_custom_call.1} parent=11 // pred_region
          _
        $region32: #{tpu_custom_call.1} parent=11 // pred_fallthru
          _
        // Predicated region
        $region33: #{tpu_custom_call.1} parent=11 // pred_check
          %p435 = pneg %p179
        $region34: #{tpu_custom_call.1} parent=11 // pred_check_branch
          %437 = sbr.rel (%p435) target = $region36
        $region35: #{tpu_custom_call.1} parent=11 // pred_region
          _
        $region36: #{tpu_custom_call.1} parent=11 // pred_fallthru
          _
        // Predicated region
        $region37: #{tpu_custom_call.1} parent=11 // pred_check
          %p438 = pneg %p200
        $region38: #{tpu_custom_call.1} parent=11 // pred_check_branch
          %440 = sbr.rel (%p438) target = $region40
        $region39: #{tpu_custom_call.1} parent=11 // pred_region
          %442 = vsyncadd [#allocation8], 0
          %s443 = sshll.u32 %s7, 4
          %s444 = int_to_ptr.hbm [resolvable:$true] %s443
          %s445 = sshll.u32 [#allocation7], 4
          %s446 = int_to_ptr.vmem [resolvable:$true] %s445
          %451 = dma.hbm_to_vmem [thread:$0]  %s444, 9216, %s446, [#allocation8], 128, 128, 8
        $region40: #{tpu_custom_call.1} parent=11 // pred_fallthru
          _
        // Predicated region
        $region41: #{tpu_custom_call.1} parent=11 // pred_check
          %p452 = pneg %p221
        $region42: #{tpu_custom_call.1} parent=11 // pred_check_branch
          %454 = sbr.rel (%p452) target = $region44
        $region43: #{tpu_custom_call.1} parent=11 // pred_region
          _
        $region44: #{tpu_custom_call.1} parent=11 // pred_fallthru
          _
        // Predicated region
        $region45: #{tpu_custom_call.1} parent=11 // pred_check
          %p455 = pneg %p242
        $region46: #{tpu_custom_call.1} parent=11 // pred_check_branch
          %457 = sbr.rel (%p455) target = $region48
        $region47: #{tpu_custom_call.1} parent=11 // pred_region
          _
        $region48: #{tpu_custom_call.1} parent=11 // pred_fallthru
          _
        // Predicated region
        $region49: #{tpu_custom_call.1} parent=11 // pred_check
          %p458 = pneg %p263
        $region50: #{tpu_custom_call.1} parent=11 // pred_check_branch
          %460 = sbr.rel (%p458) target = $region52
        $region51: #{tpu_custom_call.1} parent=11 // pred_region
          _
        $region52: #{tpu_custom_call.1} parent=11 // pred_fallthru
          _
        // Predicated region
        $region53: #{tpu_custom_call.1} parent=11 // pred_check
          %p461 = pneg %p284
        $region54: #{tpu_custom_call.1} parent=11 // pred_check_branch
          %463 = sbr.rel (%p461) target = $region56
        $region55: #{tpu_custom_call.1} parent=11 // pred_region
          _
        $region56: #{tpu_custom_call.1} parent=11 // pred_fallthru
          _
        // Predicated region
        $region57: #{tpu_custom_call.1} parent=11 // pred_check
          %p464 = pneg %p305
        $region58: #{tpu_custom_call.1} parent=11 // pred_check_branch
          %466 = sbr.rel (%p464) target = $region60
        $region59: #{tpu_custom_call.1} parent=11 // pred_region
          _
        $region60: #{tpu_custom_call.1} parent=11 // pred_fallthru
          _
        // Predicated region
        $region61: #{tpu_custom_call.1} parent=11 // pred_check
          %p467 = pneg %p326
        $region62: #{tpu_custom_call.1} parent=11 // pred_check_branch
          %469 = sbr.rel (%p467) target = $region64
        $region63: #{tpu_custom_call.1} parent=11 // pred_region
          _
        $region64: #{tpu_custom_call.1} parent=11 // pred_fallthru
          _
        // Predicated region
        $region65: #{tpu_custom_call.1} parent=11 // pred_check
          %p470 = pneg %p347
        $region66: #{tpu_custom_call.1} parent=11 // pred_check_branch
          %472 = sbr.rel (%p470) target = $region68
        $region67: #{tpu_custom_call.1} parent=11 // pred_region
          _
        $region68: #{tpu_custom_call.1} parent=11 // pred_fallthru
          _
        // Predicated region
        $region69: #{tpu_custom_call.1} parent=11 // pred_check
          %p473 = pneg %p368
        $region70: #{tpu_custom_call.1} parent=11 // pred_check_branch
          %475 = sbr.rel (%p473) target = $region72
        $region71: #{tpu_custom_call.1} parent=11 // pred_region
          _
        $region72: #{tpu_custom_call.1} parent=11 // pred_fallthru
          _
      $region12: #{tpu_custom_call.1} parent=5 // pred_fallthru
        _
      %p476 = scmp.lt.s32.totalorder %s27, 2
      // Predicated region
      $region73: #{tpu_custom_call.1} parent=5 // pred_check
        %p477 = pneg %p476
      $region74: #{tpu_custom_call.1} parent=5 // pred_check_branch
        %479 = sbr.rel (%p477) target = $region76
      $region75: #{tpu_custom_call.1} parent=5 // pred_region
        // Predicated region
        $region77: #{tpu_custom_call.1} parent=75 // pred_check
          %p480 = pneg %p47
        $region78: #{tpu_custom_call.1} parent=75 // pred_check_branch
          %482 = sbr.rel (%p480) target = $region80
        $region79: #{tpu_custom_call.1} parent=75 // pred_region
          %p483 = scmp.lt.s32.totalorder %s27, 1
          %s484 = scalar_select %p483, %s27, 1
          %s485 = smul.addr %s484, 8
          %s486 = smul.addr %s485, 8
          %s487 = scalar_lea.vmem %s0, %s486
        $region80: #{tpu_custom_call.1} parent=75 // pred_fallthru
          _
      $region76: #{tpu_custom_call.1} parent=5 // pred_fallthru
        _
      %p488 = scmp.le.s32.totalorder 1, %s27
      %p489 = scmp.lt.s32.totalorder %s27, 3
      %p490 = pnand %p488, %p489
      %p491 = pneg %p490
      // Predicated region
      $region81: #{tpu_custom_call.1} parent=5 // pred_check
        _
      $region82: #{tpu_custom_call.1} parent=5 // pred_check_branch
        %493 = sbr.rel (%p490) target = $region84
      $region83: #{tpu_custom_call.1} parent=5 // pred_region
        %s494 = ssub.s32 %s27, 1
        // Predicated region
        $region85: #{tpu_custom_call.1} parent=83 // pred_check
          %p495 = pneg %p116
        $region86: #{tpu_custom_call.1} parent=83 // pred_check_branch
          %497 = sbr.rel (%p495) target = $region88
        $region87: #{tpu_custom_call.1} parent=83 // pred_region
          %499 = dma.done [#allocation5], 4608
        $region88: #{tpu_custom_call.1} parent=83 // pred_fallthru
          _
        // Predicated region
        $region89: #{tpu_custom_call.1} parent=83 // pred_check
          %p500 = pneg %p200
        $region90: #{tpu_custom_call.1} parent=83 // pred_check_branch
          %502 = sbr.rel (%p500) target = $region92
        $region91: #{tpu_custom_call.1} parent=83 // pred_region
          %504 = dma.done [#allocation8], 9216
        $region92: #{tpu_custom_call.1} parent=83 // pred_fallthru
          _
        %p505 = scmp.lt.s32.totalorder %s32, 1
        %s506 = scalar_select %p505, %s32, 1
        %s507 = smul.addr %s506, 8
        %s508 = smul.addr %s507, 8
        %s509 = scalar_lea.vmem %s0, %s508
        %p510 = pneg %p53
        %p511 = pneg %p50
        %p512 = pneg %p74
        %p513 = pneg %p71
        %p514 = pneg %p95
        %p515 = pneg %p92
        %p516 = pneg %p116
        %p517 = pneg %p113
        %p518 = pneg %p137
        %p519 = pneg %p134
        %p520 = pneg %p158
        %p521 = pneg %p155
        %p522 = pneg %p179
        %p523 = pneg %p176
        %p524 = pneg %p200
        %p525 = pneg %p197
        %p526 = pneg %p221
        %p527 = pneg %p218
        %p528 = pneg %p242
        %p529 = pneg %p239
        %p530 = pneg %p263
        %p531 = pneg %p260
        %p532 = pneg %p284
        %p533 = pneg %p281
        %p534 = pneg %p305
        %p535 = pneg %p302
        %p536 = pneg %p326
        %p537 = pneg %p323
        %p538 = pneg %p347
        %p539 = pneg %p344
        %p540 = pneg %p368
        %p541 = pneg %p365
        %p542 = pneg %p394
        %p543 = pneg %p391
        %s544 = sand.u32 %s381, 1
        %s545 = scalar_lea.sflag [#allocation6], %s544
        %s546 = sand.u32 %s381, 1
        %s547 = smul.addr %s546, 64
        %s548 = scalar_lea.vmem [#allocation9], %s547
        %p549 = scmp.lt.s32.totalorder %s32, 1
        %s550 = scalar_select %p549, %s32, 1
        %s551 = smul.addr %s550, 8
        %s552 = smul.addr %s551, 8
        %s553 = scalar_lea.vmem %s0, %s552
        %v554 = vld [vmem:[%s553] sm:$0xff]
        %v555 = vld [vmem:[%s553 + $0x8] sm:$0xff]
        %v556 = vld [vmem:[%s553 + $0x10] sm:$0xff]
        %v557 = vld [vmem:[%s553 + $0x18] sm:$0xff]
        %v558 = vld [vmem:[%s553 + $0x20] sm:$0xff]
        %v559 = vld [vmem:[%s553 + $0x28] sm:$0xff]
        %v560 = vld [vmem:[%s553 + $0x30] sm:$0xff]
        %v561 = vld [vmem:[%s553 + $0x38] sm:$0xff]
        %v562 = vld [vmem:[%s1] sm:$0x1]
        %v563 = vld [vmem:[%s2] sm:$0x1]
        %v564 = vld [vmem:[%s9] sm:$0xff]
        %v565 = vld [vmem:[%s9 + $0x8] sm:$0xff]
        %v566 = vld [vmem:[%s9 + $0x10] sm:$0xff]
        %v567 = vld [vmem:[%s9 + $0x18] sm:$0xff]
        %v568 = vld [vmem:[%s10] sm:$0xff]
        %v569 = vld [vmem:[%s10 + $0x8] sm:$0xff]
        %v570 = vld [vmem:[%s10 + $0x10] sm:$0xff]
        %v571 = vld [vmem:[%s10 + $0x18] sm:$0xff]
        %vm572 = vcmask 261120
        %v573 = vsel %vm572, %v554, 0.0
        %v574 = vsel %vm572, %v555, 0.0
        %v575 = vadd.f32 %v573, %v574
        %v576 = vsel %vm572, %v556, 0.0
        %v577 = vadd.f32 %v575, %v576
        %v578 = vsel %vm572, %v557, 0.0
        %v579 = vadd.f32 %v577, %v578
        %v580 = vsel %vm572, %v558, 0.0
        %v581 = vadd.f32 %v579, %v580
        %v582 = vsel %vm572, %v559, 0.0
        %v583 = vadd.f32 %v581, %v582
        %v584 = vsel %vm572, %v560, 0.0
        %v585 = vadd.f32 %v583, %v584
        %v586 = vsel %vm572, %v561, 0.0
        %v587 = vadd.f32 %v585, %v586
        %v588 = vrot.slane %v587, 4
        %v589 = vadd.f32 %v587, %v588
        %v590 = vrot.slane %v589, 2
        %v591 = vadd.f32 %v589, %v590
        %v592 = vrot.slane %v591, 1
        %v593 = vadd.f32 %v591, %v592
        %v594 = vmul.f32 %v554, %v554
        %v595 = vmul.f32 %v555, %v555
        %v596 = vmul.f32 %v556, %v556
        %v597 = vmul.f32 %v557, %v557
        %v598 = vmul.f32 %v558, %v558
        %v599 = vmul.f32 %v559, %v559
        %v600 = vmul.f32 %v560, %v560
        %v601 = vmul.f32 %v561, %v561
        %v602 = vsel %vm572, %v594, 0.0
        %v603 = vsel %vm572, %v595, 0.0
        %v604 = vadd.f32 %v602, %v603
        %v605 = vsel %vm572, %v596, 0.0
        %v606 = vadd.f32 %v604, %v605
        %v607 = vsel %vm572, %v597, 0.0
        %v608 = vadd.f32 %v606, %v607
        %v609 = vsel %vm572, %v598, 0.0
        %v610 = vadd.f32 %v608, %v609
        %v611 = vsel %vm572, %v599, 0.0
        %v612 = vadd.f32 %v610, %v611
        %v613 = vsel %vm572, %v600, 0.0
        %v614 = vadd.f32 %v612, %v613
        %v615 = vsel %vm572, %v601, 0.0
        %v616 = vadd.f32 %v614, %v615
        %v617 = vrot.slane %v616, 4
        %v618 = vadd.f32 %v616, %v617
        %v619 = vrot.slane %v618, 2
        %v620 = vadd.f32 %v618, %v619
        %v621 = vrot.slane %v620, 1
        %v622 = vadd.f32 %v620, %v621
        %v624 = vsel %vm572, %v593, 0
        %626 = vmatpush.msra.mxu0 0.0
        %627 = vmatpush.msra.mxu0 0.0
        %628 = vmatpush.msra.mxu0 0.0
        %629 = vmatpush.msra.mxu0 0.0
        %630 = vmatpush.msra.mxu0 0.0
        %631 = vmatpush.msra.mxu0 0.0
        %632 = vmatpush.msra.mxu0 0.0
        %633 = vmatpush.msra.mxu0 0.0
        %634 = vmatpush.msra.mxu0 0.0
        %635 = vmatpush.msra.mxu0 0.0
        %636 = vmatpush.msra.mxu0 0.0
        %637 = vmatpush.msra.mxu0 0.0
        %638 = vmatpush.msra.mxu0 %v567
        %639 = vmatpush.msra.mxu0 %v566
        %640 = vmatpush.msra.mxu0 %v565
        %641 = vmatpush.msra.mxu0 %v564
        %642 = vmatmul.f32.gmra.mxu0 %v624
        %v643 = vpop.f32.mrf.mxu0
        %v644 = vadd.f32 0.0, %v643
        %645 = vdwg.mxu0
        %v647 = vsel %vm572, %v644, 0
        %649 = vmatpush.msra.mxu0 0.0
        %650 = vmatpush.msra.mxu0 0.0
        %651 = vmatpush.msra.mxu0 0.0
        %652 = vmatpush.msra.mxu0 0.0
        %653 = vmatpush.msra.mxu0 0.0
        %654 = vmatpush.msra.mxu0 0.0
        %655 = vmatpush.msra.mxu0 0.0
        %656 = vmatpush.msra.mxu0 0.0
        %657 = vmatpush.msra.mxu0 0.0
        %658 = vmatpush.msra.mxu0 0.0
        %659 = vmatpush.msra.mxu0 0.0
        %660 = vmatpush.msra.mxu0 0.0
        %661 = vmatpush.msra.mxu0 %v571
        %662 = vmatpush.msra.mxu0 %v570
        %663 = vmatpush.msra.mxu0 %v569
        %664 = vmatpush.msra.mxu0 %v568
        %665 = vmatmul.f32.gmra.mxu0 %v647
        %v666 = vpop.f32.mrf.mxu0
        %v667 = vadd.f32 0.0, %v666
        %668 = vdwg.mxu0
        %v669 = vmul.f32 %v667, 0.015625
        %v671 = vsel %vm572, %v622, 0
        %673 = vmatpush.msra.mxu0 0.0
        %674 = vmatpush.msra.mxu0 0.0
        %675 = vmatpush.msra.mxu0 0.0
        %676 = vmatpush.msra.mxu0 0.0
        %677 = vmatpush.msra.mxu0 0.0
        %678 = vmatpush.msra.mxu0 0.0
        %679 = vmatpush.msra.mxu0 0.0
        %680 = vmatpush.msra.mxu0 0.0
        %681 = vmatpush.msra.mxu0 0.0
        %682 = vmatpush.msra.mxu0 0.0
        %683 = vmatpush.msra.mxu0 0.0
        %684 = vmatpush.msra.mxu0 0.0
        %685 = vmatpush.msra.mxu0 %v567
        %686 = vmatpush.msra.mxu0 %v566
        %687 = vmatpush.msra.mxu0 %v565
        %688 = vmatpush.msra.mxu0 %v564
        %689 = vmatmul.f32.gmra.mxu0 %v671
        %v690 = vpop.f32.mrf.mxu0
        %v691 = vadd.f32 0.0, %v690
        %692 = vdwg.mxu0
        %v694 = vsel %vm572, %v691, 0
        %696 = vmatpush.msra.mxu0 0.0
        %697 = vmatpush.msra.mxu0 0.0
        %698 = vmatpush.msra.mxu0 0.0
        %699 = vmatpush.msra.mxu0 0.0
        %700 = vmatpush.msra.mxu0 0.0
        %701 = vmatpush.msra.mxu0 0.0
        %702 = vmatpush.msra.mxu0 0.0
        %703 = vmatpush.msra.mxu0 0.0
        %704 = vmatpush.msra.mxu0 0.0
        %705 = vmatpush.msra.mxu0 0.0
        %706 = vmatpush.msra.mxu0 0.0
        %707 = vmatpush.msra.mxu0 0.0
        %708 = vmatpush.msra.mxu0 %v571
        %709 = vmatpush.msra.mxu0 %v570
        %710 = vmatpush.msra.mxu0 %v569
        %711 = vmatpush.msra.mxu0 %v568
        %712 = vmatmul.f32.gmra.mxu0 %v694
        %v713 = vpop.f32.mrf.mxu0
        %v714 = vadd.f32 0.0, %v713
        %715 = vdwg.mxu0
        %v716 = vmul.f32 %v714, 0.015625
        %v717 = vmul.f32 %v669, %v669
        %v718 = vsub.f32 %v716, %v717
        %v719 = vadd.f32 %v718, 1e-05
        %v720 = vrsqrt.pop %v719
        %v721 = vmul.f32 %v720, %v719
        %v722 = vmul.f32 %v721, %v720
        %v723 = vmul.f32 0.5, %v722
        %v724 = vsub.f32 1.5, %v723
        %v725 = vmul.f32 %v720, %v724
        %vm726 = vweird.f32 %v719
        %vm727 = vweird.f32 %v720
        %vm728 = vmor %vm726, %vm727
        %v729 = vsel %vm728, %v720, %v725
        %v730 = vmul.f32 %v729, %v562
        %v731 = vperm.slane %v669, 0
        %v732 = vsub.f32 %v554, %v731
        %v733 = vsub.f32 %v555, %v731
        %v734 = vsub.f32 %v556, %v731
        %v735 = vsub.f32 %v557, %v731
        %v736 = vsub.f32 %v558, %v731
        %v737 = vsub.f32 %v559, %v731
        %v738 = vsub.f32 %v560, %v731
        %v739 = vsub.f32 %v561, %v731
        %v740 = vperm.slane %v730, 0
        %v741 = vmul.f32 %v732, %v740
        %v742 = vmul.f32 %v733, %v740
        %v743 = vmul.f32 %v734, %v740
        %v744 = vmul.f32 %v735, %v740
        %v745 = vmul.f32 %v736, %v740
        %v746 = vmul.f32 %v737, %v740
        %v747 = vmul.f32 %v738, %v740
        %v748 = vmul.f32 %v739, %v740
        %v750 = vperm.slane %v563, 0
        %v752 = vadd.f32 %v741, %v750
        %v753 = vadd.f32 %v742, %v750
        %v754 = vadd.f32 %v743, %v750
        %v755 = vadd.f32 %v744, %v750
        %v756 = vadd.f32 %v745, %v750
        %v757 = vadd.f32 %v746, %v750
        %v758 = vadd.f32 %v747, %v750
        %v759 = vadd.f32 %v748, %v750
        %v760 = vxor.u32 %v752, 2147483648
        %v761 = vxor.u32 %v753, 2147483648
        %v762 = vxor.u32 %v754, 2147483648
        %v763 = vxor.u32 %v755, 2147483648
        %v764 = vxor.u32 %v756, 2147483648
        %v765 = vxor.u32 %v757, 2147483648
        %v766 = vxor.u32 %v758, 2147483648
        %v767 = vxor.u32 %v759, 2147483648
        %v768 = vmul.f32 %v760, 1.442695
        %v769 = vpow.pop %v768
        %v770 = vmul.f32 %v761, 1.442695
        %v771 = vpow.pop %v770
        %v772 = vmul.f32 %v762, 1.442695
        %v773 = vpow.pop %v772
        %v774 = vmul.f32 %v763, 1.442695
        %v775 = vpow.pop %v774
        %v776 = vmul.f32 %v764, 1.442695
        %v777 = vpow.pop %v776
        %v778 = vmul.f32 %v765, 1.442695
        %v779 = vpow.pop %v778
        %v780 = vmul.f32 %v766, 1.442695
        %v781 = vpow.pop %v780
        %v782 = vmul.f32 %v767, 1.442695
        %v783 = vpow.pop %v782
        %v784 = vadd.f32 %v769, 1.0
        %v785 = vadd.f32 %v771, 1.0
        %v786 = vadd.f32 %v773, 1.0
        %v787 = vadd.f32 %v775, 1.0
        %v788 = vadd.f32 %v777, 1.0
        %v789 = vadd.f32 %v779, 1.0
        %v790 = vadd.f32 %v781, 1.0
        %v791 = vadd.f32 %v783, 1.0
        %v792 = vrcp.pop %v784
        %v793 = vmul.f32 %v784, %v792
        %v794 = vsub.f32 1.0, %v793
        %v795 = vmul.f32 %v792, %v794
        %v796 = vadd.f32 %v792, %v795
        %vm797 = vweird.f32 %v784
        %vm798 = vweird.f32 %v792
        %vm799 = vmor %vm797, %vm798
        %v800 = vsel %vm799, %v792, %v796
        %v801 = vand.u32 2147483647, %v784
        %vm802 = vcmp.eq.f32.partialorder %v801, 8.507059e+37
        %v803 = vand.u32 %v784, 2147483648
        %v804 = vor.u32 1.1754944e-38, %v803
        %v805 = vsel %vm802, %v804, %v800
        %v806 = vmul.f32 1.0, %v805
        %v807 = vrcp.pop %v785
        %v808 = vmul.f32 %v785, %v807
        %v809 = vsub.f32 1.0, %v808
        %v810 = vmul.f32 %v807, %v809
        %v811 = vadd.f32 %v807, %v810
        %vm812 = vweird.f32 %v785
        %vm813 = vweird.f32 %v807
        %vm814 = vmor %vm812, %vm813
        %v815 = vsel %vm814, %v807, %v811
        %v816 = vand.u32 2147483647, %v785
        %vm817 = vcmp.eq.f32.partialorder %v816, 8.507059e+37
        %v818 = vand.u32 %v785, 2147483648
        %v819 = vor.u32 1.1754944e-38, %v818
        %v820 = vsel %vm817, %v819, %v815
        %v821 = vmul.f32 1.0, %v820
        %v822 = vrcp.pop %v786
        %v823 = vmul.f32 %v786, %v822
        %v824 = vsub.f32 1.0, %v823
        %v825 = vmul.f32 %v822, %v824
        %v826 = vadd.f32 %v822, %v825
        %vm827 = vweird.f32 %v786
        %vm828 = vweird.f32 %v822
        %vm829 = vmor %vm827, %vm828
        %v830 = vsel %vm829, %v822, %v826
        %v831 = vand.u32 2147483647, %v786
        %vm832 = vcmp.eq.f32.partialorder %v831, 8.507059e+37
        %v833 = vand.u32 %v786, 2147483648
        %v834 = vor.u32 1.1754944e-38, %v833
        %v835 = vsel %vm832, %v834, %v830
        %v836 = vmul.f32 1.0, %v835
        %v837 = vrcp.pop %v787
        %v838 = vmul.f32 %v787, %v837
        %v839 = vsub.f32 1.0, %v838
        %v840 = vmul.f32 %v837, %v839
        %v841 = vadd.f32 %v837, %v840
        %vm842 = vweird.f32 %v787
        %vm843 = vweird.f32 %v837
        %vm844 = vmor %vm842, %vm843
        %v845 = vsel %vm844, %v837, %v841
        %v846 = vand.u32 2147483647, %v787
        %vm847 = vcmp.eq.f32.partialorder %v846, 8.507059e+37
        %v848 = vand.u32 %v787, 2147483648
        %v849 = vor.u32 1.1754944e-38, %v848
        %v850 = vsel %vm847, %v849, %v845
        %v851 = vmul.f32 1.0, %v850
        %v852 = vrcp.pop %v788
        %v853 = vmul.f32 %v788, %v852
        %v854 = vsub.f32 1.0, %v853
        %v855 = vmul.f32 %v852, %v854
        %v856 = vadd.f32 %v852, %v855
        %vm857 = vweird.f32 %v788
        %vm858 = vweird.f32 %v852
        %vm859 = vmor %vm857, %vm858
        %v860 = vsel %vm859, %v852, %v856
        %v861 = vand.u32 2147483647, %v788
        %vm862 = vcmp.eq.f32.partialorder %v861, 8.507059e+37
        %v863 = vand.u32 %v788, 2147483648
        %v864 = vor.u32 1.1754944e-38, %v863
        %v865 = vsel %vm862, %v864, %v860
        %v866 = vmul.f32 1.0, %v865
        %v867 = vrcp.pop %v789
        %v868 = vmul.f32 %v789, %v867
        %v869 = vsub.f32 1.0, %v868
        %v870 = vmul.f32 %v867, %v869
        %v871 = vadd.f32 %v867, %v870
        %vm872 = vweird.f32 %v789
        %vm873 = vweird.f32 %v867
        %vm874 = vmor %vm872, %vm873
        %v875 = vsel %vm874, %v867, %v871
        %v876 = vand.u32 2147483647, %v789
        %vm877 = vcmp.eq.f32.partialorder %v876, 8.507059e+37
        %v878 = vand.u32 %v789, 2147483648
        %v879 = vor.u32 1.1754944e-38, %v878
        %v880 = vsel %vm877, %v879, %v875
        %v881 = vmul.f32 1.0, %v880
        %v882 = vrcp.pop %v790
        %v883 = vmul.f32 %v790, %v882
        %v884 = vsub.f32 1.0, %v883
        %v885 = vmul.f32 %v882, %v884
        %v886 = vadd.f32 %v882, %v885
        %vm887 = vweird.f32 %v790
        %vm888 = vweird.f32 %v882
        %vm889 = vmor %vm887, %vm888
        %v890 = vsel %vm889, %v882, %v886
        %v891 = vand.u32 2147483647, %v790
        %vm892 = vcmp.eq.f32.partialorder %v891, 8.507059e+37
        %v893 = vand.u32 %v790, 2147483648
        %v894 = vor.u32 1.1754944e-38, %v893
        %v895 = vsel %vm892, %v894, %v890
        %v896 = vmul.f32 1.0, %v895
        %v897 = vrcp.pop %v791
        %v898 = vmul.f32 %v791, %v897
        %v899 = vsub.f32 1.0, %v898
        %v900 = vmul.f32 %v897, %v899
        %v901 = vadd.f32 %v897, %v900
        %vm902 = vweird.f32 %v791
        %vm903 = vweird.f32 %v897
        %vm904 = vmor %vm902, %vm903
        %v905 = vsel %vm904, %v897, %v901
        %v906 = vand.u32 2147483647, %v791
        %vm907 = vcmp.eq.f32.partialorder %v906, 8.507059e+37
        %v908 = vand.u32 %v791, 2147483648
        %v909 = vor.u32 1.1754944e-38, %v908
        %v910 = vsel %vm907, %v909, %v905
        %v911 = vmul.f32 1.0, %v910
        %v912 = vmul.f32 %v752, %v806
        %v913 = vmul.f32 %v753, %v821
        %v914 = vmul.f32 %v754, %v836
        %v915 = vmul.f32 %v755, %v851
        %v916 = vmul.f32 %v756, %v866
        %v917 = vmul.f32 %v757, %v881
        %v918 = vmul.f32 %v758, %v896
        %v919 = vmul.f32 %v759, %v911
        %920 = vst.msk [vmem:[#allocation2] sm:$0xff] %vm572, 0.0
        %921 = vst.msk [vmem:[#allocation2 + $0x8] sm:$0xff] %vm572, 0.0
        %922 = vst.msk [vmem:[#allocation2 + $0x10] sm:$0xff] %vm572, 0.0
        %923 = vst.msk [vmem:[#allocation2 + $0x18] sm:$0xff] %vm572, 0.0
        %924 = vst.msk [vmem:[#allocation2 + $0x20] sm:$0xff] %vm572, 0.0
        %925 = vst.msk [vmem:[#allocation2 + $0x28] sm:$0xff] %vm572, 0.0
        %926 = vst.msk [vmem:[#allocation2 + $0x30] sm:$0xff] %vm572, 0.0
        %927 = vst.msk [vmem:[#allocation2 + $0x38] sm:$0xff] %vm572, 0.0
        %928 = vst.msk [vmem:[#allocation2 + $0x40] sm:$0xff] %vm572, 0.0
        %929 = vst.msk [vmem:[#allocation2 + $0x48] sm:$0xff] %vm572, 0.0
        %930 = vst.msk [vmem:[#allocation2 + $0x50] sm:$0xff] %vm572, 0.0
        %931 = vst.msk [vmem:[#allocation2 + $0x58] sm:$0xff] %vm572, 0.0
        %932 = vst.msk [vmem:[#allocation2 + $0x60] sm:$0xff] %vm572, 0.0
        %933 = vst.msk [vmem:[#allocation2 + $0x68] sm:$0xff] %vm572, 0.0
        %934 = vst.msk [vmem:[#allocation2 + $0x70] sm:$0xff] %vm572, 0.0
        %935 = vst.msk [vmem:[#allocation2 + $0x78] sm:$0xff] %vm572, 0.0
        %936 = vst.msk [vmem:[#allocation2 + $0x80] sm:$0xff] %vm572, 0.0
        %vm937 = vcmask 257024
        %938 = vst.msk [vmem:[#allocation2 + $0x88] sm:$0xf] %vm937, 0.0
        %939 = vst.msk [vmem:[#allocation2 + $0x1f] sm:$0xff] %vm572, %v912
        %940 = vst.msk [vmem:[#allocation2 + $0x29] sm:$0xff] %vm572, %v913
        %941 = vst.msk [vmem:[#allocation2 + $0x33] sm:$0xff] %vm572, %v914
        %942 = vst.msk [vmem:[#allocation2 + $0x3d] sm:$0xff] %vm572, %v915
        %943 = vst.msk [vmem:[#allocation2 + $0x47] sm:$0xff] %vm572, %v916
        %944 = vst.msk [vmem:[#allocation2 + $0x51] sm:$0xff] %vm572, %v917
        %945 = vst.msk [vmem:[#allocation2 + $0x5b] sm:$0xff] %vm572, %v918
        %946 = vst.msk [vmem:[#allocation2 + $0x65] sm:$0xff] %vm572, %v919
        %v947 = vld [vmem:[%s4] sm:$0x1]
        %v948 = vld [vmem:[#allocation2 + $0x9] sm:$0xff]
        %v949 = vld [vmem:[#allocation2 + $0x11] sm:$0xff]
        %v950 = vld [vmem:[#allocation2 + $0x19] sm:$0xff]
        %v951 = vld [vmem:[#allocation2 + $0x21] sm:$0xff]
        %v952 = vld [vmem:[#allocation2 + $0x29] sm:$0xff]
        %v953 = vld [vmem:[#allocation2 + $0x31] sm:$0xff]
        %v954 = vld [vmem:[#allocation2 + $0x39] sm:$0xff]
        %v955 = vld [vmem:[#allocation2 + $0x41] sm:$0xff]
        %v956 = vld [vmem:[#allocation2 + $0x49] sm:$0xff]
        %v957 = vld [vmem:[#allocation2 + $0x51] sm:$0xff]
        %v958 = vld [vmem:[#allocation2 + $0x59] sm:$0xff]
        %v959 = vld [vmem:[#allocation2 + $0x61] sm:$0xff]
        %v960 = vld [vmem:[#allocation2 + $0x69] sm:$0xf]
        %v961 = vld [vmem:[#allocation4] sm:$0xff]
        %v962 = vld [vmem:[#allocation4 + $0x8] sm:$0xff]
        %v963 = vld [vmem:[#allocation4 + $0x10] sm:$0xff]
        %v964 = vld [vmem:[#allocation4 + $0x18] sm:$0xff]
        %v965 = vld [vmem:[#allocation2 + $0xa] sm:$0xff]
        %v966 = vld [vmem:[#allocation2 + $0x12] sm:$0xff]
        %v967 = vld [vmem:[#allocation2 + $0x1a] sm:$0xff]
        %v968 = vld [vmem:[#allocation2 + $0x22] sm:$0xff]
        %v969 = vld [vmem:[#allocation2 + $0x2a] sm:$0xff]
        %v970 = vld [vmem:[#allocation2 + $0x32] sm:$0xff]
        %v971 = vld [vmem:[#allocation2 + $0x3a] sm:$0xff]
        %v972 = vld [vmem:[#allocation2 + $0x42] sm:$0xff]
        %v973 = vld [vmem:[#allocation2 + $0x4a] sm:$0xff]
        %v974 = vld [vmem:[#allocation2 + $0x52] sm:$0xff]
        %v975 = vld [vmem:[#allocation2 + $0x5a] sm:$0xff]
        %v976 = vld [vmem:[#allocation2 + $0x62] sm:$0xff]
        %v977 = vld [vmem:[#allocation2 + $0x6a] sm:$0xf]
        %s978 = scalar_lea.vmem [#allocation4], 32
        %v979 = vld [vmem:[%s978] sm:$0xff]
        %v980 = vld [vmem:[%s978 + $0x8] sm:$0xff]
        %v981 = vld [vmem:[%s978 + $0x10] sm:$0xff]
        %v982 = vld [vmem:[%s978 + $0x18] sm:$0xff]
        %v984 = vsel %vm572, %v965, 0
        %v987 = vsel %vm572, %v966, 0
        %v990 = vsel %vm572, %v967, 0
        %v993 = vsel %vm572, %v968, 0
        %v996 = vsel %vm572, %v969, 0
        %v999 = vsel %vm572, %v970, 0
        %v1002 = vsel %vm572, %v971, 0
        %v1005 = vsel %vm572, %v972, 0
        %v1008 = vsel %vm572, %v973, 0
        %v1011 = vsel %vm572, %v974, 0
        %v1014 = vsel %vm572, %v975, 0
        %v1017 = vsel %vm572, %v976, 0
        %v1020 = vsel %vm572, %v977, 0
        %1022 = vmatpush.msra.mxu0 0.0
        %1023 = vmatpush.msra.mxu0 0.0
        %1024 = vmatpush.msra.mxu0 0.0
        %1025 = vmatpush.msra.mxu0 0.0
        %1026 = vmatpush.msra.mxu0 0.0
        %1027 = vmatpush.msra.mxu0 0.0
        %1028 = vmatpush.msra.mxu0 0.0
        %1029 = vmatpush.msra.mxu0 0.0
        %1030 = vmatpush.msra.mxu0 0.0
        %1031 = vmatpush.msra.mxu0 0.0
        %1032 = vmatpush.msra.mxu0 0.0
        %1033 = vmatpush.msra.mxu0 0.0
        %1034 = vmatpush.msra.mxu0 %v982
        %1035 = vmatpush.msra.mxu0 %v981
        %1036 = vmatpush.msra.mxu0 %v980
        %1037 = vmatpush.msra.mxu0 %v979
        %1038 = vmatmul.f32.gmra.mxu0 %v984
        %v1039 = vpop.f32.mrf.mxu0
        %v1040 = vadd.f32 0.0, %v1039
        %1041 = vmatmul.f32.gmra.mxu0 %v987
        %v1042 = vpop.f32.mrf.mxu0
        %v1043 = vadd.f32 0.0, %v1042
        %1044 = vmatmul.f32.gmra.mxu0 %v990
        %v1045 = vpop.f32.mrf.mxu0
        %v1046 = vadd.f32 0.0, %v1045
        %1047 = vmatmul.f32.gmra.mxu0 %v993
        %v1048 = vpop.f32.mrf.mxu0
        %v1049 = vadd.f32 0.0, %v1048
        %1050 = vmatmul.f32.gmra.mxu0 %v996
        %v1051 = vpop.f32.mrf.mxu0
        %v1052 = vadd.f32 0.0, %v1051
        %1053 = vmatmul.f32.gmra.mxu0 %v999
        %v1054 = vpop.f32.mrf.mxu0
        %v1055 = vadd.f32 0.0, %v1054
        %1056 = vmatmul.f32.gmra.mxu0 %v1002
        %v1057 = vpop.f32.mrf.mxu0
        %v1058 = vadd.f32 0.0, %v1057
        %1059 = vmatmul.f32.gmra.mxu0 %v1005
        %v1060 = vpop.f32.mrf.mxu0
        %v1061 = vadd.f32 0.0, %v1060
        %1062 = vmatmul.f32.gmra.mxu0 %v1008
        %v1063 = vpop.f32.mrf.mxu0
        %v1064 = vadd.f32 0.0, %v1063
        %1065 = vmatmul.f32.gmra.mxu0 %v1011
        %v1066 = vpop.f32.mrf.mxu0
        %v1067 = vadd.f32 0.0, %v1066
        %1068 = vmatmul.f32.gmra.mxu0 %v1014
        %v1069 = vpop.f32.mrf.mxu0
        %v1070 = vadd.f32 0.0, %v1069
        %1071 = vmatmul.f32.gmra.mxu0 %v1017
        %v1072 = vpop.f32.mrf.mxu0
        %v1073 = vadd.f32 0.0, %v1072
        %1074 = vmatmul.f32.gmra.mxu0 %v1020
        %v1075 = vpop.f32.mrf.mxu0
        %v1076 = vadd.f32 0.0, %v1075
        %1077 = vdwg.mxu0
        %v1079 = vsel %vm572, %v948, 0
        %v1082 = vsel %vm572, %v949, 0
        %v1085 = vsel %vm572, %v950, 0
        %v1088 = vsel %vm572, %v951, 0
        %v1091 = vsel %vm572, %v952, 0
        %v1094 = vsel %vm572, %v953, 0
        %v1097 = vsel %vm572, %v954, 0
        %v1100 = vsel %vm572, %v955, 0
        %v1103 = vsel %vm572, %v956, 0
        %v1106 = vsel %vm572, %v957, 0
        %v1109 = vsel %vm572, %v958, 0
        %v1112 = vsel %vm572, %v959, 0
        %v1115 = vsel %vm572, %v960, 0
        %1117 = vmatpush.msra.mxu0 0.0
        %1118 = vmatpush.msra.mxu0 0.0
        %1119 = vmatpush.msra.mxu0 0.0
        %1120 = vmatpush.msra.mxu0 0.0
        %1121 = vmatpush.msra.mxu0 0.0
        %1122 = vmatpush.msra.mxu0 0.0
        %1123 = vmatpush.msra.mxu0 0.0
        %1124 = vmatpush.msra.mxu0 0.0
        %1125 = vmatpush.msra.mxu0 0.0
        %1126 = vmatpush.msra.mxu0 0.0
        %1127 = vmatpush.msra.mxu0 0.0
        %1128 = vmatpush.msra.mxu0 0.0
        %1129 = vmatpush.msra.mxu0 %v964
        %1130 = vmatpush.msra.mxu0 %v963
        %1131 = vmatpush.msra.mxu0 %v962
        %1132 = vmatpush.msra.mxu0 %v961
        %1133 = vmatmul.f32.gmra.mxu0 %v1079
        %v1134 = vpop.f32.mrf.mxu0
        %v1135 = vadd.f32 %v1040, %v1134
        %1136 = vmatmul.f32.gmra.mxu0 %v1082
        %v1137 = vpop.f32.mrf.mxu0
        %v1138 = vadd.f32 %v1043, %v1137
        %1139 = vmatmul.f32.gmra.mxu0 %v1085
        %v1140 = vpop.f32.mrf.mxu0
        %v1141 = vadd.f32 %v1046, %v1140
        %1142 = vmatmul.f32.gmra.mxu0 %v1088
        %v1143 = vpop.f32.mrf.mxu0
        %v1144 = vadd.f32 %v1049, %v1143
        %1145 = vmatmul.f32.gmra.mxu0 %v1091
        %v1146 = vpop.f32.mrf.mxu0
        %v1147 = vadd.f32 %v1052, %v1146
        %1148 = vmatmul.f32.gmra.mxu0 %v1094
        %v1149 = vpop.f32.mrf.mxu0
        %v1150 = vadd.f32 %v1055, %v1149
        %1151 = vmatmul.f32.gmra.mxu0 %v1097
        %v1152 = vpop.f32.mrf.mxu0
        %v1153 = vadd.f32 %v1058, %v1152
        %1154 = vmatmul.f32.gmra.mxu0 %v1100
        %v1155 = vpop.f32.mrf.mxu0
        %v1156 = vadd.f32 %v1061, %v1155
        %1157 = vmatmul.f32.gmra.mxu0 %v1103
        %v1158 = vpop.f32.mrf.mxu0
        %v1159 = vadd.f32 %v1064, %v1158
        %1160 = vmatmul.f32.gmra.mxu0 %v1106
        %v1161 = vpop.f32.mrf.mxu0
        %v1162 = vadd.f32 %v1067, %v1161
        %1163 = vmatmul.f32.gmra.mxu0 %v1109
        %v1164 = vpop.f32.mrf.mxu0
        %v1165 = vadd.f32 %v1070, %v1164
        %1166 = vmatmul.f32.gmra.mxu0 %v1112
        %v1167 = vpop.f32.mrf.mxu0
        %v1168 = vadd.f32 %v1073, %v1167
        %1169 = vmatmul.f32.gmra.mxu0 %v1115
        %v1170 = vpop.f32.mrf.mxu0
        %v1171 = vadd.f32 %v1076, %v1170
        %1172 = vdwg.mxu0
        %v1173 = vld [vmem:[#allocation2 + $0xb] sm:$0xff]
        %v1174 = vld [vmem:[#allocation2 + $0x13] sm:$0xff]
        %v1175 = vld [vmem:[#allocation2 + $0x1b] sm:$0xff]
        %v1176 = vld [vmem:[#allocation2 + $0x23] sm:$0xff]
        %v1177 = vld [vmem:[#allocation2 + $0x2b] sm:$0xff]
        %v1178 = vld [vmem:[#allocation2 + $0x33] sm:$0xff]
        %v1179 = vld [vmem:[#allocation2 + $0x3b] sm:$0xff]
        %v1180 = vld [vmem:[#allocation2 + $0x43] sm:$0xff]
        %v1181 = vld [vmem:[#allocation2 + $0x4b] sm:$0xff]
        %v1182 = vld [vmem:[#allocation2 + $0x53] sm:$0xff]
        %v1183 = vld [vmem:[#allocation2 + $0x5b] sm:$0xff]
        %v1184 = vld [vmem:[#allocation2 + $0x63] sm:$0xff]
        %v1185 = vld [vmem:[#allocation2 + $0x6b] sm:$0xf]
        %s1186 = scalar_lea.vmem [#allocation4], 64
        %v1187 = vld [vmem:[%s1186] sm:$0xff]
        %v1188 = vld [vmem:[%s1186 + $0x8] sm:$0xff]
        %v1189 = vld [vmem:[%s1186 + $0x10] sm:$0xff]
        %v1190 = vld [vmem:[%s1186 + $0x18] sm:$0xff]
        %v1192 = vsel %vm572, %v1173, 0
        %v1195 = vsel %vm572, %v1174, 0
        %v1198 = vsel %vm572, %v1175, 0
        %v1201 = vsel %vm572, %v1176, 0
        %v1204 = vsel %vm572, %v1177, 0
        %v1207 = vsel %vm572, %v1178, 0
        %v1210 = vsel %vm572, %v1179, 0
        %v1213 = vsel %vm572, %v1180, 0
        %v1216 = vsel %vm572, %v1181, 0
        %v1219 = vsel %vm572, %v1182, 0
        %v1222 = vsel %vm572, %v1183, 0
        %v1225 = vsel %vm572, %v1184, 0
        %v1228 = vsel %vm572, %v1185, 0
        %1230 = vmatpush.msra.mxu0 0.0
        %1231 = vmatpush.msra.mxu0 0.0
        %1232 = vmatpush.msra.mxu0 0.0
        %1233 = vmatpush.msra.mxu0 0.0
        %1234 = vmatpush.msra.mxu0 0.0
        %1235 = vmatpush.msra.mxu0 0.0
        %1236 = vmatpush.msra.mxu0 0.0
        %1237 = vmatpush.msra.mxu0 0.0
        %1238 = vmatpush.msra.mxu0 0.0
        %1239 = vmatpush.msra.mxu0 0.0
        %1240 = vmatpush.msra.mxu0 0.0
        %1241 = vmatpush.msra.mxu0 0.0
        %1242 = vmatpush.msra.mxu0 %v1190
        %1243 = vmatpush.msra.mxu0 %v1189
        %1244 = vmatpush.msra.mxu0 %v1188
        %1245 = vmatpush.msra.mxu0 %v1187
        %1246 = vmatmul.f32.gmra.mxu0 %v1192
        %v1247 = vpop.f32.mrf.mxu0
        %v1248 = vadd.f32 0.0, %v1247
        %1249 = vmatmul.f32.gmra.mxu0 %v1195
        %v1250 = vpop.f32.mrf.mxu0
        %v1251 = vadd.f32 0.0, %v1250
        %1252 = vmatmul.f32.gmra.mxu0 %v1198
        %v1253 = vpop.f32.mrf.mxu0
        %v1254 = vadd.f32 0.0, %v1253
        %1255 = vmatmul.f32.gmra.mxu0 %v1201
        %v1256 = vpop.f32.mrf.mxu0
        %v1257 = vadd.f32 0.0, %v1256
        %1258 = vmatmul.f32.gmra.mxu0 %v1204
        %v1259 = vpop.f32.mrf.mxu0
        %v1260 = vadd.f32 0.0, %v1259
        %1261 = vmatmul.f32.gmra.mxu0 %v1207
        %v1262 = vpop.f32.mrf.mxu0
        %v1263 = vadd.f32 0.0, %v1262
        %1264 = vmatmul.f32.gmra.mxu0 %v1210
        %v1265 = vpop.f32.mrf.mxu0
        %v1266 = vadd.f32 0.0, %v1265
        %1267 = vmatmul.f32.gmra.mxu0 %v1213
        %v1268 = vpop.f32.mrf.mxu0
        %v1269 = vadd.f32 0.0, %v1268
        %1270 = vmatmul.f32.gmra.mxu0 %v1216
        %v1271 = vpop.f32.mrf.mxu0
        %v1272 = vadd.f32 0.0, %v1271
        %1273 = vmatmul.f32.gmra.mxu0 %v1219
        %v1274 = vpop.f32.mrf.mxu0
        %v1275 = vadd.f32 0.0, %v1274
        %1276 = vmatmul.f32.gmra.mxu0 %v1222
        %v1277 = vpop.f32.mrf.mxu0
        %v1278 = vadd.f32 0.0, %v1277
        %1279 = vmatmul.f32.gmra.mxu0 %v1225
        %v1280 = vpop.f32.mrf.mxu0
        %v1281 = vadd.f32 0.0, %v1280
        %1282 = vmatmul.f32.gmra.mxu0 %v1228
        %v1283 = vpop.f32.mrf.mxu0
        %v1284 = vadd.f32 0.0, %v1283
        %1285 = vdwg.mxu0
        %v1286 = vadd.f32 %v1135, %v1248
        %v1287 = vadd.f32 %v1138, %v1251
        %v1288 = vadd.f32 %v1141, %v1254
        %v1289 = vadd.f32 %v1144, %v1257
        %v1290 = vadd.f32 %v1147, %v1260
        %v1291 = vadd.f32 %v1150, %v1263
        %v1292 = vadd.f32 %v1153, %v1266
        %v1293 = vadd.f32 %v1156, %v1269
        %v1294 = vadd.f32 %v1159, %v1272
        %v1295 = vadd.f32 %v1162, %v1275
        %v1296 = vadd.f32 %v1165, %v1278
        %v1297 = vadd.f32 %v1168, %v1281
        %v1298 = vadd.f32 %v1171, %v1284
        %v1299 = vld [vmem:[#allocation2 + $0x13] sm:$0xff]
        %v1300 = vld [vmem:[#allocation2 + $0x1b] sm:$0xff]
        %v1301 = vld [vmem:[#allocation2 + $0x23] sm:$0xff]
        %v1302 = vld [vmem:[#allocation2 + $0x2b] sm:$0xff]
        %v1303 = vld [vmem:[#allocation2 + $0x33] sm:$0xff]
        %v1304 = vld [vmem:[#allocation2 + $0x3b] sm:$0xff]
        %v1305 = vld [vmem:[#allocation2 + $0x43] sm:$0xff]
        %v1306 = vld [vmem:[#allocation2 + $0x4b] sm:$0xff]
        %v1307 = vld [vmem:[#allocation2 + $0x53] sm:$0xff]
        %v1308 = vld [vmem:[#allocation2 + $0x5b] sm:$0xff]
        %v1309 = vld [vmem:[#allocation2 + $0x63] sm:$0xff]
        %v1310 = vld [vmem:[#allocation2 + $0x6b] sm:$0xff]
        %v1311 = vld [vmem:[#allocation2 + $0x73] sm:$0xf]
        %s1312 = scalar_lea.vmem [#allocation4], 96
        %v1313 = vld [vmem:[%s1312] sm:$0xff]
        %v1314 = vld [vmem:[%s1312 + $0x8] sm:$0xff]
        %v1315 = vld [vmem:[%s1312 + $0x10] sm:$0xff]
        %v1316 = vld [vmem:[%s1312 + $0x18] sm:$0xff]
        %v1318 = vsel %vm572, %v1299, 0
        %v1321 = vsel %vm572, %v1300, 0
        %v1324 = vsel %vm572, %v1301, 0
        %v1327 = vsel %vm572, %v1302, 0
        %v1330 = vsel %vm572, %v1303, 0
        %v1333 = vsel %vm572, %v1304, 0
        %v1336 = vsel %vm572, %v1305, 0
        %v1339 = vsel %vm572, %v1306, 0
        %v1342 = vsel %vm572, %v1307, 0
        %v1345 = vsel %vm572, %v1308, 0
        %v1348 = vsel %vm572, %v1309, 0
        %v1351 = vsel %vm572, %v1310, 0
        %v1354 = vsel %vm572, %v1311, 0
        %1356 = vmatpush.msra.mxu0 0.0
        %1357 = vmatpush.msra.mxu0 0.0
        %1358 = vmatpush.msra.mxu0 0.0
        %1359 = vmatpush.msra.mxu0 0.0
        %1360 = vmatpush.msra.mxu0 0.0
        %1361 = vmatpush.msra.mxu0 0.0
        %1362 = vmatpush.msra.mxu0 0.0
        %1363 = vmatpush.msra.mxu0 0.0
        %1364 = vmatpush.msra.mxu0 0.0
        %1365 = vmatpush.msra.mxu0 0.0
        %1366 = vmatpush.msra.mxu0 0.0
        %1367 = vmatpush.msra.mxu0 0.0
        %1368 = vmatpush.msra.mxu0 %v1316
        %1369 = vmatpush.msra.mxu0 %v1315
        %1370 = vmatpush.msra.mxu0 %v1314
        %1371 = vmatpush.msra.mxu0 %v1313
        %1372 = vmatmul.f32.gmra.mxu0 %v1318
        %v1373 = vpop.f32.mrf.mxu0
        %v1374 = vadd.f32 0.0, %v1373
        %1375 = vmatmul.f32.gmra.mxu0 %v1321
        %v1376 = vpop.f32.mrf.mxu0
        %v1377 = vadd.f32 0.0, %v1376
        %1378 = vmatmul.f32.gmra.mxu0 %v1324
        %v1379 = vpop.f32.mrf.mxu0
        %v1380 = vadd.f32 0.0, %v1379
        %1381 = vmatmul.f32.gmra.mxu0 %v1327
        %v1382 = vpop.f32.mrf.mxu0
        %v1383 = vadd.f32 0.0, %v1382
        %1384 = vmatmul.f32.gmra.mxu0 %v1330
        %v1385 = vpop.f32.mrf.mxu0
        %v1386 = vadd.f32 0.0, %v1385
        %1387 = vmatmul.f32.gmra.mxu0 %v1333
        %v1388 = vpop.f32.mrf.mxu0
        %v1389 = vadd.f32 0.0, %v1388
        %1390 = vmatmul.f32.gmra.mxu0 %v1336
        %v1391 = vpop.f32.mrf.mxu0
        %v1392 = vadd.f32 0.0, %v1391
        %1393 = vmatmul.f32.gmra.mxu0 %v1339
        %v1394 = vpop.f32.mrf.mxu0
        %v1395 = vadd.f32 0.0, %v1394
        %1396 = vmatmul.f32.gmra.mxu0 %v1342
        %v1397 = vpop.f32.mrf.mxu0
        %v1398 = vadd.f32 0.0, %v1397
        %1399 = vmatmul.f32.gmra.mxu0 %v1345
        %v1400 = vpop.f32.mrf.mxu0
        %v1401 = vadd.f32 0.0, %v1400
        %1402 = vmatmul.f32.gmra.mxu0 %v1348
        %v1403 = vpop.f32.mrf.mxu0
        %v1404 = vadd.f32 0.0, %v1403
        %1405 = vmatmul.f32.gmra.mxu0 %v1351
        %v1406 = vpop.f32.mrf.mxu0
        %v1407 = vadd.f32 0.0, %v1406
        %1408 = vmatmul.f32.gmra.mxu0 %v1354
        %v1409 = vpop.f32.mrf.mxu0
        %v1410 = vadd.f32 0.0, %v1409
        %1411 = vdwg.mxu0
        %v1412 = vadd.f32 %v1286, %v1374
        %v1413 = vadd.f32 %v1287, %v1377
        %v1414 = vadd.f32 %v1288, %v1380
        %v1415 = vadd.f32 %v1289, %v1383
        %v1416 = vadd.f32 %v1290, %v1386
        %v1417 = vadd.f32 %v1291, %v1389
        %v1418 = vadd.f32 %v1292, %v1392
        %v1419 = vadd.f32 %v1293, %v1395
        %v1420 = vadd.f32 %v1294, %v1398
        %v1421 = vadd.f32 %v1295, %v1401
        %v1422 = vadd.f32 %v1296, %v1404
        %v1423 = vadd.f32 %v1297, %v1407
        %v1424 = vadd.f32 %v1298, %v1410
        %v1425 = vld [vmem:[#allocation2 + $0x14] sm:$0xff]
        %v1426 = vld [vmem:[#allocation2 + $0x1c] sm:$0xff]
        %v1427 = vld [vmem:[#allocation2 + $0x24] sm:$0xff]
        %v1428 = vld [vmem:[#allocation2 + $0x2c] sm:$0xff]
        %v1429 = vld [vmem:[#allocation2 + $0x34] sm:$0xff]
        %v1430 = vld [vmem:[#allocation2 + $0x3c] sm:$0xff]
        %v1431 = vld [vmem:[#allocation2 + $0x44] sm:$0xff]
        %v1432 = vld [vmem:[#allocation2 + $0x4c] sm:$0xff]
        %v1433 = vld [vmem:[#allocation2 + $0x54] sm:$0xff]
        %v1434 = vld [vmem:[#allocation2 + $0x5c] sm:$0xff]
        %v1435 = vld [vmem:[#allocation2 + $0x64] sm:$0xff]
        %v1436 = vld [vmem:[#allocation2 + $0x6c] sm:$0xff]
        %v1437 = vld [vmem:[#allocation2 + $0x74] sm:$0xf]
        %s1438 = scalar_lea.vmem [#allocation4], 128
        %v1439 = vld [vmem:[%s1438] sm:$0xff]
        %v1440 = vld [vmem:[%s1438 + $0x8] sm:$0xff]
        %v1441 = vld [vmem:[%s1438 + $0x10] sm:$0xff]
        %v1442 = vld [vmem:[%s1438 + $0x18] sm:$0xff]
        %v1444 = vsel %vm572, %v1425, 0
        %v1447 = vsel %vm572, %v1426, 0
        %v1450 = vsel %vm572, %v1427, 0
        %v1453 = vsel %vm572, %v1428, 0
        %v1456 = vsel %vm572, %v1429, 0
        %v1459 = vsel %vm572, %v1430, 0
        %v1462 = vsel %vm572, %v1431, 0
        %v1465 = vsel %vm572, %v1432, 0
        %v1468 = vsel %vm572, %v1433, 0
        %v1471 = vsel %vm572, %v1434, 0
        %v1474 = vsel %vm572, %v1435, 0
        %v1477 = vsel %vm572, %v1436, 0
        %v1480 = vsel %vm572, %v1437, 0
        %1482 = vmatpush.msra.mxu0 0.0
        %1483 = vmatpush.msra.mxu0 0.0
        %1484 = vmatpush.msra.mxu0 0.0
        %1485 = vmatpush.msra.mxu0 0.0
        %1486 = vmatpush.msra.mxu0 0.0
        %1487 = vmatpush.msra.mxu0 0.0
        %1488 = vmatpush.msra.mxu0 0.0
        %1489 = vmatpush.msra.mxu0 0.0
        %1490 = vmatpush.msra.mxu0 0.0
        %1491 = vmatpush.msra.mxu0 0.0
        %1492 = vmatpush.msra.mxu0 0.0
        %1493 = vmatpush.msra.mxu0 0.0
        %1494 = vmatpush.msra.mxu0 %v1442
        %1495 = vmatpush.msra.mxu0 %v1441
        %1496 = vmatpush.msra.mxu0 %v1440
        %1497 = vmatpush.msra.mxu0 %v1439
        %1498 = vmatmul.f32.gmra.mxu0 %v1444
        %v1499 = vpop.f32.mrf.mxu0
        %v1500 = vadd.f32 0.0, %v1499
        %1501 = vmatmul.f32.gmra.mxu0 %v1447
        %v1502 = vpop.f32.mrf.mxu0
        %v1503 = vadd.f32 0.0, %v1502
        %1504 = vmatmul.f32.gmra.mxu0 %v1450
        %v1505 = vpop.f32.mrf.mxu0
        %v1506 = vadd.f32 0.0, %v1505
        %1507 = vmatmul.f32.gmra.mxu0 %v1453
        %v1508 = vpop.f32.mrf.mxu0
        %v1509 = vadd.f32 0.0, %v1508
        %1510 = vmatmul.f32.gmra.mxu0 %v1456
        %v1511 = vpop.f32.mrf.mxu0
        %v1512 = vadd.f32 0.0, %v1511
        %1513 = vmatmul.f32.gmra.mxu0 %v1459
        %v1514 = vpop.f32.mrf.mxu0
        %v1515 = vadd.f32 0.0, %v1514
        %1516 = vmatmul.f32.gmra.mxu0 %v1462
        %v1517 = vpop.f32.mrf.mxu0
        %v1518 = vadd.f32 0.0, %v1517
        %1519 = vmatmul.f32.gmra.mxu0 %v1465
        %v1520 = vpop.f32.mrf.mxu0
        %v1521 = vadd.f32 0.0, %v1520
        %1522 = vmatmul.f32.gmra.mxu0 %v1468
        %v1523 = vpop.f32.mrf.mxu0
        %v1524 = vadd.f32 0.0, %v1523
        %1525 = vmatmul.f32.gmra.mxu0 %v1471
        %v1526 = vpop.f32.mrf.mxu0
        %v1527 = vadd.f32 0.0, %v1526
        %1528 = vmatmul.f32.gmra.mxu0 %v1474
        %v1529 = vpop.f32.mrf.mxu0
        %v1530 = vadd.f32 0.0, %v1529
        %1531 = vmatmul.f32.gmra.mxu0 %v1477
        %v1532 = vpop.f32.mrf.mxu0
        %v1533 = vadd.f32 0.0, %v1532
        %1534 = vmatmul.f32.gmra.mxu0 %v1480
        %v1535 = vpop.f32.mrf.mxu0
        %v1536 = vadd.f32 0.0, %v1535
        %1537 = vdwg.mxu0
        %v1538 = vadd.f32 %v1412, %v1500
        %v1539 = vadd.f32 %v1413, %v1503
        %v1540 = vadd.f32 %v1414, %v1506
        %v1541 = vadd.f32 %v1415, %v1509
        %v1542 = vadd.f32 %v1416, %v1512
        %v1543 = vadd.f32 %v1417, %v1515
        %v1544 = vadd.f32 %v1418, %v1518
        %v1545 = vadd.f32 %v1419, %v1521
        %v1546 = vadd.f32 %v1420, %v1524
        %v1547 = vadd.f32 %v1421, %v1527
        %v1548 = vadd.f32 %v1422, %v1530
        %v1549 = vadd.f32 %v1423, %v1533
        %v1550 = vadd.f32 %v1424, %v1536
        %v1551 = vld [vmem:[#allocation2 + $0x15] sm:$0xff]
        %v1552 = vld [vmem:[#allocation2 + $0x1d] sm:$0xff]
        %v1553 = vld [vmem:[#allocation2 + $0x25] sm:$0xff]
        %v1554 = vld [vmem:[#allocation2 + $0x2d] sm:$0xff]
        %v1555 = vld [vmem:[#allocation2 + $0x35] sm:$0xff]
        %v1556 = vld [vmem:[#allocation2 + $0x3d] sm:$0xff]
        %v1557 = vld [vmem:[#allocation2 + $0x45] sm:$0xff]
        %v1558 = vld [vmem:[#allocation2 + $0x4d] sm:$0xff]
        %v1559 = vld [vmem:[#allocation2 + $0x55] sm:$0xff]
        %v1560 = vld [vmem:[#allocation2 + $0x5d] sm:$0xff]
        %v1561 = vld [vmem:[#allocation2 + $0x65] sm:$0xff]
        %v1562 = vld [vmem:[#allocation2 + $0x6d] sm:$0xff]
        %v1563 = vld [vmem:[#allocation2 + $0x75] sm:$0xf]
        %s1564 = scalar_lea.vmem [#allocation4], 160
        %v1565 = vld [vmem:[%s1564] sm:$0xff]
        %v1566 = vld [vmem:[%s1564 + $0x8] sm:$0xff]
        %v1567 = vld [vmem:[%s1564 + $0x10] sm:$0xff]
        %v1568 = vld [vmem:[%s1564 + $0x18] sm:$0xff]
        %v1570 = vsel %vm572, %v1551, 0
        %v1573 = vsel %vm572, %v1552, 0
        %v1576 = vsel %vm572, %v1553, 0
        %v1579 = vsel %vm572, %v1554, 0
        %v1582 = vsel %vm572, %v1555, 0
        %v1585 = vsel %vm572, %v1556, 0
        %v1588 = vsel %vm572, %v1557, 0
        %v1591 = vsel %vm572, %v1558, 0
        %v1594 = vsel %vm572, %v1559, 0
        %v1597 = vsel %vm572, %v1560, 0
        %v1600 = vsel %vm572, %v1561, 0
        %v1603 = vsel %vm572, %v1562, 0
        %v1606 = vsel %vm572, %v1563, 0
        %1608 = vmatpush.msra.mxu0 0.0
        %1609 = vmatpush.msra.mxu0 0.0
        %1610 = vmatpush.msra.mxu0 0.0
        %1611 = vmatpush.msra.mxu0 0.0
        %1612 = vmatpush.msra.mxu0 0.0
        %1613 = vmatpush.msra.mxu0 0.0
        %1614 = vmatpush.msra.mxu0 0.0
        %1615 = vmatpush.msra.mxu0 0.0
        %1616 = vmatpush.msra.mxu0 0.0
        %1617 = vmatpush.msra.mxu0 0.0
        %1618 = vmatpush.msra.mxu0 0.0
        %1619 = vmatpush.msra.mxu0 0.0
        %1620 = vmatpush.msra.mxu0 %v1568
        %1621 = vmatpush.msra.mxu0 %v1567
        %1622 = vmatpush.msra.mxu0 %v1566
        %1623 = vmatpush.msra.mxu0 %v1565
        %1624 = vmatmul.f32.gmra.mxu0 %v1570
        %v1625 = vpop.f32.mrf.mxu0
        %v1626 = vadd.f32 0.0, %v1625
        %1627 = vmatmul.f32.gmra.mxu0 %v1573
        %v1628 = vpop.f32.mrf.mxu0
        %v1629 = vadd.f32 0.0, %v1628
        %1630 = vmatmul.f32.gmra.mxu0 %v1576
        %v1631 = vpop.f32.mrf.mxu0
        %v1632 = vadd.f32 0.0, %v1631
        %1633 = vmatmul.f32.gmra.mxu0 %v1579
        %v1634 = vpop.f32.mrf.mxu0
        %v1635 = vadd.f32 0.0, %v1634
        %1636 = vmatmul.f32.gmra.mxu0 %v1582
        %v1637 = vpop.f32.mrf.mxu0
        %v1638 = vadd.f32 0.0, %v1637
        %1639 = vmatmul.f32.gmra.mxu0 %v1585
        %v1640 = vpop.f32.mrf.mxu0
        %v1641 = vadd.f32 0.0, %v1640
        %1642 = vmatmul.f32.gmra.mxu0 %v1588
        %v1643 = vpop.f32.mrf.mxu0
        %v1644 = vadd.f32 0.0, %v1643
        %1645 = vmatmul.f32.gmra.mxu0 %v1591
        %v1646 = vpop.f32.mrf.mxu0
        %v1647 = vadd.f32 0.0, %v1646
        %1648 = vmatmul.f32.gmra.mxu0 %v1594
        %v1649 = vpop.f32.mrf.mxu0
        %v1650 = vadd.f32 0.0, %v1649
        %1651 = vmatmul.f32.gmra.mxu0 %v1597
        %v1652 = vpop.f32.mrf.mxu0
        %v1653 = vadd.f32 0.0, %v1652
        %1654 = vmatmul.f32.gmra.mxu0 %v1600
        %v1655 = vpop.f32.mrf.mxu0
        %v1656 = vadd.f32 0.0, %v1655
        %1657 = vmatmul.f32.gmra.mxu0 %v1603
        %v1658 = vpop.f32.mrf.mxu0
        %v1659 = vadd.f32 0.0, %v1658
        %1660 = vmatmul.f32.gmra.mxu0 %v1606
        %v1661 = vpop.f32.mrf.mxu0
        %v1662 = vadd.f32 0.0, %v1661
        %1663 = vdwg.mxu0
        %v1664 = vadd.f32 %v1538, %v1626
        %v1665 = vadd.f32 %v1539, %v1629
        %v1666 = vadd.f32 %v1540, %v1632
        %v1667 = vadd.f32 %v1541, %v1635
        %v1668 = vadd.f32 %v1542, %v1638
        %v1669 = vadd.f32 %v1543, %v1641
        %v1670 = vadd.f32 %v1544, %v1644
        %v1671 = vadd.f32 %v1545, %v1647
        %v1672 = vadd.f32 %v1546, %v1650
        %v1673 = vadd.f32 %v1547, %v1653
        %v1674 = vadd.f32 %v1548, %v1656
        %v1675 = vadd.f32 %v1549, %v1659
        %v1676 = vadd.f32 %v1550, %v1662
        %v1677 = vld [vmem:[#allocation2 + $0x1d] sm:$0xff]
        %v1678 = vld [vmem:[#allocation2 + $0x25] sm:$0xff]
        %v1679 = vld [vmem:[#allocation2 + $0x2d] sm:$0xff]
        %v1680 = vld [vmem:[#allocation2 + $0x35] sm:$0xff]
        %v1681 = vld [vmem:[#allocation2 + $0x3d] sm:$0xff]
        %v1682 = vld [vmem:[#allocation2 + $0x45] sm:$0xff]
        %v1683 = vld [vmem:[#allocation2 + $0x4d] sm:$0xff]
        %v1684 = vld [vmem:[#allocation2 + $0x55] sm:$0xff]
        %v1685 = vld [vmem:[#allocation2 + $0x5d] sm:$0xff]
        %v1686 = vld [vmem:[#allocation2 + $0x65] sm:$0xff]
        %v1687 = vld [vmem:[#allocation2 + $0x6d] sm:$0xff]
        %v1688 = vld [vmem:[#allocation2 + $0x75] sm:$0xff]
        %v1689 = vld [vmem:[#allocation2 + $0x7d] sm:$0xf]
        %s1690 = scalar_lea.vmem [#allocation4], 192
        %v1691 = vld [vmem:[%s1690] sm:$0xff]
        %v1692 = vld [vmem:[%s1690 + $0x8] sm:$0xff]
        %v1693 = vld [vmem:[%s1690 + $0x10] sm:$0xff]
        %v1694 = vld [vmem:[%s1690 + $0x18] sm:$0xff]
        %v1696 = vsel %vm572, %v1677, 0
        %v1699 = vsel %vm572, %v1678, 0
        %v1702 = vsel %vm572, %v1679, 0
        %v1705 = vsel %vm572, %v1680, 0
        %v1708 = vsel %vm572, %v1681, 0
        %v1711 = vsel %vm572, %v1682, 0
        %v1714 = vsel %vm572, %v1683, 0
        %v1717 = vsel %vm572, %v1684, 0
        %v1720 = vsel %vm572, %v1685, 0
        %v1723 = vsel %vm572, %v1686, 0
        %v1726 = vsel %vm572, %v1687, 0
        %v1729 = vsel %vm572, %v1688, 0
        %v1732 = vsel %vm572, %v1689, 0
        %1734 = vmatpush.msra.mxu0 0.0
        %1735 = vmatpush.msra.mxu0 0.0
        %1736 = vmatpush.msra.mxu0 0.0
        %1737 = vmatpush.msra.mxu0 0.0
        %1738 = vmatpush.msra.mxu0 0.0
        %1739 = vmatpush.msra.mxu0 0.0
        %1740 = vmatpush.msra.mxu0 0.0
        %1741 = vmatpush.msra.mxu0 0.0
        %1742 = vmatpush.msra.mxu0 0.0
        %1743 = vmatpush.msra.mxu0 0.0
        %1744 = vmatpush.msra.mxu0 0.0
        %1745 = vmatpush.msra.mxu0 0.0
        %1746 = vmatpush.msra.mxu0 %v1694
        %1747 = vmatpush.msra.mxu0 %v1693
        %1748 = vmatpush.msra.mxu0 %v1692
        %1749 = vmatpush.msra.mxu0 %v1691
        %1750 = vmatmul.f32.gmra.mxu0 %v1696
        %v1751 = vpop.f32.mrf.mxu0
        %v1752 = vadd.f32 0.0, %v1751
        %1753 = vmatmul.f32.gmra.mxu0 %v1699
        %v1754 = vpop.f32.mrf.mxu0
        %v1755 = vadd.f32 0.0, %v1754
        %1756 = vmatmul.f32.gmra.mxu0 %v1702
        %v1757 = vpop.f32.mrf.mxu0
        %v1758 = vadd.f32 0.0, %v1757
        %1759 = vmatmul.f32.gmra.mxu0 %v1705
        %v1760 = vpop.f32.mrf.mxu0
        %v1761 = vadd.f32 0.0, %v1760
        %1762 = vmatmul.f32.gmra.mxu0 %v1708
        %v1763 = vpop.f32.mrf.mxu0
        %v1764 = vadd.f32 0.0, %v1763
        %1765 = vmatmul.f32.gmra.mxu0 %v1711
        %v1766 = vpop.f32.mrf.mxu0
        %v1767 = vadd.f32 0.0, %v1766
        %1768 = vmatmul.f32.gmra.mxu0 %v1714
        %v1769 = vpop.f32.mrf.mxu0
        %v1770 = vadd.f32 0.0, %v1769
        %1771 = vmatmul.f32.gmra.mxu0 %v1717
        %v1772 = vpop.f32.mrf.mxu0
        %v1773 = vadd.f32 0.0, %v1772
        %1774 = vmatmul.f32.gmra.mxu0 %v1720
        %v1775 = vpop.f32.mrf.mxu0
        %v1776 = vadd.f32 0.0, %v1775
        %1777 = vmatmul.f32.gmra.mxu0 %v1723
        %v1778 = vpop.f32.mrf.mxu0
        %v1779 = vadd.f32 0.0, %v1778
        %1780 = vmatmul.f32.gmra.mxu0 %v1726
        %v1781 = vpop.f32.mrf.mxu0
        %v1782 = vadd.f32 0.0, %v1781
        %1783 = vmatmul.f32.gmra.mxu0 %v1729
        %v1784 = vpop.f32.mrf.mxu0
        %v1785 = vadd.f32 0.0, %v1784
        %1786 = vmatmul.f32.gmra.mxu0 %v1732
        %v1787 = vpop.f32.mrf.mxu0
        %v1788 = vadd.f32 0.0, %v1787
        %1789 = vdwg.mxu0
        %v1790 = vadd.f32 %v1664, %v1752
        %v1791 = vadd.f32 %v1665, %v1755
        %v1792 = vadd.f32 %v1666, %v1758
        %v1793 = vadd.f32 %v1667, %v1761
        %v1794 = vadd.f32 %v1668, %v1764
        %v1795 = vadd.f32 %v1669, %v1767
        %v1796 = vadd.f32 %v1670, %v1770
        %v1797 = vadd.f32 %v1671, %v1773
        %v1798 = vadd.f32 %v1672, %v1776
        %v1799 = vadd.f32 %v1673, %v1779
        %v1800 = vadd.f32 %v1674, %v1782
        %v1801 = vadd.f32 %v1675, %v1785
        %v1802 = vadd.f32 %v1676, %v1788
        %v1803 = vld [vmem:[#allocation2 + $0x1e] sm:$0xff]
        %v1804 = vld [vmem:[#allocation2 + $0x26] sm:$0xff]
        %v1805 = vld [vmem:[#allocation2 + $0x2e] sm:$0xff]
        %v1806 = vld [vmem:[#allocation2 + $0x36] sm:$0xff]
        %v1807 = vld [vmem:[#allocation2 + $0x3e] sm:$0xff]
        %v1808 = vld [vmem:[#allocation2 + $0x46] sm:$0xff]
        %v1809 = vld [vmem:[#allocation2 + $0x4e] sm:$0xff]
        %v1810 = vld [vmem:[#allocation2 + $0x56] sm:$0xff]
        %v1811 = vld [vmem:[#allocation2 + $0x5e] sm:$0xff]
        %v1812 = vld [vmem:[#allocation2 + $0x66] sm:$0xff]
        %v1813 = vld [vmem:[#allocation2 + $0x6e] sm:$0xff]
        %v1814 = vld [vmem:[#allocation2 + $0x76] sm:$0xff]
        %v1815 = vld [vmem:[#allocation2 + $0x7e] sm:$0xf]
        %s1816 = scalar_lea.vmem [#allocation4], 224
        %v1817 = vld [vmem:[%s1816] sm:$0xff]
        %v1818 = vld [vmem:[%s1816 + $0x8] sm:$0xff]
        %v1819 = vld [vmem:[%s1816 + $0x10] sm:$0xff]
        %v1820 = vld [vmem:[%s1816 + $0x18] sm:$0xff]
        %v1822 = vsel %vm572, %v1803, 0
        %v1825 = vsel %vm572, %v1804, 0
        %v1828 = vsel %vm572, %v1805, 0
        %v1831 = vsel %vm572, %v1806, 0
        %v1834 = vsel %vm572, %v1807, 0
        %v1837 = vsel %vm572, %v1808, 0
        %v1840 = vsel %vm572, %v1809, 0
        %v1843 = vsel %vm572, %v1810, 0
        %v1846 = vsel %vm572, %v1811, 0
        %v1849 = vsel %vm572, %v1812, 0
        %v1852 = vsel %vm572, %v1813, 0
        %v1855 = vsel %vm572, %v1814, 0
        %v1858 = vsel %vm572, %v1815, 0
        %1860 = vmatpush.msra.mxu0 0.0
        %1861 = vmatpush.msra.mxu0 0.0
        %1862 = vmatpush.msra.mxu0 0.0
        %1863 = vmatpush.msra.mxu0 0.0
        %1864 = vmatpush.msra.mxu0 0.0
        %1865 = vmatpush.msra.mxu0 0.0
        %1866 = vmatpush.msra.mxu0 0.0
        %1867 = vmatpush.msra.mxu0 0.0
        %1868 = vmatpush.msra.mxu0 0.0
        %1869 = vmatpush.msra.mxu0 0.0
        %1870 = vmatpush.msra.mxu0 0.0
        %1871 = vmatpush.msra.mxu0 0.0
        %1872 = vmatpush.msra.mxu0 %v1820
        %1873 = vmatpush.msra.mxu0 %v1819
        %1874 = vmatpush.msra.mxu0 %v1818
        %1875 = vmatpush.msra.mxu0 %v1817
        %1876 = vmatmul.f32.gmra.mxu0 %v1822
        %v1877 = vpop.f32.mrf.mxu0
        %v1878 = vadd.f32 0.0, %v1877
        %1879 = vmatmul.f32.gmra.mxu0 %v1825
        %v1880 = vpop.f32.mrf.mxu0
        %v1881 = vadd.f32 0.0, %v1880
        %1882 = vmatmul.f32.gmra.mxu0 %v1828
        %v1883 = vpop.f32.mrf.mxu0
        %v1884 = vadd.f32 0.0, %v1883
        %1885 = vmatmul.f32.gmra.mxu0 %v1831
        %v1886 = vpop.f32.mrf.mxu0
        %v1887 = vadd.f32 0.0, %v1886
        %1888 = vmatmul.f32.gmra.mxu0 %v1834
        %v1889 = vpop.f32.mrf.mxu0
        %v1890 = vadd.f32 0.0, %v1889
        %1891 = vmatmul.f32.gmra.mxu0 %v1837
        %v1892 = vpop.f32.mrf.mxu0
        %v1893 = vadd.f32 0.0, %v1892
        %1894 = vmatmul.f32.gmra.mxu0 %v1840
        %v1895 = vpop.f32.mrf.mxu0
        %v1896 = vadd.f32 0.0, %v1895
        %1897 = vmatmul.f32.gmra.mxu0 %v1843
        %v1898 = vpop.f32.mrf.mxu0
        %v1899 = vadd.f32 0.0, %v1898
        %1900 = vmatmul.f32.gmra.mxu0 %v1846
        %v1901 = vpop.f32.mrf.mxu0
        %v1902 = vadd.f32 0.0, %v1901
        %1903 = vmatmul.f32.gmra.mxu0 %v1849
        %v1904 = vpop.f32.mrf.mxu0
        %v1905 = vadd.f32 0.0, %v1904
        %1906 = vmatmul.f32.gmra.mxu0 %v1852
        %v1907 = vpop.f32.mrf.mxu0
        %v1908 = vadd.f32 0.0, %v1907
        %1909 = vmatmul.f32.gmra.mxu0 %v1855
        %v1910 = vpop.f32.mrf.mxu0
        %v1911 = vadd.f32 0.0, %v1910
        %1912 = vmatmul.f32.gmra.mxu0 %v1858
        %v1913 = vpop.f32.mrf.mxu0
        %v1914 = vadd.f32 0.0, %v1913
        %1915 = vdwg.mxu0
        %v1916 = vadd.f32 %v1790, %v1878
        %v1917 = vadd.f32 %v1791, %v1881
        %v1918 = vadd.f32 %v1792, %v1884
        %v1919 = vadd.f32 %v1793, %v1887
        %v1920 = vadd.f32 %v1794, %v1890
        %v1921 = vadd.f32 %v1795, %v1893
        %v1922 = vadd.f32 %v1796, %v1896
        %v1923 = vadd.f32 %v1797, %v1899
        %v1924 = vadd.f32 %v1798, %v1902
        %v1925 = vadd.f32 %v1799, %v1905
        %v1926 = vadd.f32 %v1800, %v1908
        %v1927 = vadd.f32 %v1801, %v1911
        %v1928 = vadd.f32 %v1802, %v1914
        %v1929 = vld [vmem:[#allocation2 + $0x1f] sm:$0xff]
        %v1930 = vld [vmem:[#allocation2 + $0x27] sm:$0xff]
        %v1931 = vld [vmem:[#allocation2 + $0x2f] sm:$0xff]
        %v1932 = vld [vmem:[#allocation2 + $0x37] sm:$0xff]
        %v1933 = vld [vmem:[#allocation2 + $0x3f] sm:$0xff]
        %v1934 = vld [vmem:[#allocation2 + $0x47] sm:$0xff]
        %v1935 = vld [vmem:[#allocation2 + $0x4f] sm:$0xff]
        %v1936 = vld [vmem:[#allocation2 + $0x57] sm:$0xff]
        %v1937 = vld [vmem:[#allocation2 + $0x5f] sm:$0xff]
        %v1938 = vld [vmem:[#allocation2 + $0x67] sm:$0xff]
        %v1939 = vld [vmem:[#allocation2 + $0x6f] sm:$0xff]
        %v1940 = vld [vmem:[#allocation2 + $0x77] sm:$0xff]
        %v1941 = vld [vmem:[#allocation2 + $0x7f] sm:$0xf]
        %s1942 = scalar_lea.vmem [#allocation4], 256
        %v1943 = vld [vmem:[%s1942] sm:$0xff]
        %v1944 = vld [vmem:[%s1942 + $0x8] sm:$0xff]
        %v1945 = vld [vmem:[%s1942 + $0x10] sm:$0xff]
        %v1946 = vld [vmem:[%s1942 + $0x18] sm:$0xff]
        %v1948 = vsel %vm572, %v1929, 0
        %v1951 = vsel %vm572, %v1930, 0
        %v1954 = vsel %vm572, %v1931, 0
        %v1957 = vsel %vm572, %v1932, 0
        %v1960 = vsel %vm572, %v1933, 0
        %v1963 = vsel %vm572, %v1934, 0
        %v1966 = vsel %vm572, %v1935, 0
        %v1969 = vsel %vm572, %v1936, 0
        %v1972 = vsel %vm572, %v1937, 0
        %v1975 = vsel %vm572, %v1938, 0
        %v1978 = vsel %vm572, %v1939, 0
        %v1981 = vsel %vm572, %v1940, 0
        %v1984 = vsel %vm572, %v1941, 0
        %1986 = vmatpush.msra.mxu0 0.0
        %1987 = vmatpush.msra.mxu0 0.0
        %1988 = vmatpush.msra.mxu0 0.0
        %1989 = vmatpush.msra.mxu0 0.0
        %1990 = vmatpush.msra.mxu0 0.0
        %1991 = vmatpush.msra.mxu0 0.0
        %1992 = vmatpush.msra.mxu0 0.0
        %1993 = vmatpush.msra.mxu0 0.0
        %1994 = vmatpush.msra.mxu0 0.0
        %1995 = vmatpush.msra.mxu0 0.0
        %1996 = vmatpush.msra.mxu0 0.0
        %1997 = vmatpush.msra.mxu0 0.0
        %1998 = vmatpush.msra.mxu0 %v1946
        %1999 = vmatpush.msra.mxu0 %v1945
        %2000 = vmatpush.msra.mxu0 %v1944
        %2001 = vmatpush.msra.mxu0 %v1943
        %2002 = vmatmul.f32.gmra.mxu0 %v1948
        %v2003 = vpop.f32.mrf.mxu0
        %v2004 = vadd.f32 0.0, %v2003
        %2005 = vmatmul.f32.gmra.mxu0 %v1951
        %v2006 = vpop.f32.mrf.mxu0
        %v2007 = vadd.f32 0.0, %v2006
        %2008 = vmatmul.f32.gmra.mxu0 %v1954
        %v2009 = vpop.f32.mrf.mxu0
        %v2010 = vadd.f32 0.0, %v2009
        %2011 = vmatmul.f32.gmra.mxu0 %v1957
        %v2012 = vpop.f32.mrf.mxu0
        %v2013 = vadd.f32 0.0, %v2012
        %2014 = vmatmul.f32.gmra.mxu0 %v1960
        %v2015 = vpop.f32.mrf.mxu0
        %v2016 = vadd.f32 0.0, %v2015
        %2017 = vmatmul.f32.gmra.mxu0 %v1963
        %v2018 = vpop.f32.mrf.mxu0
        %v2019 = vadd.f32 0.0, %v2018
        %2020 = vmatmul.f32.gmra.mxu0 %v1966
        %v2021 = vpop.f32.mrf.mxu0
        %v2022 = vadd.f32 0.0, %v2021
        %2023 = vmatmul.f32.gmra.mxu0 %v1969
        %v2024 = vpop.f32.mrf.mxu0
        %v2025 = vadd.f32 0.0, %v2024
        %2026 = vmatmul.f32.gmra.mxu0 %v1972
        %v2027 = vpop.f32.mrf.mxu0
        %v2028 = vadd.f32 0.0, %v2027
        %2029 = vmatmul.f32.gmra.mxu0 %v1975
        %v2030 = vpop.f32.mrf.mxu0
        %v2031 = vadd.f32 0.0, %v2030
        %2032 = vmatmul.f32.gmra.mxu0 %v1978
        %v2033 = vpop.f32.mrf.mxu0
        %v2034 = vadd.f32 0.0, %v2033
        %2035 = vmatmul.f32.gmra.mxu0 %v1981
        %v2036 = vpop.f32.mrf.mxu0
        %v2037 = vadd.f32 0.0, %v2036
        %2038 = vmatmul.f32.gmra.mxu0 %v1984
        %v2039 = vpop.f32.mrf.mxu0
        %v2040 = vadd.f32 0.0, %v2039
        %2041 = vdwg.mxu0
        %v2042 = vadd.f32 %v1916, %v2004
        %v2043 = vadd.f32 %v1917, %v2007
        %v2044 = vadd.f32 %v1918, %v2010
        %v2045 = vadd.f32 %v1919, %v2013
        %v2046 = vadd.f32 %v1920, %v2016
        %v2047 = vadd.f32 %v1921, %v2019
        %v2048 = vadd.f32 %v1922, %v2022
        %v2049 = vadd.f32 %v1923, %v2025
        %v2050 = vadd.f32 %v1924, %v2028
        %v2051 = vadd.f32 %v1925, %v2031
        %v2052 = vadd.f32 %v1926, %v2034
        %v2053 = vadd.f32 %v1927, %v2037
        %v2054 = vadd.f32 %v1928, %v2040
        %v2056 = vperm.slane %v947, 0
        %v2058 = vadd.f32 %v2042, %v2056
        %v2059 = vadd.f32 %v2043, %v2056
        %v2060 = vadd.f32 %v2044, %v2056
        %v2061 = vadd.f32 %v2045, %v2056
        %v2062 = vadd.f32 %v2046, %v2056
        %v2063 = vadd.f32 %v2047, %v2056
        %v2064 = vadd.f32 %v2048, %v2056
        %v2065 = vadd.f32 %v2049, %v2056
        %v2066 = vadd.f32 %v2050, %v2056
        %v2067 = vadd.f32 %v2051, %v2056
        %v2068 = vadd.f32 %v2052, %v2056
        %v2069 = vadd.f32 %v2053, %v2056
        %v2070 = vadd.f32 %v2054, %v2056
        %v2071 = vld [vmem:[%s13] sm:$0xff]
        %v2072 = vld [vmem:[%s13 + $0x8] sm:$0xff]
        %v2073 = vld [vmem:[%s13 + $0x10] sm:$0xff]
        %v2074 = vld [vmem:[%s13 + $0x18] sm:$0xff]
        %v2075 = vld [vmem:[%s13 + $0x20] sm:$0xff]
        %v2076 = vld [vmem:[%s13 + $0x28] sm:$0xff]
        %v2077 = vld [vmem:[%s13 + $0x30] sm:$0xff]
        %v2078 = vld [vmem:[%s13 + $0x38] sm:$0xff]
        %v2079 = vld [vmem:[%s13 + $0x40] sm:$0xff]
        %v2080 = vld [vmem:[%s13 + $0x48] sm:$0xff]
        %v2081 = vld [vmem:[%s13 + $0x50] sm:$0xff]
        %v2082 = vld [vmem:[%s13 + $0x58] sm:$0xff]
        %v2083 = vld [vmem:[%s13 + $0x60] sm:$0xf]
        %2085 = vset.pattern.permute.xlu0 0
        %2086 = vperm.xlu0 %2085, %v2071
        %v2087 = vpop.permute.xlu0 %2086
        %2090 = vset.pattern.permute.xlu0 0
        %2091 = vperm.xlu0 %2090, %v2072
        %v2092 = vpop.permute.xlu0 %2091
        %2095 = vset.pattern.permute.xlu0 0
        %2096 = vperm.xlu0 %2095, %v2073
        %v2097 = vpop.permute.xlu0 %2096
        %2100 = vset.pattern.permute.xlu0 0
        %2101 = vperm.xlu0 %2100, %v2074
        %v2102 = vpop.permute.xlu0 %2101
        %2105 = vset.pattern.permute.xlu0 0
        %2106 = vperm.xlu0 %2105, %v2075
        %v2107 = vpop.permute.xlu0 %2106
        %2110 = vset.pattern.permute.xlu0 0
        %2111 = vperm.xlu0 %2110, %v2076
        %v2112 = vpop.permute.xlu0 %2111
        %2115 = vset.pattern.permute.xlu0 0
        %2116 = vperm.xlu0 %2115, %v2077
        %v2117 = vpop.permute.xlu0 %2116
        %2120 = vset.pattern.permute.xlu0 0
        %2121 = vperm.xlu0 %2120, %v2078
        %v2122 = vpop.permute.xlu0 %2121
        %2125 = vset.pattern.permute.xlu0 0
        %2126 = vperm.xlu0 %2125, %v2079
        %v2127 = vpop.permute.xlu0 %2126
        %2130 = vset.pattern.permute.xlu0 0
        %2131 = vperm.xlu0 %2130, %v2080
        %v2132 = vpop.permute.xlu0 %2131
        %2135 = vset.pattern.permute.xlu0 0
        %2136 = vperm.xlu0 %2135, %v2081
        %v2137 = vpop.permute.xlu0 %2136
        %2140 = vset.pattern.permute.xlu0 0
        %2141 = vperm.xlu0 %2140, %v2082
        %v2142 = vpop.permute.xlu0 %2141
        %2145 = vset.pattern.permute.xlu0 0
        %2146 = vperm.xlu0 %2145, %v2083
        %v2147 = vpop.permute.xlu0 %2146
        %v2149 = vmul.f32 %v2058, %v2087
        %v2150 = vmul.f32 %v2059, %v2092
        %v2151 = vmul.f32 %v2060, %v2097
        %v2152 = vmul.f32 %v2061, %v2102
        %v2153 = vmul.f32 %v2062, %v2107
        %v2154 = vmul.f32 %v2063, %v2112
        %v2155 = vmul.f32 %v2064, %v2117
        %v2156 = vmul.f32 %v2065, %v2122
        %v2157 = vmul.f32 %v2066, %v2127
        %v2158 = vmul.f32 %v2067, %v2132
        %v2159 = vmul.f32 %v2068, %v2137
        %v2160 = vmul.f32 %v2069, %v2142
        %v2161 = vmul.f32 %v2070, %v2147
        %v2162 = vld [vmem:[%s5] sm:$0x1]
        %v2163 = vld [vmem:[%s6] sm:$0x1]
        %v2164 = vld [vmem:[%s11] sm:$0xff]
        %v2165 = vld [vmem:[%s11 + $0x8] sm:$0xff]
        %v2166 = vld [vmem:[%s11 + $0x10] sm:$0xff]
        %v2167 = vld [vmem:[%s11 + $0x18] sm:$0xff]
        %v2168 = vld [vmem:[%s11 + $0x20] sm:$0xff]
        %v2169 = vld [vmem:[%s11 + $0x28] sm:$0xff]
        %v2170 = vld [vmem:[%s11 + $0x30] sm:$0xff]
        %v2171 = vld [vmem:[%s11 + $0x38] sm:$0xff]
        %v2172 = vld [vmem:[%s12] sm:$0xff]
        %v2173 = vld [vmem:[%s12 + $0x8] sm:$0xff]
        %v2174 = vld [vmem:[%s12 + $0x10] sm:$0xff]
        %v2175 = vld [vmem:[%s12 + $0x18] sm:$0xff]
        %vm2176 = vcmask 523264
        %v2177 = vsel %vm2176, %v2149, 0.0
        %v2178 = vsel %vm2176, %v2150, 0.0
        %v2179 = vadd.f32 %v2177, %v2178
        %v2180 = vsel %vm2176, %v2151, 0.0
        %v2181 = vadd.f32 %v2179, %v2180
        %v2182 = vsel %vm2176, %v2152, 0.0
        %v2183 = vadd.f32 %v2181, %v2182
        %v2184 = vsel %vm2176, %v2153, 0.0
        %v2185 = vadd.f32 %v2183, %v2184
        %v2186 = vsel %vm2176, %v2154, 0.0
        %v2187 = vadd.f32 %v2185, %v2186
        %v2188 = vsel %vm2176, %v2155, 0.0
        %v2189 = vadd.f32 %v2187, %v2188
        %v2190 = vsel %vm2176, %v2156, 0.0
        %v2191 = vadd.f32 %v2189, %v2190
        %v2192 = vsel %vm2176, %v2157, 0.0
        %v2193 = vadd.f32 %v2191, %v2192
        %v2194 = vsel %vm2176, %v2158, 0.0
        %v2195 = vadd.f32 %v2193, %v2194
        %v2196 = vsel %vm2176, %v2159, 0.0
        %v2197 = vadd.f32 %v2195, %v2196
        %v2198 = vsel %vm2176, %v2160, 0.0
        %v2199 = vadd.f32 %v2197, %v2198
        %vm2200 = vcmask 519168
        %v2201 = vsel %vm2200, %v2161, 0.0
        %v2202 = vadd.f32 %v2199, %v2201
        %v2203 = vrot.slane %v2202, 4
        %v2204 = vadd.f32 %v2202, %v2203
        %v2205 = vrot.slane %v2204, 2
        %v2206 = vadd.f32 %v2204, %v2205
        %v2207 = vrot.slane %v2206, 1
        %v2208 = vadd.f32 %v2206, %v2207
        %v2209 = vmul.f32 %v2149, %v2149
        %v2210 = vmul.f32 %v2150, %v2150
        %v2211 = vmul.f32 %v2151, %v2151
        %v2212 = vmul.f32 %v2152, %v2152
        %v2213 = vmul.f32 %v2153, %v2153
        %v2214 = vmul.f32 %v2154, %v2154
        %v2215 = vmul.f32 %v2155, %v2155
        %v2216 = vmul.f32 %v2156, %v2156
        %v2217 = vmul.f32 %v2157, %v2157
        %v2218 = vmul.f32 %v2158, %v2158
        %v2219 = vmul.f32 %v2159, %v2159
        %v2220 = vmul.f32 %v2160, %v2160
        %v2221 = vmul.f32 %v2161, %v2161
        %v2222 = vsel %vm2176, %v2209, 0.0
        %v2223 = vsel %vm2176, %v2210, 0.0
        %v2224 = vadd.f32 %v2222, %v2223
        %v2225 = vsel %vm2176, %v2211, 0.0
        %v2226 = vadd.f32 %v2224, %v2225
        %v2227 = vsel %vm2176, %v2212, 0.0
        %v2228 = vadd.f32 %v2226, %v2227
        %v2229 = vsel %vm2176, %v2213, 0.0
        %v2230 = vadd.f32 %v2228, %v2229
        %v2231 = vsel %vm2176, %v2214, 0.0
        %v2232 = vadd.f32 %v2230, %v2231
        %v2233 = vsel %vm2176, %v2215, 0.0
        %v2234 = vadd.f32 %v2232, %v2233
        %v2235 = vsel %vm2176, %v2216, 0.0
        %v2236 = vadd.f32 %v2234, %v2235
        %v2237 = vsel %vm2176, %v2217, 0.0
        %v2238 = vadd.f32 %v2236, %v2237
        %v2239 = vsel %vm2176, %v2218, 0.0
        %v2240 = vadd.f32 %v2238, %v2239
        %v2241 = vsel %vm2176, %v2219, 0.0
        %v2242 = vadd.f32 %v2240, %v2241
        %v2243 = vsel %vm2176, %v2220, 0.0
        %v2244 = vadd.f32 %v2242, %v2243
        %v2245 = vsel %vm2200, %v2221, 0.0
        %v2246 = vadd.f32 %v2244, %v2245
        %v2247 = vrot.slane %v2246, 4
        %v2248 = vadd.f32 %v2246, %v2247
        %v2249 = vrot.slane %v2248, 2
        %v2250 = vadd.f32 %v2248, %v2249
        %v2251 = vrot.slane %v2250, 1
        %v2252 = vadd.f32 %v2250, %v2251
        %v2254 = vsel %vm2176, %v2208, 0
        %2256 = vmatpush.msra.mxu0 0.0
        %2257 = vmatpush.msra.mxu0 0.0
        %2258 = vmatpush.msra.mxu0 0.0
        %2259 = vmatpush.msra.mxu0 0.0
        %2260 = vmatpush.msra.mxu0 0.0
        %2261 = vmatpush.msra.mxu0 0.0
        %2262 = vmatpush.msra.mxu0 0.0
        %2263 = vmatpush.msra.mxu0 0.0
        %2264 = vmatpush.msra.mxu0 %v2171
        %2265 = vmatpush.msra.mxu0 %v2170
        %2266 = vmatpush.msra.mxu0 %v2169
        %2267 = vmatpush.msra.mxu0 %v2168
        %2268 = vmatpush.msra.mxu0 %v2167
        %2269 = vmatpush.msra.mxu0 %v2166
        %2270 = vmatpush.msra.mxu0 %v2165
        %2271 = vmatpush.msra.mxu0 %v2164
        %2272 = vmatmul.f32.gmra.mxu0 %v2254
        %v2273 = vpop.f32.mrf.mxu0
        %v2274 = vadd.f32 0.0, %v2273
        %2275 = vdwg.mxu0
        %v2277 = vsel %vm572, %v2274, 0
        %2279 = vmatpush.msra.mxu0 0.0
        %2280 = vmatpush.msra.mxu0 0.0
        %2281 = vmatpush.msra.mxu0 0.0
        %2282 = vmatpush.msra.mxu0 0.0
        %2283 = vmatpush.msra.mxu0 0.0
        %2284 = vmatpush.msra.mxu0 0.0
        %2285 = vmatpush.msra.mxu0 0.0
        %2286 = vmatpush.msra.mxu0 0.0
        %2287 = vmatpush.msra.mxu0 0.0
        %2288 = vmatpush.msra.mxu0 0.0
        %2289 = vmatpush.msra.mxu0 0.0
        %2290 = vmatpush.msra.mxu0 0.0
        %2291 = vmatpush.msra.mxu0 %v2175
        %2292 = vmatpush.msra.mxu0 %v2174
        %2293 = vmatpush.msra.mxu0 %v2173
        %2294 = vmatpush.msra.mxu0 %v2172
        %2295 = vmatmul.f32.gmra.mxu0 %v2277
        %v2296 = vpop.f32.mrf.mxu0
        %v2297 = vadd.f32 0.0, %v2296
        %2298 = vdwg.mxu0
        %v2299 = vmul.f32 %v2297, 0.0078125
        %v2301 = vsel %vm2176, %v2252, 0
        %2303 = vmatpush.msra.mxu0 0.0
        %2304 = vmatpush.msra.mxu0 0.0
        %2305 = vmatpush.msra.mxu0 0.0
        %2306 = vmatpush.msra.mxu0 0.0
        %2307 = vmatpush.msra.mxu0 0.0
        %2308 = vmatpush.msra.mxu0 0.0
        %2309 = vmatpush.msra.mxu0 0.0
        %2310 = vmatpush.msra.mxu0 0.0
        %2311 = vmatpush.msra.mxu0 %v2171
        %2312 = vmatpush.msra.mxu0 %v2170
        %2313 = vmatpush.msra.mxu0 %v2169
        %2314 = vmatpush.msra.mxu0 %v2168
        %2315 = vmatpush.msra.mxu0 %v2167
        %2316 = vmatpush.msra.mxu0 %v2166
        %2317 = vmatpush.msra.mxu0 %v2165
        %2318 = vmatpush.msra.mxu0 %v2164
        %2319 = vmatmul.f32.gmra.mxu0 %v2301
        %v2320 = vpop.f32.mrf.mxu0
        %v2321 = vadd.f32 0.0, %v2320
        %2322 = vdwg.mxu0
        %v2324 = vsel %vm572, %v2321, 0
        %2326 = vmatpush.msra.mxu0 0.0
        %2327 = vmatpush.msra.mxu0 0.0
        %2328 = vmatpush.msra.mxu0 0.0
        %2329 = vmatpush.msra.mxu0 0.0
        %2330 = vmatpush.msra.mxu0 0.0
        %2331 = vmatpush.msra.mxu0 0.0
        %2332 = vmatpush.msra.mxu0 0.0
        %2333 = vmatpush.msra.mxu0 0.0
        %2334 = vmatpush.msra.mxu0 0.0
        %2335 = vmatpush.msra.mxu0 0.0
        %2336 = vmatpush.msra.mxu0 0.0
        %2337 = vmatpush.msra.mxu0 0.0
        %2338 = vmatpush.msra.mxu0 %v2175
        %2339 = vmatpush.msra.mxu0 %v2174
        %2340 = vmatpush.msra.mxu0 %v2173
        %2341 = vmatpush.msra.mxu0 %v2172
        %2342 = vmatmul.f32.gmra.mxu0 %v2324
        %v2343 = vpop.f32.mrf.mxu0
        %v2344 = vadd.f32 0.0, %v2343
        %2345 = vdwg.mxu0
        %v2346 = vmul.f32 %v2344, 0.0078125
        %v2347 = vmul.f32 %v2299, %v2299
        %v2348 = vsub.f32 %v2346, %v2347
        %v2349 = vadd.f32 %v2348, 1e-05
        %v2350 = vrsqrt.pop %v2349
        %v2351 = vmul.f32 %v2350, %v2349
        %v2352 = vmul.f32 %v2351, %v2350
        %v2353 = vmul.f32 0.5, %v2352
        %v2354 = vsub.f32 1.5, %v2353
        %v2355 = vmul.f32 %v2350, %v2354
        %vm2356 = vweird.f32 %v2349
        %vm2357 = vweird.f32 %v2350
        %vm2358 = vmor %vm2356, %vm2357
        %v2359 = vsel %vm2358, %v2350, %v2355
        %v2360 = vmul.f32 %v2359, %v2162
        %v2361 = vperm.slane %v2299, 0
        %v2362 = vsub.f32 %v2149, %v2361
        %v2363 = vsub.f32 %v2150, %v2361
        %v2364 = vsub.f32 %v2151, %v2361
        %v2365 = vsub.f32 %v2152, %v2361
        %v2366 = vsub.f32 %v2153, %v2361
        %v2367 = vsub.f32 %v2154, %v2361
        %v2368 = vsub.f32 %v2155, %v2361
        %v2369 = vsub.f32 %v2156, %v2361
        %v2370 = vsub.f32 %v2157, %v2361
        %v2371 = vsub.f32 %v2158, %v2361
        %v2372 = vsub.f32 %v2159, %v2361
        %v2373 = vsub.f32 %v2160, %v2361
        %v2374 = vsub.f32 %v2161, %v2361
        %v2375 = vperm.slane %v2360, 0
        %v2376 = vmul.f32 %v2362, %v2375
        %v2377 = vmul.f32 %v2363, %v2375
        %v2378 = vmul.f32 %v2364, %v2375
        %v2379 = vmul.f32 %v2365, %v2375
        %v2380 = vmul.f32 %v2366, %v2375
        %v2381 = vmul.f32 %v2367, %v2375
        %v2382 = vmul.f32 %v2368, %v2375
        %v2383 = vmul.f32 %v2369, %v2375
        %v2384 = vmul.f32 %v2370, %v2375
        %v2385 = vmul.f32 %v2371, %v2375
        %v2386 = vmul.f32 %v2372, %v2375
        %v2387 = vmul.f32 %v2373, %v2375
        %v2388 = vmul.f32 %v2374, %v2375
        %v2390 = vperm.slane %v2163, 0
        %v2392 = vadd.f32 %v2376, %v2390
        %v2393 = vadd.f32 %v2377, %v2390
        %v2394 = vadd.f32 %v2378, %v2390
        %v2395 = vadd.f32 %v2379, %v2390
        %v2396 = vadd.f32 %v2380, %v2390
        %v2397 = vadd.f32 %v2381, %v2390
        %v2398 = vadd.f32 %v2382, %v2390
        %v2399 = vadd.f32 %v2383, %v2390
        %v2400 = vadd.f32 %v2384, %v2390
        %v2401 = vadd.f32 %v2385, %v2390
        %v2402 = vadd.f32 %v2386, %v2390
        %v2403 = vadd.f32 %v2387, %v2390
        %v2404 = vadd.f32 %v2388, %v2390
        %v2405 = vxor.u32 %v2392, 2147483648
        %v2406 = vxor.u32 %v2393, 2147483648
        %v2407 = vxor.u32 %v2394, 2147483648
        %v2408 = vxor.u32 %v2395, 2147483648
        %v2409 = vxor.u32 %v2396, 2147483648
        %v2410 = vxor.u32 %v2397, 2147483648
        %v2411 = vxor.u32 %v2398, 2147483648
        %v2412 = vxor.u32 %v2399, 2147483648
        %v2413 = vxor.u32 %v2400, 2147483648
        %v2414 = vxor.u32 %v2401, 2147483648
        %v2415 = vxor.u32 %v2402, 2147483648
        %v2416 = vxor.u32 %v2403, 2147483648
        %v2417 = vxor.u32 %v2404, 2147483648
        %v2418 = vmul.f32 %v2405, 1.442695
        %v2419 = vpow.pop %v2418
        %v2420 = vmul.f32 %v2406, 1.442695
        %v2421 = vpow.pop %v2420
        %v2422 = vmul.f32 %v2407, 1.442695
        %v2423 = vpow.pop %v2422
        %v2424 = vmul.f32 %v2408, 1.442695
        %v2425 = vpow.pop %v2424
        %v2426 = vmul.f32 %v2409, 1.442695
        %v2427 = vpow.pop %v2426
        %v2428 = vmul.f32 %v2410, 1.442695
        %v2429 = vpow.pop %v2428
        %v2430 = vmul.f32 %v2411, 1.442695
        %v2431 = vpow.pop %v2430
        %v2432 = vmul.f32 %v2412, 1.442695
        %v2433 = vpow.pop %v2432
        %v2434 = vmul.f32 %v2413, 1.442695
        %v2435 = vpow.pop %v2434
        %v2436 = vmul.f32 %v2414, 1.442695
        %v2437 = vpow.pop %v2436
        %v2438 = vmul.f32 %v2415, 1.442695
        %v2439 = vpow.pop %v2438
        %v2440 = vmul.f32 %v2416, 1.442695
        %v2441 = vpow.pop %v2440
        %v2442 = vmul.f32 %v2417, 1.442695
        %v2443 = vpow.pop %v2442
        %v2444 = vadd.f32 %v2419, 1.0
        %v2445 = vadd.f32 %v2421, 1.0
        %v2446 = vadd.f32 %v2423, 1.0
        %v2447 = vadd.f32 %v2425, 1.0
        %v2448 = vadd.f32 %v2427, 1.0
        %v2449 = vadd.f32 %v2429, 1.0
        %v2450 = vadd.f32 %v2431, 1.0
        %v2451 = vadd.f32 %v2433, 1.0
        %v2452 = vadd.f32 %v2435, 1.0
        %v2453 = vadd.f32 %v2437, 1.0
        %v2454 = vadd.f32 %v2439, 1.0
        %v2455 = vadd.f32 %v2441, 1.0
        %v2456 = vadd.f32 %v2443, 1.0
        %v2457 = vrcp.pop %v2444
        %v2458 = vmul.f32 %v2444, %v2457
        %v2459 = vsub.f32 1.0, %v2458
        %v2460 = vmul.f32 %v2457, %v2459
        %v2461 = vadd.f32 %v2457, %v2460
        %vm2462 = vweird.f32 %v2444
        %vm2463 = vweird.f32 %v2457
        %vm2464 = vmor %vm2462, %vm2463
        %v2465 = vsel %vm2464, %v2457, %v2461
        %v2466 = vand.u32 2147483647, %v2444
        %vm2467 = vcmp.eq.f32.partialorder %v2466, 8.507059e+37
        %v2468 = vand.u32 %v2444, 2147483648
        %v2469 = vor.u32 1.1754944e-38, %v2468
        %v2470 = vsel %vm2467, %v2469, %v2465
        %v2471 = vmul.f32 1.0, %v2470
        %v2472 = vrcp.pop %v2445
        %v2473 = vmul.f32 %v2445, %v2472
        %v2474 = vsub.f32 1.0, %v2473
        %v2475 = vmul.f32 %v2472, %v2474
        %v2476 = vadd.f32 %v2472, %v2475
        %vm2477 = vweird.f32 %v2445
        %vm2478 = vweird.f32 %v2472
        %vm2479 = vmor %vm2477, %vm2478
        %v2480 = vsel %vm2479, %v2472, %v2476
        %v2481 = vand.u32 2147483647, %v2445
        %vm2482 = vcmp.eq.f32.partialorder %v2481, 8.507059e+37
        %v2483 = vand.u32 %v2445, 2147483648
        %v2484 = vor.u32 1.1754944e-38, %v2483
        %v2485 = vsel %vm2482, %v2484, %v2480
        %v2486 = vmul.f32 1.0, %v2485
        %v2487 = vrcp.pop %v2446
        %v2488 = vmul.f32 %v2446, %v2487
        %v2489 = vsub.f32 1.0, %v2488
        %v2490 = vmul.f32 %v2487, %v2489
        %v2491 = vadd.f32 %v2487, %v2490
        %vm2492 = vweird.f32 %v2446
        %vm2493 = vweird.f32 %v2487
        %vm2494 = vmor %vm2492, %vm2493
        %v2495 = vsel %vm2494, %v2487, %v2491
        %v2496 = vand.u32 2147483647, %v2446
        %vm2497 = vcmp.eq.f32.partialorder %v2496, 8.507059e+37
        %v2498 = vand.u32 %v2446, 2147483648
        %v2499 = vor.u32 1.1754944e-38, %v2498
        %v2500 = vsel %vm2497, %v2499, %v2495
        %v2501 = vmul.f32 1.0, %v2500
        %v2502 = vrcp.pop %v2447
        %v2503 = vmul.f32 %v2447, %v2502
        %v2504 = vsub.f32 1.0, %v2503
        %v2505 = vmul.f32 %v2502, %v2504
        %v2506 = vadd.f32 %v2502, %v2505
        %vm2507 = vweird.f32 %v2447
        %vm2508 = vweird.f32 %v2502
        %vm2509 = vmor %vm2507, %vm2508
        %v2510 = vsel %vm2509, %v2502, %v2506
        %v2511 = vand.u32 2147483647, %v2447
        %vm2512 = vcmp.eq.f32.partialorder %v2511, 8.507059e+37
        %v2513 = vand.u32 %v2447, 2147483648
        %v2514 = vor.u32 1.1754944e-38, %v2513
        %v2515 = vsel %vm2512, %v2514, %v2510
        %v2516 = vmul.f32 1.0, %v2515
        %v2517 = vrcp.pop %v2448
        %v2518 = vmul.f32 %v2448, %v2517
        %v2519 = vsub.f32 1.0, %v2518
        %v2520 = vmul.f32 %v2517, %v2519
        %v2521 = vadd.f32 %v2517, %v2520
        %vm2522 = vweird.f32 %v2448
        %vm2523 = vweird.f32 %v2517
        %vm2524 = vmor %vm2522, %vm2523
        %v2525 = vsel %vm2524, %v2517, %v2521
        %v2526 = vand.u32 2147483647, %v2448
        %vm2527 = vcmp.eq.f32.partialorder %v2526, 8.507059e+37
        %v2528 = vand.u32 %v2448, 2147483648
        %v2529 = vor.u32 1.1754944e-38, %v2528
        %v2530 = vsel %vm2527, %v2529, %v2525
        %v2531 = vmul.f32 1.0, %v2530
        %v2532 = vrcp.pop %v2449
        %v2533 = vmul.f32 %v2449, %v2532
        %v2534 = vsub.f32 1.0, %v2533
        %v2535 = vmul.f32 %v2532, %v2534
        %v2536 = vadd.f32 %v2532, %v2535
        %vm2537 = vweird.f32 %v2449
        %vm2538 = vweird.f32 %v2532
        %vm2539 = vmor %vm2537, %vm2538
        %v2540 = vsel %vm2539, %v2532, %v2536
        %v2541 = vand.u32 2147483647, %v2449
        %vm2542 = vcmp.eq.f32.partialorder %v2541, 8.507059e+37
        %v2543 = vand.u32 %v2449, 2147483648
        %v2544 = vor.u32 1.1754944e-38, %v2543
        %v2545 = vsel %vm2542, %v2544, %v2540
        %v2546 = vmul.f32 1.0, %v2545
        %v2547 = vrcp.pop %v2450
        %v2548 = vmul.f32 %v2450, %v2547
        %v2549 = vsub.f32 1.0, %v2548
        %v2550 = vmul.f32 %v2547, %v2549
        %v2551 = vadd.f32 %v2547, %v2550
        %vm2552 = vweird.f32 %v2450
        %vm2553 = vweird.f32 %v2547
        %vm2554 = vmor %vm2552, %vm2553
        %v2555 = vsel %vm2554, %v2547, %v2551
        %v2556 = vand.u32 2147483647, %v2450
        %vm2557 = vcmp.eq.f32.partialorder %v2556, 8.507059e+37
        %v2558 = vand.u32 %v2450, 2147483648
        %v2559 = vor.u32 1.1754944e-38, %v2558
        %v2560 = vsel %vm2557, %v2559, %v2555
        %v2561 = vmul.f32 1.0, %v2560
        %v2562 = vrcp.pop %v2451
        %v2563 = vmul.f32 %v2451, %v2562
        %v2564 = vsub.f32 1.0, %v2563
        %v2565 = vmul.f32 %v2562, %v2564
        %v2566 = vadd.f32 %v2562, %v2565
        %vm2567 = vweird.f32 %v2451
        %vm2568 = vweird.f32 %v2562
        %vm2569 = vmor %vm2567, %vm2568
        %v2570 = vsel %vm2569, %v2562, %v2566
        %v2571 = vand.u32 2147483647, %v2451
        %vm2572 = vcmp.eq.f32.partialorder %v2571, 8.507059e+37
        %v2573 = vand.u32 %v2451, 2147483648
        %v2574 = vor.u32 1.1754944e-38, %v2573
        %v2575 = vsel %vm2572, %v2574, %v2570
        %v2576 = vmul.f32 1.0, %v2575
        %v2577 = vrcp.pop %v2452
        %v2578 = vmul.f32 %v2452, %v2577
        %v2579 = vsub.f32 1.0, %v2578
        %v2580 = vmul.f32 %v2577, %v2579
        %v2581 = vadd.f32 %v2577, %v2580
        %vm2582 = vweird.f32 %v2452
        %vm2583 = vweird.f32 %v2577
        %vm2584 = vmor %vm2582, %vm2583
        %v2585 = vsel %vm2584, %v2577, %v2581
        %v2586 = vand.u32 2147483647, %v2452
        %vm2587 = vcmp.eq.f32.partialorder %v2586, 8.507059e+37
        %v2588 = vand.u32 %v2452, 2147483648
        %v2589 = vor.u32 1.1754944e-38, %v2588
        %v2590 = vsel %vm2587, %v2589, %v2585
        %v2591 = vmul.f32 1.0, %v2590
        %v2592 = vrcp.pop %v2453
        %v2593 = vmul.f32 %v2453, %v2592
        %v2594 = vsub.f32 1.0, %v2593
        %v2595 = vmul.f32 %v2592, %v2594
        %v2596 = vadd.f32 %v2592, %v2595
        %vm2597 = vweird.f32 %v2453
        %vm2598 = vweird.f32 %v2592
        %vm2599 = vmor %vm2597, %vm2598
        %v2600 = vsel %vm2599, %v2592, %v2596
        %v2601 = vand.u32 2147483647, %v2453
        %vm2602 = vcmp.eq.f32.partialorder %v2601, 8.507059e+37
        %v2603 = vand.u32 %v2453, 2147483648
        %v2604 = vor.u32 1.1754944e-38, %v2603
        %v2605 = vsel %vm2602, %v2604, %v2600
        %v2606 = vmul.f32 1.0, %v2605
        %v2607 = vrcp.pop %v2454
        %v2608 = vmul.f32 %v2454, %v2607
        %v2609 = vsub.f32 1.0, %v2608
        %v2610 = vmul.f32 %v2607, %v2609
        %v2611 = vadd.f32 %v2607, %v2610
        %vm2612 = vweird.f32 %v2454
        %vm2613 = vweird.f32 %v2607
        %vm2614 = vmor %vm2612, %vm2613
        %v2615 = vsel %vm2614, %v2607, %v2611
        %v2616 = vand.u32 2147483647, %v2454
        %vm2617 = vcmp.eq.f32.partialorder %v2616, 8.507059e+37
        %v2618 = vand.u32 %v2454, 2147483648
        %v2619 = vor.u32 1.1754944e-38, %v2618
        %v2620 = vsel %vm2617, %v2619, %v2615
        %v2621 = vmul.f32 1.0, %v2620
        %v2622 = vrcp.pop %v2455
        %v2623 = vmul.f32 %v2455, %v2622
        %v2624 = vsub.f32 1.0, %v2623
        %v2625 = vmul.f32 %v2622, %v2624
        %v2626 = vadd.f32 %v2622, %v2625
        %vm2627 = vweird.f32 %v2455
        %vm2628 = vweird.f32 %v2622
        %vm2629 = vmor %vm2627, %vm2628
        %v2630 = vsel %vm2629, %v2622, %v2626
        %v2631 = vand.u32 2147483647, %v2455
        %vm2632 = vcmp.eq.f32.partialorder %v2631, 8.507059e+37
        %v2633 = vand.u32 %v2455, 2147483648
        %v2634 = vor.u32 1.1754944e-38, %v2633
        %v2635 = vsel %vm2632, %v2634, %v2630
        %v2636 = vmul.f32 1.0, %v2635
        %v2637 = vrcp.pop %v2456
        %v2638 = vmul.f32 %v2456, %v2637
        %v2639 = vsub.f32 1.0, %v2638
        %v2640 = vmul.f32 %v2637, %v2639
        %v2641 = vadd.f32 %v2637, %v2640
        %vm2642 = vweird.f32 %v2456
        %vm2643 = vweird.f32 %v2637
        %vm2644 = vmor %vm2642, %vm2643
        %v2645 = vsel %vm2644, %v2637, %v2641
        %v2646 = vand.u32 2147483647, %v2456
        %vm2647 = vcmp.eq.f32.partialorder %v2646, 8.507059e+37
        %v2648 = vand.u32 %v2456, 2147483648
        %v2649 = vor.u32 1.1754944e-38, %v2648
        %v2650 = vsel %vm2647, %v2649, %v2645
        %v2651 = vmul.f32 1.0, %v2650
        %v2652 = vmul.f32 %v2392, %v2471
        %v2653 = vmul.f32 %v2393, %v2486
        %v2654 = vmul.f32 %v2394, %v2501
        %v2655 = vmul.f32 %v2395, %v2516
        %v2656 = vmul.f32 %v2396, %v2531
        %v2657 = vmul.f32 %v2397, %v2546
        %v2658 = vmul.f32 %v2398, %v2561
        %v2659 = vmul.f32 %v2399, %v2576
        %v2660 = vmul.f32 %v2400, %v2591
        %v2661 = vmul.f32 %v2401, %v2606
        %v2662 = vmul.f32 %v2402, %v2621
        %v2663 = vmul.f32 %v2403, %v2636
        %v2664 = vmul.f32 %v2404, %v2651
        %v2665 = vmul.f32 %v2652, %v2087
        %v2666 = vmul.f32 %v2653, %v2092
        %v2667 = vmul.f32 %v2654, %v2097
        %v2668 = vmul.f32 %v2655, %v2102
        %v2669 = vmul.f32 %v2656, %v2107
        %v2670 = vmul.f32 %v2657, %v2112
        %v2671 = vmul.f32 %v2658, %v2117
        %v2672 = vmul.f32 %v2659, %v2122
        %v2673 = vmul.f32 %v2660, %v2127
        %v2674 = vmul.f32 %v2661, %v2132
        %v2675 = vmul.f32 %v2662, %v2137
        %v2676 = vmul.f32 %v2663, %v2142
        %v2677 = vmul.f32 %v2664, %v2147
        %2678 = vst.msk [vmem:[#allocation3] sm:$0xff] %vm2176, 0.0
        %2679 = vst.msk [vmem:[#allocation3 + $0x8] sm:$0xff] %vm2176, 0.0
        %2680 = vst.msk [vmem:[#allocation3 + $0x10] sm:$0xf] %vm2200, 0.0
        %2681 = vst.msk [vmem:[#allocation3 + $0x14] sm:$0xff] %vm2176, %v2665
        %2682 = vst.msk [vmem:[#allocation3 + $0x1c] sm:$0xff] %vm2176, %v2666
        %2683 = vst.msk [vmem:[#allocation3 + $0x24] sm:$0xff] %vm2176, %v2667
        %2684 = vst.msk [vmem:[#allocation3 + $0x2c] sm:$0xff] %vm2176, %v2668
        %2685 = vst.msk [vmem:[#allocation3 + $0x34] sm:$0xff] %vm2176, %v2669
        %2686 = vst.msk [vmem:[#allocation3 + $0x3c] sm:$0xff] %vm2176, %v2670
        %2687 = vst.msk [vmem:[#allocation3 + $0x44] sm:$0xff] %vm2176, %v2671
        %2688 = vst.msk [vmem:[#allocation3 + $0x4c] sm:$0xff] %vm2176, %v2672
        %2689 = vst.msk [vmem:[#allocation3 + $0x54] sm:$0xff] %vm2176, %v2673
        %2690 = vst.msk [vmem:[#allocation3 + $0x5c] sm:$0xff] %vm2176, %v2674
        %2691 = vst.msk [vmem:[#allocation3 + $0x64] sm:$0xff] %vm2176, %v2675
        %2692 = vst.msk [vmem:[#allocation3 + $0x6c] sm:$0xff] %vm2176, %v2676
        %2693 = vst.msk [vmem:[#allocation3 + $0x74] sm:$0xf] %vm2200, %v2677
        %2694 = vst.msk [vmem:[#allocation3 + $0x78] sm:$0xff] %vm2176, 0.0
        %2695 = vst.msk [vmem:[#allocation3 + $0x80] sm:$0xff] %vm2176, 0.0
        %2696 = vst.msk [vmem:[#allocation3 + $0x88] sm:$0xf] %vm2200, 0.0
        %v2697 = vld [vmem:[%s8] sm:$0x1]
        %v2698 = vld [vmem:[#allocation3 + $0x9] sm:$0xff]
        %v2699 = vld [vmem:[#allocation3 + $0x11] sm:$0xff]
        %v2700 = vld [vmem:[#allocation3 + $0x19] sm:$0xff]
        %v2701 = vld [vmem:[#allocation3 + $0x21] sm:$0xff]
        %v2702 = vld [vmem:[#allocation3 + $0x29] sm:$0xff]
        %v2703 = vld [vmem:[#allocation3 + $0x31] sm:$0xff]
        %v2704 = vld [vmem:[#allocation3 + $0x39] sm:$0xff]
        %v2705 = vld [vmem:[#allocation3 + $0x41] sm:$0xff]
        %v2706 = vld [vmem:[#allocation3 + $0x49] sm:$0xff]
        %v2707 = vld [vmem:[#allocation3 + $0x51] sm:$0xff]
        %v2708 = vld [vmem:[#allocation3 + $0x59] sm:$0xff]
        %v2709 = vld [vmem:[#allocation3 + $0x61] sm:$0xff]
        %v2710 = vld [vmem:[#allocation3 + $0x69] sm:$0xf]
        %v2711 = vld [vmem:[#allocation7] sm:$0xff]
        %v2712 = vld [vmem:[#allocation7 + $0x8] sm:$0xff]
        %v2713 = vld [vmem:[#allocation7 + $0x10] sm:$0xff]
        %v2714 = vld [vmem:[#allocation7 + $0x18] sm:$0xff]
        %v2715 = vld [vmem:[#allocation7 + $0x20] sm:$0xff]
        %v2716 = vld [vmem:[#allocation7 + $0x28] sm:$0xff]
        %v2717 = vld [vmem:[#allocation7 + $0x30] sm:$0xff]
        %v2718 = vld [vmem:[#allocation7 + $0x38] sm:$0xff]
        %v2719 = vld [vmem:[#allocation3 + $0xa] sm:$0xff]
        %v2720 = vld [vmem:[#allocation3 + $0x12] sm:$0xff]
        %v2721 = vld [vmem:[#allocation3 + $0x1a] sm:$0xff]
        %v2722 = vld [vmem:[#allocation3 + $0x22] sm:$0xff]
        %v2723 = vld [vmem:[#allocation3 + $0x2a] sm:$0xff]
        %v2724 = vld [vmem:[#allocation3 + $0x32] sm:$0xff]
        %v2725 = vld [vmem:[#allocation3 + $0x3a] sm:$0xff]
        %v2726 = vld [vmem:[#allocation3 + $0x42] sm:$0xff]
        %v2727 = vld [vmem:[#allocation3 + $0x4a] sm:$0xff]
        %v2728 = vld [vmem:[#allocation3 + $0x52] sm:$0xff]
        %v2729 = vld [vmem:[#allocation3 + $0x5a] sm:$0xff]
        %v2730 = vld [vmem:[#allocation3 + $0x62] sm:$0xff]
        %v2731 = vld [vmem:[#allocation3 + $0x6a] sm:$0xf]
        %s2732 = scalar_lea.vmem [#allocation7], 64
        %v2733 = vld [vmem:[%s2732] sm:$0xff]
        %v2734 = vld [vmem:[%s2732 + $0x8] sm:$0xff]
        %v2735 = vld [vmem:[%s2732 + $0x10] sm:$0xff]
        %v2736 = vld [vmem:[%s2732 + $0x18] sm:$0xff]
        %v2737 = vld [vmem:[%s2732 + $0x20] sm:$0xff]
        %v2738 = vld [vmem:[%s2732 + $0x28] sm:$0xff]
        %v2739 = vld [vmem:[%s2732 + $0x30] sm:$0xff]
        %v2740 = vld [vmem:[%s2732 + $0x38] sm:$0xff]
        %v2742 = vsel %vm2176, %v2719, 0
        %v2745 = vsel %vm2176, %v2720, 0
        %v2748 = vsel %vm2176, %v2721, 0
        %v2751 = vsel %vm2176, %v2722, 0
        %v2754 = vsel %vm2176, %v2723, 0
        %v2757 = vsel %vm2176, %v2724, 0
        %v2760 = vsel %vm2176, %v2725, 0
        %v2763 = vsel %vm2176, %v2726, 0
        %v2766 = vsel %vm2176, %v2727, 0
        %v2769 = vsel %vm2176, %v2728, 0
        %v2772 = vsel %vm2176, %v2729, 0
        %v2775 = vsel %vm2176, %v2730, 0
        %v2778 = vsel %vm2176, %v2731, 0
        %2780 = vmatpush.msra.mxu0 0.0
        %2781 = vmatpush.msra.mxu0 0.0
        %2782 = vmatpush.msra.mxu0 0.0
        %2783 = vmatpush.msra.mxu0 0.0
        %2784 = vmatpush.msra.mxu0 0.0
        %2785 = vmatpush.msra.mxu0 0.0
        %2786 = vmatpush.msra.mxu0 0.0
        %2787 = vmatpush.msra.mxu0 0.0
        %2788 = vmatpush.msra.mxu0 %v2740
        %2789 = vmatpush.msra.mxu0 %v2739
        %2790 = vmatpush.msra.mxu0 %v2738
        %2791 = vmatpush.msra.mxu0 %v2737
        %2792 = vmatpush.msra.mxu0 %v2736
        %2793 = vmatpush.msra.mxu0 %v2735
        %2794 = vmatpush.msra.mxu0 %v2734
        %2795 = vmatpush.msra.mxu0 %v2733
        %2796 = vmatmul.f32.gmra.mxu0 %v2742
        %v2797 = vpop.f32.mrf.mxu0
        %2798 = vmatmul.f32.gmra.mxu0 %v2745
        %v2799 = vpop.f32.mrf.mxu0
        %v2800 = vadd.f32 0.0, %v2799
        %2801 = vmatmul.f32.gmra.mxu0 %v2748
        %v2802 = vpop.f32.mrf.mxu0
        %v2803 = vadd.f32 0.0, %v2802
        %2804 = vmatmul.f32.gmra.mxu0 %v2751
        %v2805 = vpop.f32.mrf.mxu0
        %v2806 = vadd.f32 0.0, %v2805
        %2807 = vmatmul.f32.gmra.mxu0 %v2754
        %v2808 = vpop.f32.mrf.mxu0
        %v2809 = vadd.f32 0.0, %v2808
        %2810 = vmatmul.f32.gmra.mxu0 %v2757
        %v2811 = vpop.f32.mrf.mxu0
        %v2812 = vadd.f32 0.0, %v2811
        %2813 = vmatmul.f32.gmra.mxu0 %v2760
        %v2814 = vpop.f32.mrf.mxu0
        %v2815 = vadd.f32 0.0, %v2814
        %2816 = vmatmul.f32.gmra.mxu0 %v2763
        %v2817 = vpop.f32.mrf.mxu0
        %v2818 = vadd.f32 0.0, %v2817
        %2819 = vmatmul.f32.gmra.mxu0 %v2766
        %v2820 = vpop.f32.mrf.mxu0
        %v2821 = vadd.f32 0.0, %v2820
        %2822 = vmatmul.f32.gmra.mxu0 %v2769
        %v2823 = vpop.f32.mrf.mxu0
        %v2824 = vadd.f32 0.0, %v2823
        %2825 = vmatmul.f32.gmra.mxu0 %v2772
        %v2826 = vpop.f32.mrf.mxu0
        %v2827 = vadd.f32 0.0, %v2826
        %2828 = vmatmul.f32.gmra.mxu0 %v2775
        %v2829 = vpop.f32.mrf.mxu0
        %v2830 = vadd.f32 0.0, %v2829
        %2831 = vmatmul.f32.gmra.mxu0 %v2778
        %v2832 = vpop.f32.mrf.mxu0
        %2833 = vdwg.mxu0
        %v2835 = vsel %vm2176, %v2698, 0
        %v2838 = vsel %vm2176, %v2699, 0
        %v2841 = vsel %vm2176, %v2700, 0
        %v2844 = vsel %vm2176, %v2701, 0
        %v2847 = vsel %vm2176, %v2702, 0
        %v2850 = vsel %vm2176, %v2703, 0
        %v2853 = vsel %vm2176, %v2704, 0
        %v2856 = vsel %vm2176, %v2705, 0
        %v2859 = vsel %vm2176, %v2706, 0
        %v2862 = vsel %vm2176, %v2707, 0
        %v2865 = vsel %vm2176, %v2708, 0
        %v2868 = vsel %vm2176, %v2709, 0
        %v2871 = vsel %vm2176, %v2710, 0
        %2873 = vmatpush.msra.mxu0 0.0
        %2874 = vmatpush.msra.mxu0 0.0
        %2875 = vmatpush.msra.mxu0 0.0
        %2876 = vmatpush.msra.mxu0 0.0
        %2877 = vmatpush.msra.mxu0 0.0
        %2878 = vmatpush.msra.mxu0 0.0
        %2879 = vmatpush.msra.mxu0 0.0
        %2880 = vmatpush.msra.mxu0 0.0
        %2881 = vmatpush.msra.mxu0 %v2718
        %2882 = vmatpush.msra.mxu0 %v2717
        %2883 = vmatpush.msra.mxu0 %v2716
        %2884 = vmatpush.msra.mxu0 %v2715
        %2885 = vmatpush.msra.mxu0 %v2714
        %2886 = vmatpush.msra.mxu0 %v2713
        %2887 = vmatpush.msra.mxu0 %v2712
        %2888 = vmatpush.msra.mxu0 %v2711
        %2889 = vmatmul.f32.gmra.mxu0 %v2835
        %v2890 = vpop.f32.mrf.mxu0
        %2891 = vmatmul.f32.gmra.mxu0 %v2838
        %v2892 = vpop.f32.mrf.mxu0
        %v2893 = vadd.f32 %v2800, %v2892
        %2894 = vmatmul.f32.gmra.mxu0 %v2841
        %v2895 = vpop.f32.mrf.mxu0
        %v2896 = vadd.f32 %v2803, %v2895
        %2897 = vmatmul.f32.gmra.mxu0 %v2844
        %v2898 = vpop.f32.mrf.mxu0
        %v2899 = vadd.f32 %v2806, %v2898
        %2900 = vmatmul.f32.gmra.mxu0 %v2847
        %v2901 = vpop.f32.mrf.mxu0
        %v2902 = vadd.f32 %v2809, %v2901
        %2903 = vmatmul.f32.gmra.mxu0 %v2850
        %v2904 = vpop.f32.mrf.mxu0
        %v2905 = vadd.f32 %v2812, %v2904
        %2906 = vmatmul.f32.gmra.mxu0 %v2853
        %v2907 = vpop.f32.mrf.mxu0
        %v2908 = vadd.f32 %v2815, %v2907
        %2909 = vmatmul.f32.gmra.mxu0 %v2856
        %v2910 = vpop.f32.mrf.mxu0
        %v2911 = vadd.f32 %v2818, %v2910
        %2912 = vmatmul.f32.gmra.mxu0 %v2859
        %v2913 = vpop.f32.mrf.mxu0
        %v2914 = vadd.f32 %v2821, %v2913
        %2915 = vmatmul.f32.gmra.mxu0 %v2862
        %v2916 = vpop.f32.mrf.mxu0
        %v2917 = vadd.f32 %v2824, %v2916
        %2918 = vmatmul.f32.gmra.mxu0 %v2865
        %v2919 = vpop.f32.mrf.mxu0
        %v2920 = vadd.f32 %v2827, %v2919
        %2921 = vmatmul.f32.gmra.mxu0 %v2868
        %v2922 = vpop.f32.mrf.mxu0
        %v2923 = vadd.f32 %v2830, %v2922
        %2924 = vmatmul.f32.gmra.mxu0 %v2871
        %v2925 = vpop.f32.mrf.mxu0
        %2926 = vdwg.mxu0
        %v2927 = vld [vmem:[#allocation3 + $0xb] sm:$0xff]
        %v2928 = vld [vmem:[#allocation3 + $0x13] sm:$0xff]
        %v2929 = vld [vmem:[#allocation3 + $0x1b] sm:$0xff]
        %v2930 = vld [vmem:[#allocation3 + $0x23] sm:$0xff]
        %v2931 = vld [vmem:[#allocation3 + $0x2b] sm:$0xff]
        %v2932 = vld [vmem:[#allocation3 + $0x33] sm:$0xff]
        %v2933 = vld [vmem:[#allocation3 + $0x3b] sm:$0xff]
        %v2934 = vld [vmem:[#allocation3 + $0x43] sm:$0xff]
        %v2935 = vld [vmem:[#allocation3 + $0x4b] sm:$0xff]
        %v2936 = vld [vmem:[#allocation3 + $0x53] sm:$0xff]
        %v2937 = vld [vmem:[#allocation3 + $0x5b] sm:$0xff]
        %v2938 = vld [vmem:[#allocation3 + $0x63] sm:$0xff]
        %v2939 = vld [vmem:[#allocation3 + $0x6b] sm:$0xf]
        %s2940 = scalar_lea.vmem [#allocation7], 128
        %v2941 = vld [vmem:[%s2940] sm:$0xff]
        %v2942 = vld [vmem:[%s2940 + $0x8] sm:$0xff]
        %v2943 = vld [vmem:[%s2940 + $0x10] sm:$0xff]
        %v2944 = vld [vmem:[%s2940 + $0x18] sm:$0xff]
        %v2945 = vld [vmem:[%s2940 + $0x20] sm:$0xff]
        %v2946 = vld [vmem:[%s2940 + $0x28] sm:$0xff]
        %v2947 = vld [vmem:[%s2940 + $0x30] sm:$0xff]
        %v2948 = vld [vmem:[%s2940 + $0x38] sm:$0xff]
        %v2950 = vsel %vm2176, %v2927, 0
        %v2953 = vsel %vm2176, %v2928, 0
        %v2956 = vsel %vm2176, %v2929, 0
        %v2959 = vsel %vm2176, %v2930, 0
        %v2962 = vsel %vm2176, %v2931, 0
        %v2965 = vsel %vm2176, %v2932, 0
        %v2968 = vsel %vm2176, %v2933, 0
        %v2971 = vsel %vm2176, %v2934, 0
        %v2974 = vsel %vm2176, %v2935, 0
        %v2977 = vsel %vm2176, %v2936, 0
        %v2980 = vsel %vm2176, %v2937, 0
        %v2983 = vsel %vm2176, %v2938, 0
        %v2986 = vsel %vm2176, %v2939, 0
        %2988 = vmatpush.msra.mxu0 0.0
        %2989 = vmatpush.msra.mxu0 0.0
        %2990 = vmatpush.msra.mxu0 0.0
        %2991 = vmatpush.msra.mxu0 0.0
        %2992 = vmatpush.msra.mxu0 0.0
        %2993 = vmatpush.msra.mxu0 0.0
        %2994 = vmatpush.msra.mxu0 0.0
        %2995 = vmatpush.msra.mxu0 0.0
        %2996 = vmatpush.msra.mxu0 %v2948
        %2997 = vmatpush.msra.mxu0 %v2947
        %2998 = vmatpush.msra.mxu0 %v2946
        %2999 = vmatpush.msra.mxu0 %v2945
        %3000 = vmatpush.msra.mxu0 %v2944
        %3001 = vmatpush.msra.mxu0 %v2943
        %3002 = vmatpush.msra.mxu0 %v2942
        %3003 = vmatpush.msra.mxu0 %v2941
        %3004 = vmatmul.f32.gmra.mxu0 %v2950
        %v3005 = vpop.f32.mrf.mxu0
        %3006 = vmatmul.f32.gmra.mxu0 %v2953
        %v3007 = vpop.f32.mrf.mxu0
        %v3008 = vadd.f32 0.0, %v3007
        %3009 = vmatmul.f32.gmra.mxu0 %v2956
        %v3010 = vpop.f32.mrf.mxu0
        %v3011 = vadd.f32 0.0, %v3010
        %3012 = vmatmul.f32.gmra.mxu0 %v2959
        %v3013 = vpop.f32.mrf.mxu0
        %v3014 = vadd.f32 0.0, %v3013
        %3015 = vmatmul.f32.gmra.mxu0 %v2962
        %v3016 = vpop.f32.mrf.mxu0
        %v3017 = vadd.f32 0.0, %v3016
        %3018 = vmatmul.f32.gmra.mxu0 %v2965
        %v3019 = vpop.f32.mrf.mxu0
        %v3020 = vadd.f32 0.0, %v3019
        %3021 = vmatmul.f32.gmra.mxu0 %v2968
        %v3022 = vpop.f32.mrf.mxu0
        %v3023 = vadd.f32 0.0, %v3022
        %3024 = vmatmul.f32.gmra.mxu0 %v2971
        %v3025 = vpop.f32.mrf.mxu0
        %v3026 = vadd.f32 0.0, %v3025
        %3027 = vmatmul.f32.gmra.mxu0 %v2974
        %v3028 = vpop.f32.mrf.mxu0
        %v3029 = vadd.f32 0.0, %v3028
        %3030 = vmatmul.f32.gmra.mxu0 %v2977
        %v3031 = vpop.f32.mrf.mxu0
        %v3032 = vadd.f32 0.0, %v3031
        %3033 = vmatmul.f32.gmra.mxu0 %v2980
        %v3034 = vpop.f32.mrf.mxu0
        %v3035 = vadd.f32 0.0, %v3034
        %3036 = vmatmul.f32.gmra.mxu0 %v2983
        %v3037 = vpop.f32.mrf.mxu0
        %v3038 = vadd.f32 0.0, %v3037
        %3039 = vmatmul.f32.gmra.mxu0 %v2986
        %v3040 = vpop.f32.mrf.mxu0
        %3041 = vdwg.mxu0
        %v3042 = vadd.f32 %v2893, %v3008
        %v3043 = vadd.f32 %v2896, %v3011
        %v3044 = vadd.f32 %v2899, %v3014
        %v3045 = vadd.f32 %v2902, %v3017
        %v3046 = vadd.f32 %v2905, %v3020
        %v3047 = vadd.f32 %v2908, %v3023
        %v3048 = vadd.f32 %v2911, %v3026
        %v3049 = vadd.f32 %v2914, %v3029
        %v3050 = vadd.f32 %v2917, %v3032
        %v3051 = vadd.f32 %v2920, %v3035
        %v3052 = vadd.f32 %v2923, %v3038
        %v3053 = vld [vmem:[#allocation3 + $0x13] sm:$0xff]
        %v3054 = vld [vmem:[#allocation3 + $0x1b] sm:$0xff]
        %v3055 = vld [vmem:[#allocation3 + $0x23] sm:$0xff]
        %v3056 = vld [vmem:[#allocation3 + $0x2b] sm:$0xff]
        %v3057 = vld [vmem:[#allocation3 + $0x33] sm:$0xff]
        %v3058 = vld [vmem:[#allocation3 + $0x3b] sm:$0xff]
        %v3059 = vld [vmem:[#allocation3 + $0x43] sm:$0xff]
        %v3060 = vld [vmem:[#allocation3 + $0x4b] sm:$0xff]
        %v3061 = vld [vmem:[#allocation3 + $0x53] sm:$0xff]
        %v3062 = vld [vmem:[#allocation3 + $0x5b] sm:$0xff]
        %v3063 = vld [vmem:[#allocation3 + $0x63] sm:$0xff]
        %v3064 = vld [vmem:[#allocation3 + $0x6b] sm:$0xff]
        %v3065 = vld [vmem:[#allocation3 + $0x73] sm:$0xf]
        %s3066 = scalar_lea.vmem [#allocation7], 192
        %v3067 = vld [vmem:[%s3066] sm:$0xff]
        %v3068 = vld [vmem:[%s3066 + $0x8] sm:$0xff]
        %v3069 = vld [vmem:[%s3066 + $0x10] sm:$0xff]
        %v3070 = vld [vmem:[%s3066 + $0x18] sm:$0xff]
        %v3071 = vld [vmem:[%s3066 + $0x20] sm:$0xff]
        %v3072 = vld [vmem:[%s3066 + $0x28] sm:$0xff]
        %v3073 = vld [vmem:[%s3066 + $0x30] sm:$0xff]
        %v3074 = vld [vmem:[%s3066 + $0x38] sm:$0xff]
        %v3076 = vsel %vm2176, %v3053, 0
        %v3079 = vsel %vm2176, %v3054, 0
        %v3082 = vsel %vm2176, %v3055, 0
        %v3085 = vsel %vm2176, %v3056, 0
        %v3088 = vsel %vm2176, %v3057, 0
        %v3091 = vsel %vm2176, %v3058, 0
        %v3094 = vsel %vm2176, %v3059, 0
        %v3097 = vsel %vm2176, %v3060, 0
        %v3100 = vsel %vm2176, %v3061, 0
        %v3103 = vsel %vm2176, %v3062, 0
        %v3106 = vsel %vm2176, %v3063, 0
        %v3109 = vsel %vm2176, %v3064, 0
        %v3112 = vsel %vm2176, %v3065, 0
        %3114 = vmatpush.msra.mxu0 0.0
        %3115 = vmatpush.msra.mxu0 0.0
        %3116 = vmatpush.msra.mxu0 0.0
        %3117 = vmatpush.msra.mxu0 0.0
        %3118 = vmatpush.msra.mxu0 0.0
        %3119 = vmatpush.msra.mxu0 0.0
        %3120 = vmatpush.msra.mxu0 0.0
        %3121 = vmatpush.msra.mxu0 0.0
        %3122 = vmatpush.msra.mxu0 %v3074
        %3123 = vmatpush.msra.mxu0 %v3073
        %3124 = vmatpush.msra.mxu0 %v3072
        %3125 = vmatpush.msra.mxu0 %v3071
        %3126 = vmatpush.msra.mxu0 %v3070
        %3127 = vmatpush.msra.mxu0 %v3069
        %3128 = vmatpush.msra.mxu0 %v3068
        %3129 = vmatpush.msra.mxu0 %v3067
        %3130 = vmatmul.f32.gmra.mxu0 %v3076
        %v3131 = vpop.f32.mrf.mxu0
        %3132 = vmatmul.f32.gmra.mxu0 %v3079
        %v3133 = vpop.f32.mrf.mxu0
        %v3134 = vadd.f32 0.0, %v3133
        %3135 = vmatmul.f32.gmra.mxu0 %v3082
        %v3136 = vpop.f32.mrf.mxu0
        %v3137 = vadd.f32 0.0, %v3136
        %3138 = vmatmul.f32.gmra.mxu0 %v3085
        %v3139 = vpop.f32.mrf.mxu0
        %v3140 = vadd.f32 0.0, %v3139
        %3141 = vmatmul.f32.gmra.mxu0 %v3088
        %v3142 = vpop.f32.mrf.mxu0
        %v3143 = vadd.f32 0.0, %v3142
        %3144 = vmatmul.f32.gmra.mxu0 %v3091
        %v3145 = vpop.f32.mrf.mxu0
        %v3146 = vadd.f32 0.0, %v3145
        %3147 = vmatmul.f32.gmra.mxu0 %v3094
        %v3148 = vpop.f32.mrf.mxu0
        %v3149 = vadd.f32 0.0, %v3148
        %3150 = vmatmul.f32.gmra.mxu0 %v3097
        %v3151 = vpop.f32.mrf.mxu0
        %v3152 = vadd.f32 0.0, %v3151
        %3153 = vmatmul.f32.gmra.mxu0 %v3100
        %v3154 = vpop.f32.mrf.mxu0
        %v3155 = vadd.f32 0.0, %v3154
        %3156 = vmatmul.f32.gmra.mxu0 %v3103
        %v3157 = vpop.f32.mrf.mxu0
        %v3158 = vadd.f32 0.0, %v3157
        %3159 = vmatmul.f32.gmra.mxu0 %v3106
        %v3160 = vpop.f32.mrf.mxu0
        %v3161 = vadd.f32 0.0, %v3160
        %3162 = vmatmul.f32.gmra.mxu0 %v3109
        %v3163 = vpop.f32.mrf.mxu0
        %v3164 = vadd.f32 0.0, %v3163
        %3165 = vmatmul.f32.gmra.mxu0 %v3112
        %v3166 = vpop.f32.mrf.mxu0
        %3167 = vdwg.mxu0
        %v3168 = vadd.f32 %v3042, %v3134
        %v3169 = vadd.f32 %v3043, %v3137
        %v3170 = vadd.f32 %v3044, %v3140
        %v3171 = vadd.f32 %v3045, %v3143
        %v3172 = vadd.f32 %v3046, %v3146
        %v3173 = vadd.f32 %v3047, %v3149
        %v3174 = vadd.f32 %v3048, %v3152
        %v3175 = vadd.f32 %v3049, %v3155
        %v3176 = vadd.f32 %v3050, %v3158
        %v3177 = vadd.f32 %v3051, %v3161
        %v3178 = vadd.f32 %v3052, %v3164
        %v3179 = vld [vmem:[#allocation3 + $0x14] sm:$0xff]
        %v3180 = vld [vmem:[#allocation3 + $0x1c] sm:$0xff]
        %v3181 = vld [vmem:[#allocation3 + $0x24] sm:$0xff]
        %v3182 = vld [vmem:[#allocation3 + $0x2c] sm:$0xff]
        %v3183 = vld [vmem:[#allocation3 + $0x34] sm:$0xff]
        %v3184 = vld [vmem:[#allocation3 + $0x3c] sm:$0xff]
        %v3185 = vld [vmem:[#allocation3 + $0x44] sm:$0xff]
        %v3186 = vld [vmem:[#allocation3 + $0x4c] sm:$0xff]
        %v3187 = vld [vmem:[#allocation3 + $0x54] sm:$0xff]
        %v3188 = vld [vmem:[#allocation3 + $0x5c] sm:$0xff]
        %v3189 = vld [vmem:[#allocation3 + $0x64] sm:$0xff]
        %v3190 = vld [vmem:[#allocation3 + $0x6c] sm:$0xff]
        %v3191 = vld [vmem:[#allocation3 + $0x74] sm:$0xf]
        %s3192 = scalar_lea.vmem [#allocation7], 256
        %v3193 = vld [vmem:[%s3192] sm:$0xff]
        %v3194 = vld [vmem:[%s3192 + $0x8] sm:$0xff]
        %v3195 = vld [vmem:[%s3192 + $0x10] sm:$0xff]
        %v3196 = vld [vmem:[%s3192 + $0x18] sm:$0xff]
        %v3197 = vld [vmem:[%s3192 + $0x20] sm:$0xff]
        %v3198 = vld [vmem:[%s3192 + $0x28] sm:$0xff]
        %v3199 = vld [vmem:[%s3192 + $0x30] sm:$0xff]
        %v3200 = vld [vmem:[%s3192 + $0x38] sm:$0xff]
        %v3202 = vsel %vm2176, %v3179, 0
        %v3205 = vsel %vm2176, %v3180, 0
        %v3208 = vsel %vm2176, %v3181, 0
        %v3211 = vsel %vm2176, %v3182, 0
        %v3214 = vsel %vm2176, %v3183, 0
        %v3217 = vsel %vm2176, %v3184, 0
        %v3220 = vsel %vm2176, %v3185, 0
        %v3223 = vsel %vm2176, %v3186, 0
        %v3226 = vsel %vm2176, %v3187, 0
        %v3229 = vsel %vm2176, %v3188, 0
        %v3232 = vsel %vm2176, %v3189, 0
        %v3235 = vsel %vm2176, %v3190, 0
        %v3238 = vsel %vm2176, %v3191, 0
        %3240 = vmatpush.msra.mxu0 0.0
        %3241 = vmatpush.msra.mxu0 0.0
        %3242 = vmatpush.msra.mxu0 0.0
        %3243 = vmatpush.msra.mxu0 0.0
        %3244 = vmatpush.msra.mxu0 0.0
        %3245 = vmatpush.msra.mxu0 0.0
        %3246 = vmatpush.msra.mxu0 0.0
        %3247 = vmatpush.msra.mxu0 0.0
        %3248 = vmatpush.msra.mxu0 %v3200
        %3249 = vmatpush.msra.mxu0 %v3199
        %3250 = vmatpush.msra.mxu0 %v3198
        %3251 = vmatpush.msra.mxu0 %v3197
        %3252 = vmatpush.msra.mxu0 %v3196
        %3253 = vmatpush.msra.mxu0 %v3195
        %3254 = vmatpush.msra.mxu0 %v3194
        %3255 = vmatpush.msra.mxu0 %v3193
        %3256 = vmatmul.f32.gmra.mxu0 %v3202
        %v3257 = vpop.f32.mrf.mxu0
        %3258 = vmatmul.f32.gmra.mxu0 %v3205
        %v3259 = vpop.f32.mrf.mxu0
        %v3260 = vadd.f32 0.0, %v3259
        %3261 = vmatmul.f32.gmra.mxu0 %v3208
        %v3262 = vpop.f32.mrf.mxu0
        %v3263 = vadd.f32 0.0, %v3262
        %3264 = vmatmul.f32.gmra.mxu0 %v3211
        %v3265 = vpop.f32.mrf.mxu0
        %v3266 = vadd.f32 0.0, %v3265
        %3267 = vmatmul.f32.gmra.mxu0 %v3214
        %v3268 = vpop.f32.mrf.mxu0
        %v3269 = vadd.f32 0.0, %v3268
        %3270 = vmatmul.f32.gmra.mxu0 %v3217
        %v3271 = vpop.f32.mrf.mxu0
        %v3272 = vadd.f32 0.0, %v3271
        %3273 = vmatmul.f32.gmra.mxu0 %v3220
        %v3274 = vpop.f32.mrf.mxu0
        %v3275 = vadd.f32 0.0, %v3274
        %3276 = vmatmul.f32.gmra.mxu0 %v3223
        %v3277 = vpop.f32.mrf.mxu0
        %v3278 = vadd.f32 0.0, %v3277
        %3279 = vmatmul.f32.gmra.mxu0 %v3226
        %v3280 = vpop.f32.mrf.mxu0
        %v3281 = vadd.f32 0.0, %v3280
        %3282 = vmatmul.f32.gmra.mxu0 %v3229
        %v3283 = vpop.f32.mrf.mxu0
        %v3284 = vadd.f32 0.0, %v3283
        %3285 = vmatmul.f32.gmra.mxu0 %v3232
        %v3286 = vpop.f32.mrf.mxu0
        %v3287 = vadd.f32 0.0, %v3286
        %3288 = vmatmul.f32.gmra.mxu0 %v3235
        %v3289 = vpop.f32.mrf.mxu0
        %v3290 = vadd.f32 0.0, %v3289
        %3291 = vmatmul.f32.gmra.mxu0 %v3238
        %v3292 = vpop.f32.mrf.mxu0
        %3293 = vdwg.mxu0
        %v3294 = vadd.f32 %v3168, %v3260
        %v3295 = vadd.f32 %v3169, %v3263
        %v3296 = vadd.f32 %v3170, %v3266
        %v3297 = vadd.f32 %v3171, %v3269
        %v3298 = vadd.f32 %v3172, %v3272
        %v3299 = vadd.f32 %v3173, %v3275
        %v3300 = vadd.f32 %v3174, %v3278
        %v3301 = vadd.f32 %v3175, %v3281
        %v3302 = vadd.f32 %v3176, %v3284
        %v3303 = vadd.f32 %v3177, %v3287
        %v3304 = vadd.f32 %v3178, %v3290
        %v3305 = vld [vmem:[#allocation3 + $0x15] sm:$0xff]
        %v3306 = vld [vmem:[#allocation3 + $0x1d] sm:$0xff]
        %v3307 = vld [vmem:[#allocation3 + $0x25] sm:$0xff]
        %v3308 = vld [vmem:[#allocation3 + $0x2d] sm:$0xff]
        %v3309 = vld [vmem:[#allocation3 + $0x35] sm:$0xff]
        %v3310 = vld [vmem:[#allocation3 + $0x3d] sm:$0xff]
        %v3311 = vld [vmem:[#allocation3 + $0x45] sm:$0xff]
        %v3312 = vld [vmem:[#allocation3 + $0x4d] sm:$0xff]
        %v3313 = vld [vmem:[#allocation3 + $0x55] sm:$0xff]
        %v3314 = vld [vmem:[#allocation3 + $0x5d] sm:$0xff]
        %v3315 = vld [vmem:[#allocation3 + $0x65] sm:$0xff]
        %v3316 = vld [vmem:[#allocation3 + $0x6d] sm:$0xff]
        %v3317 = vld [vmem:[#allocation3 + $0x75] sm:$0xf]
        %s3318 = scalar_lea.vmem [#allocation7], 320
        %v3319 = vld [vmem:[%s3318] sm:$0xff]
        %v3320 = vld [vmem:[%s3318 + $0x8] sm:$0xff]
        %v3321 = vld [vmem:[%s3318 + $0x10] sm:$0xff]
        %v3322 = vld [vmem:[%s3318 + $0x18] sm:$0xff]
        %v3323 = vld [vmem:[%s3318 + $0x20] sm:$0xff]
        %v3324 = vld [vmem:[%s3318 + $0x28] sm:$0xff]
        %v3325 = vld [vmem:[%s3318 + $0x30] sm:$0xff]
        %v3326 = vld [vmem:[%s3318 + $0x38] sm:$0xff]
        %v3328 = vsel %vm2176, %v3305, 0
        %v3331 = vsel %vm2176, %v3306, 0
        %v3334 = vsel %vm2176, %v3307, 0
        %v3337 = vsel %vm2176, %v3308, 0
        %v3340 = vsel %vm2176, %v3309, 0
        %v3343 = vsel %vm2176, %v3310, 0
        %v3346 = vsel %vm2176, %v3311, 0
        %v3349 = vsel %vm2176, %v3312, 0
        %v3352 = vsel %vm2176, %v3313, 0
        %v3355 = vsel %vm2176, %v3314, 0
        %v3358 = vsel %vm2176, %v3315, 0
        %v3361 = vsel %vm2176, %v3316, 0
        %v3364 = vsel %vm2176, %v3317, 0
        %3366 = vmatpush.msra.mxu0 0.0
        %3367 = vmatpush.msra.mxu0 0.0
        %3368 = vmatpush.msra.mxu0 0.0
        %3369 = vmatpush.msra.mxu0 0.0
        %3370 = vmatpush.msra.mxu0 0.0
        %3371 = vmatpush.msra.mxu0 0.0
        %3372 = vmatpush.msra.mxu0 0.0
        %3373 = vmatpush.msra.mxu0 0.0
        %3374 = vmatpush.msra.mxu0 %v3326
        %3375 = vmatpush.msra.mxu0 %v3325
        %3376 = vmatpush.msra.mxu0 %v3324
        %3377 = vmatpush.msra.mxu0 %v3323
        %3378 = vmatpush.msra.mxu0 %v3322
        %3379 = vmatpush.msra.mxu0 %v3321
        %3380 = vmatpush.msra.mxu0 %v3320
        %3381 = vmatpush.msra.mxu0 %v3319
        %3382 = vmatmul.f32.gmra.mxu0 %v3328
        %v3383 = vpop.f32.mrf.mxu0
        %3384 = vmatmul.f32.gmra.mxu0 %v3331
        %v3385 = vpop.f32.mrf.mxu0
        %v3386 = vadd.f32 0.0, %v3385
        %3387 = vmatmul.f32.gmra.mxu0 %v3334
        %v3388 = vpop.f32.mrf.mxu0
        %v3389 = vadd.f32 0.0, %v3388
        %3390 = vmatmul.f32.gmra.mxu0 %v3337
        %v3391 = vpop.f32.mrf.mxu0
        %v3392 = vadd.f32 0.0, %v3391
        %3393 = vmatmul.f32.gmra.mxu0 %v3340
        %v3394 = vpop.f32.mrf.mxu0
        %v3395 = vadd.f32 0.0, %v3394
        %3396 = vmatmul.f32.gmra.mxu0 %v3343
        %v3397 = vpop.f32.mrf.mxu0
        %v3398 = vadd.f32 0.0, %v3397
        %3399 = vmatmul.f32.gmra.mxu0 %v3346
        %v3400 = vpop.f32.mrf.mxu0
        %v3401 = vadd.f32 0.0, %v3400
        %3402 = vmatmul.f32.gmra.mxu0 %v3349
        %v3403 = vpop.f32.mrf.mxu0
        %v3404 = vadd.f32 0.0, %v3403
        %3405 = vmatmul.f32.gmra.mxu0 %v3352
        %v3406 = vpop.f32.mrf.mxu0
        %v3407 = vadd.f32 0.0, %v3406
        %3408 = vmatmul.f32.gmra.mxu0 %v3355
        %v3409 = vpop.f32.mrf.mxu0
        %v3410 = vadd.f32 0.0, %v3409
        %3411 = vmatmul.f32.gmra.mxu0 %v3358
        %v3412 = vpop.f32.mrf.mxu0
        %v3413 = vadd.f32 0.0, %v3412
        %3414 = vmatmul.f32.gmra.mxu0 %v3361
        %v3415 = vpop.f32.mrf.mxu0
        %v3416 = vadd.f32 0.0, %v3415
        %3417 = vmatmul.f32.gmra.mxu0 %v3364
        %v3418 = vpop.f32.mrf.mxu0
        %3419 = vdwg.mxu0
        %v3420 = vadd.f32 %v3294, %v3386
        %v3421 = vadd.f32 %v3295, %v3389
        %v3422 = vadd.f32 %v3296, %v3392
        %v3423 = vadd.f32 %v3297, %v3395
        %v3424 = vadd.f32 %v3298, %v3398
        %v3425 = vadd.f32 %v3299, %v3401
        %v3426 = vadd.f32 %v3300, %v3404
        %v3427 = vadd.f32 %v3301, %v3407
        %v3428 = vadd.f32 %v3302, %v3410
        %v3429 = vadd.f32 %v3303, %v3413
        %v3430 = vadd.f32 %v3304, %v3416
        %v3431 = vld [vmem:[#allocation3 + $0x1d] sm:$0xff]
        %v3432 = vld [vmem:[#allocation3 + $0x25] sm:$0xff]
        %v3433 = vld [vmem:[#allocation3 + $0x2d] sm:$0xff]
        %v3434 = vld [vmem:[#allocation3 + $0x35] sm:$0xff]
        %v3435 = vld [vmem:[#allocation3 + $0x3d] sm:$0xff]
        %v3436 = vld [vmem:[#allocation3 + $0x45] sm:$0xff]
        %v3437 = vld [vmem:[#allocation3 + $0x4d] sm:$0xff]
        %v3438 = vld [vmem:[#allocation3 + $0x55] sm:$0xff]
        %v3439 = vld [vmem:[#allocation3 + $0x5d] sm:$0xff]
        %v3440 = vld [vmem:[#allocation3 + $0x65] sm:$0xff]
        %v3441 = vld [vmem:[#allocation3 + $0x6d] sm:$0xff]
        %v3442 = vld [vmem:[#allocation3 + $0x75] sm:$0xff]
        %v3443 = vld [vmem:[#allocation3 + $0x7d] sm:$0xf]
        %s3444 = scalar_lea.vmem [#allocation7], 384
        %v3445 = vld [vmem:[%s3444] sm:$0xff]
        %v3446 = vld [vmem:[%s3444 + $0x8] sm:$0xff]
        %v3447 = vld [vmem:[%s3444 + $0x10] sm:$0xff]
        %v3448 = vld [vmem:[%s3444 + $0x18] sm:$0xff]
        %v3449 = vld [vmem:[%s3444 + $0x20] sm:$0xff]
        %v3450 = vld [vmem:[%s3444 + $0x28] sm:$0xff]
        %v3451 = vld [vmem:[%s3444 + $0x30] sm:$0xff]
        %v3452 = vld [vmem:[%s3444 + $0x38] sm:$0xff]
        %v3454 = vsel %vm2176, %v3431, 0
        %v3457 = vsel %vm2176, %v3432, 0
        %v3460 = vsel %vm2176, %v3433, 0
        %v3463 = vsel %vm2176, %v3434, 0
        %v3466 = vsel %vm2176, %v3435, 0
        %v3469 = vsel %vm2176, %v3436, 0
        %v3472 = vsel %vm2176, %v3437, 0
        %v3475 = vsel %vm2176, %v3438, 0
        %v3478 = vsel %vm2176, %v3439, 0
        %v3481 = vsel %vm2176, %v3440, 0
        %v3484 = vsel %vm2176, %v3441, 0
        %v3487 = vsel %vm2176, %v3442, 0
        %v3490 = vsel %vm2176, %v3443, 0
        %3492 = vmatpush.msra.mxu0 0.0
        %3493 = vmatpush.msra.mxu0 0.0
        %3494 = vmatpush.msra.mxu0 0.0
        %3495 = vmatpush.msra.mxu0 0.0
        %3496 = vmatpush.msra.mxu0 0.0
        %3497 = vmatpush.msra.mxu0 0.0
        %3498 = vmatpush.msra.mxu0 0.0
        %3499 = vmatpush.msra.mxu0 0.0
        %3500 = vmatpush.msra.mxu0 %v3452
        %3501 = vmatpush.msra.mxu0 %v3451
        %3502 = vmatpush.msra.mxu0 %v3450
        %3503 = vmatpush.msra.mxu0 %v3449
        %3504 = vmatpush.msra.mxu0 %v3448
        %3505 = vmatpush.msra.mxu0 %v3447
        %3506 = vmatpush.msra.mxu0 %v3446
        %3507 = vmatpush.msra.mxu0 %v3445
        %3508 = vmatmul.f32.gmra.mxu0 %v3454
        %v3509 = vpop.f32.mrf.mxu0
        %3510 = vmatmul.f32.gmra.mxu0 %v3457
        %v3511 = vpop.f32.mrf.mxu0
        %v3512 = vadd.f32 0.0, %v3511
        %3513 = vmatmul.f32.gmra.mxu0 %v3460
        %v3514 = vpop.f32.mrf.mxu0
        %v3515 = vadd.f32 0.0, %v3514
        %3516 = vmatmul.f32.gmra.mxu0 %v3463
        %v3517 = vpop.f32.mrf.mxu0
        %v3518 = vadd.f32 0.0, %v3517
        %3519 = vmatmul.f32.gmra.mxu0 %v3466
        %v3520 = vpop.f32.mrf.mxu0
        %v3521 = vadd.f32 0.0, %v3520
        %3522 = vmatmul.f32.gmra.mxu0 %v3469
        %v3523 = vpop.f32.mrf.mxu0
        %v3524 = vadd.f32 0.0, %v3523
        %3525 = vmatmul.f32.gmra.mxu0 %v3472
        %v3526 = vpop.f32.mrf.mxu0
        %v3527 = vadd.f32 0.0, %v3526
        %3528 = vmatmul.f32.gmra.mxu0 %v3475
        %v3529 = vpop.f32.mrf.mxu0
        %v3530 = vadd.f32 0.0, %v3529
        %3531 = vmatmul.f32.gmra.mxu0 %v3478
        %v3532 = vpop.f32.mrf.mxu0
        %v3533 = vadd.f32 0.0, %v3532
        %3534 = vmatmul.f32.gmra.mxu0 %v3481
        %v3535 = vpop.f32.mrf.mxu0
        %v3536 = vadd.f32 0.0, %v3535
        %3537 = vmatmul.f32.gmra.mxu0 %v3484
        %v3538 = vpop.f32.mrf.mxu0
        %v3539 = vadd.f32 0.0, %v3538
        %3540 = vmatmul.f32.gmra.mxu0 %v3487
        %v3541 = vpop.f32.mrf.mxu0
        %v3542 = vadd.f32 0.0, %v3541
        %3543 = vmatmul.f32.gmra.mxu0 %v3490
        %v3544 = vpop.f32.mrf.mxu0
        %3545 = vdwg.mxu0
        %v3546 = vadd.f32 %v3420, %v3512
        %v3547 = vadd.f32 %v3421, %v3515
        %v3548 = vadd.f32 %v3422, %v3518
        %v3549 = vadd.f32 %v3423, %v3521
        %v3550 = vadd.f32 %v3424, %v3524
        %v3551 = vadd.f32 %v3425, %v3527
        %v3552 = vadd.f32 %v3426, %v3530
        %v3553 = vadd.f32 %v3427, %v3533
        %v3554 = vadd.f32 %v3428, %v3536
        %v3555 = vadd.f32 %v3429, %v3539
        %v3556 = vadd.f32 %v3430, %v3542
        %v3557 = vld [vmem:[#allocation3 + $0x1e] sm:$0xff]
        %v3558 = vld [vmem:[#allocation3 + $0x26] sm:$0xff]
        %v3559 = vld [vmem:[#allocation3 + $0x2e] sm:$0xff]
        %v3560 = vld [vmem:[#allocation3 + $0x36] sm:$0xff]
        %v3561 = vld [vmem:[#allocation3 + $0x3e] sm:$0xff]
        %v3562 = vld [vmem:[#allocation3 + $0x46] sm:$0xff]
        %v3563 = vld [vmem:[#allocation3 + $0x4e] sm:$0xff]
        %v3564 = vld [vmem:[#allocation3 + $0x56] sm:$0xff]
        %v3565 = vld [vmem:[#allocation3 + $0x5e] sm:$0xff]
        %v3566 = vld [vmem:[#allocation3 + $0x66] sm:$0xff]
        %v3567 = vld [vmem:[#allocation3 + $0x6e] sm:$0xff]
        %v3568 = vld [vmem:[#allocation3 + $0x76] sm:$0xff]
        %v3569 = vld [vmem:[#allocation3 + $0x7e] sm:$0xf]
        %s3570 = scalar_lea.vmem [#allocation7], 448
        %v3571 = vld [vmem:[%s3570] sm:$0xff]
        %v3572 = vld [vmem:[%s3570 + $0x8] sm:$0xff]
        %v3573 = vld [vmem:[%s3570 + $0x10] sm:$0xff]
        %v3574 = vld [vmem:[%s3570 + $0x18] sm:$0xff]
        %v3575 = vld [vmem:[%s3570 + $0x20] sm:$0xff]
        %v3576 = vld [vmem:[%s3570 + $0x28] sm:$0xff]
        %v3577 = vld [vmem:[%s3570 + $0x30] sm:$0xff]
        %v3578 = vld [vmem:[%s3570 + $0x38] sm:$0xff]
        %v3580 = vsel %vm2176, %v3557, 0
        %v3583 = vsel %vm2176, %v3558, 0
        %v3586 = vsel %vm2176, %v3559, 0
        %v3589 = vsel %vm2176, %v3560, 0
        %v3592 = vsel %vm2176, %v3561, 0
        %v3595 = vsel %vm2176, %v3562, 0
        %v3598 = vsel %vm2176, %v3563, 0
        %v3601 = vsel %vm2176, %v3564, 0
        %v3604 = vsel %vm2176, %v3565, 0
        %v3607 = vsel %vm2176, %v3566, 0
        %v3610 = vsel %vm2176, %v3567, 0
        %v3613 = vsel %vm2176, %v3568, 0
        %v3616 = vsel %vm2176, %v3569, 0
        %3618 = vmatpush.msra.mxu0 0.0
        %3619 = vmatpush.msra.mxu0 0.0
        %3620 = vmatpush.msra.mxu0 0.0
        %3621 = vmatpush.msra.mxu0 0.0
        %3622 = vmatpush.msra.mxu0 0.0
        %3623 = vmatpush.msra.mxu0 0.0
        %3624 = vmatpush.msra.mxu0 0.0
        %3625 = vmatpush.msra.mxu0 0.0
        %3626 = vmatpush.msra.mxu0 %v3578
        %3627 = vmatpush.msra.mxu0 %v3577
        %3628 = vmatpush.msra.mxu0 %v3576
        %3629 = vmatpush.msra.mxu0 %v3575
        %3630 = vmatpush.msra.mxu0 %v3574
        %3631 = vmatpush.msra.mxu0 %v3573
        %3632 = vmatpush.msra.mxu0 %v3572
        %3633 = vmatpush.msra.mxu0 %v3571
        %3634 = vmatmul.f32.gmra.mxu0 %v3580
        %v3635 = vpop.f32.mrf.mxu0
        %3636 = vmatmul.f32.gmra.mxu0 %v3583
        %v3637 = vpop.f32.mrf.mxu0
        %v3638 = vadd.f32 0.0, %v3637
        %3639 = vmatmul.f32.gmra.mxu0 %v3586
        %v3640 = vpop.f32.mrf.mxu0
        %v3641 = vadd.f32 0.0, %v3640
        %3642 = vmatmul.f32.gmra.mxu0 %v3589
        %v3643 = vpop.f32.mrf.mxu0
        %v3644 = vadd.f32 0.0, %v3643
        %3645 = vmatmul.f32.gmra.mxu0 %v3592
        %v3646 = vpop.f32.mrf.mxu0
        %v3647 = vadd.f32 0.0, %v3646
        %3648 = vmatmul.f32.gmra.mxu0 %v3595
        %v3649 = vpop.f32.mrf.mxu0
        %v3650 = vadd.f32 0.0, %v3649
        %3651 = vmatmul.f32.gmra.mxu0 %v3598
        %v3652 = vpop.f32.mrf.mxu0
        %v3653 = vadd.f32 0.0, %v3652
        %3654 = vmatmul.f32.gmra.mxu0 %v3601
        %v3655 = vpop.f32.mrf.mxu0
        %v3656 = vadd.f32 0.0, %v3655
        %3657 = vmatmul.f32.gmra.mxu0 %v3604
        %v3658 = vpop.f32.mrf.mxu0
        %v3659 = vadd.f32 0.0, %v3658
        %3660 = vmatmul.f32.gmra.mxu0 %v3607
        %v3661 = vpop.f32.mrf.mxu0
        %v3662 = vadd.f32 0.0, %v3661
        %3663 = vmatmul.f32.gmra.mxu0 %v3610
        %v3664 = vpop.f32.mrf.mxu0
        %v3665 = vadd.f32 0.0, %v3664
        %3666 = vmatmul.f32.gmra.mxu0 %v3613
        %v3667 = vpop.f32.mrf.mxu0
        %v3668 = vadd.f32 0.0, %v3667
        %3669 = vmatmul.f32.gmra.mxu0 %v3616
        %v3670 = vpop.f32.mrf.mxu0
        %3671 = vdwg.mxu0
        %v3672 = vadd.f32 %v3546, %v3638
        %v3673 = vadd.f32 %v3547, %v3641
        %v3674 = vadd.f32 %v3548, %v3644
        %v3675 = vadd.f32 %v3549, %v3647
        %v3676 = vadd.f32 %v3550, %v3650
        %v3677 = vadd.f32 %v3551, %v3653
        %v3678 = vadd.f32 %v3552, %v3656
        %v3679 = vadd.f32 %v3553, %v3659
        %v3680 = vadd.f32 %v3554, %v3662
        %v3681 = vadd.f32 %v3555, %v3665
        %v3682 = vadd.f32 %v3556, %v3668
        %v3683 = vld [vmem:[#allocation3 + $0x1f] sm:$0xff]
        %v3684 = vld [vmem:[#allocation3 + $0x27] sm:$0xff]
        %v3685 = vld [vmem:[#allocation3 + $0x2f] sm:$0xff]
        %v3686 = vld [vmem:[#allocation3 + $0x37] sm:$0xff]
        %v3687 = vld [vmem:[#allocation3 + $0x3f] sm:$0xff]
        %v3688 = vld [vmem:[#allocation3 + $0x47] sm:$0xff]
        %v3689 = vld [vmem:[#allocation3 + $0x4f] sm:$0xff]
        %v3690 = vld [vmem:[#allocation3 + $0x57] sm:$0xff]
        %v3691 = vld [vmem:[#allocation3 + $0x5f] sm:$0xff]
        %v3692 = vld [vmem:[#allocation3 + $0x67] sm:$0xff]
        %v3693 = vld [vmem:[#allocation3 + $0x6f] sm:$0xff]
        %v3694 = vld [vmem:[#allocation3 + $0x77] sm:$0xff]
        %v3695 = vld [vmem:[#allocation3 + $0x7f] sm:$0xf]
        %s3696 = scalar_lea.vmem [#allocation7], 512
        %v3697 = vld [vmem:[%s3696] sm:$0xff]
        %v3698 = vld [vmem:[%s3696 + $0x8] sm:$0xff]
        %v3699 = vld [vmem:[%s3696 + $0x10] sm:$0xff]
        %v3700 = vld [vmem:[%s3696 + $0x18] sm:$0xff]
        %v3701 = vld [vmem:[%s3696 + $0x20] sm:$0xff]
        %v3702 = vld [vmem:[%s3696 + $0x28] sm:$0xff]
        %v3703 = vld [vmem:[%s3696 + $0x30] sm:$0xff]
        %v3704 = vld [vmem:[%s3696 + $0x38] sm:$0xff]
        %v3706 = vsel %vm2176, %v3683, 0
        %v3709 = vsel %vm2176, %v3684, 0
        %v3712 = vsel %vm2176, %v3685, 0
        %v3715 = vsel %vm2176, %v3686, 0
        %v3718 = vsel %vm2176, %v3687, 0
        %v3721 = vsel %vm2176, %v3688, 0
        %v3724 = vsel %vm2176, %v3689, 0
        %v3727 = vsel %vm2176, %v3690, 0
        %v3730 = vsel %vm2176, %v3691, 0
        %v3733 = vsel %vm2176, %v3692, 0
        %v3736 = vsel %vm2176, %v3693, 0
        %v3739 = vsel %vm2176, %v3694, 0
        %v3742 = vsel %vm2176, %v3695, 0
        %3744 = vmatpush.msra.mxu0 0.0
        %3745 = vmatpush.msra.mxu0 0.0
        %3746 = vmatpush.msra.mxu0 0.0
        %3747 = vmatpush.msra.mxu0 0.0
        %3748 = vmatpush.msra.mxu0 0.0
        %3749 = vmatpush.msra.mxu0 0.0
        %3750 = vmatpush.msra.mxu0 0.0
        %3751 = vmatpush.msra.mxu0 0.0
        %3752 = vmatpush.msra.mxu0 %v3704
        %3753 = vmatpush.msra.mxu0 %v3703
        %3754 = vmatpush.msra.mxu0 %v3702
        %3755 = vmatpush.msra.mxu0 %v3701
        %3756 = vmatpush.msra.mxu0 %v3700
        %3757 = vmatpush.msra.mxu0 %v3699
        %3758 = vmatpush.msra.mxu0 %v3698
        %3759 = vmatpush.msra.mxu0 %v3697
        %3760 = vmatmul.f32.gmra.mxu0 %v3706
        %v3761 = vpop.f32.mrf.mxu0
        %3762 = vmatmul.f32.gmra.mxu0 %v3709
        %v3763 = vpop.f32.mrf.mxu0
        %v3764 = vadd.f32 0.0, %v3763
        %3765 = vmatmul.f32.gmra.mxu0 %v3712
        %v3766 = vpop.f32.mrf.mxu0
        %v3767 = vadd.f32 0.0, %v3766
        %3768 = vmatmul.f32.gmra.mxu0 %v3715
        %v3769 = vpop.f32.mrf.mxu0
        %v3770 = vadd.f32 0.0, %v3769
        %3771 = vmatmul.f32.gmra.mxu0 %v3718
        %v3772 = vpop.f32.mrf.mxu0
        %v3773 = vadd.f32 0.0, %v3772
        %3774 = vmatmul.f32.gmra.mxu0 %v3721
        %v3775 = vpop.f32.mrf.mxu0
        %v3776 = vadd.f32 0.0, %v3775
        %3777 = vmatmul.f32.gmra.mxu0 %v3724
        %v3778 = vpop.f32.mrf.mxu0
        %v3779 = vadd.f32 0.0, %v3778
        %3780 = vmatmul.f32.gmra.mxu0 %v3727
        %v3781 = vpop.f32.mrf.mxu0
        %v3782 = vadd.f32 0.0, %v3781
        %3783 = vmatmul.f32.gmra.mxu0 %v3730
        %v3784 = vpop.f32.mrf.mxu0
        %v3785 = vadd.f32 0.0, %v3784
        %3786 = vmatmul.f32.gmra.mxu0 %v3733
        %v3787 = vpop.f32.mrf.mxu0
        %v3788 = vadd.f32 0.0, %v3787
        %3789 = vmatmul.f32.gmra.mxu0 %v3736
        %v3790 = vpop.f32.mrf.mxu0
        %v3791 = vadd.f32 0.0, %v3790
        %3792 = vmatmul.f32.gmra.mxu0 %v3739
        %v3793 = vpop.f32.mrf.mxu0
        %v3794 = vadd.f32 0.0, %v3793
        %3795 = vmatmul.f32.gmra.mxu0 %v3742
        %v3796 = vpop.f32.mrf.mxu0
        %3797 = vdwg.mxu0
        %v3798 = vadd.f32 %v3672, %v3764
        %v3799 = vadd.f32 %v3673, %v3767
        %v3800 = vadd.f32 %v3674, %v3770
        %v3801 = vadd.f32 %v3675, %v3773
        %v3802 = vadd.f32 %v3676, %v3776
        %v3803 = vadd.f32 %v3677, %v3779
        %v3804 = vadd.f32 %v3678, %v3782
        %v3805 = vadd.f32 %v3679, %v3785
        %v3806 = vadd.f32 %v3680, %v3788
        %v3807 = vadd.f32 %v3681, %v3791
        %v3808 = vadd.f32 %v3682, %v3794
        %v3810 = vperm.slane %v2697, 0
        %v3812 = vadd.f32 %v3798, %v3810
        %v3813 = vadd.f32 %v3799, %v3810
        %v3814 = vadd.f32 %v3800, %v3810
        %v3815 = vadd.f32 %v3801, %v3810
        %v3816 = vadd.f32 %v3802, %v3810
        %v3817 = vadd.f32 %v3803, %v3810
        %v3818 = vadd.f32 %v3804, %v3810
        %v3819 = vadd.f32 %v3805, %v3810
        %v3820 = vadd.f32 %v3806, %v3810
        %v3821 = vadd.f32 %v3807, %v3810
        %v3822 = vadd.f32 %v3808, %v3810
        %v3823 = vld [vmem:[%s14] sm:$0xff]
        %v3824 = vld [vmem:[%s14 + $0x8] sm:$0xff]
        %v3825 = vld [vmem:[%s14 + $0x10] sm:$0xff]
        %v3826 = vld [vmem:[%s14 + $0x18] sm:$0xff]
        %v3827 = vld [vmem:[%s15] sm:$0x1]
        %v3829 = vperm.slane %v3827, 0
        %v3832 = vsel %vm572, %v554, 0
        %v3835 = vsel %vm572, %v555, 0
        %v3838 = vsel %vm572, %v556, 0
        %v3841 = vsel %vm572, %v557, 0
        %v3844 = vsel %vm572, %v558, 0
        %v3847 = vsel %vm572, %v559, 0
        %v3850 = vsel %vm572, %v560, 0
        %v3853 = vsel %vm572, %v561, 0
        %3855 = vmatpush.msra.mxu0 0.0
        %3856 = vmatpush.msra.mxu0 0.0
        %3857 = vmatpush.msra.mxu0 0.0
        %3858 = vmatpush.msra.mxu0 0.0
        %3859 = vmatpush.msra.mxu0 0.0
        %3860 = vmatpush.msra.mxu0 0.0
        %3861 = vmatpush.msra.mxu0 0.0
        %3862 = vmatpush.msra.mxu0 0.0
        %3863 = vmatpush.msra.mxu0 0.0
        %3864 = vmatpush.msra.mxu0 0.0
        %3865 = vmatpush.msra.mxu0 0.0
        %3866 = vmatpush.msra.mxu0 0.0
        %3867 = vmatpush.msra.mxu0 %v3826
        %3868 = vmatpush.msra.mxu0 %v3825
        %3869 = vmatpush.msra.mxu0 %v3824
        %3870 = vmatpush.msra.mxu0 %v3823
        %3871 = vmatmul.f32.gmra.mxu0 %v3832
        %v3872 = vpop.f32.mrf.mxu0
        %v3873 = vadd.f32 %v3829, %v3872
        %3874 = vmatmul.f32.gmra.mxu0 %v3835
        %v3875 = vpop.f32.mrf.mxu0
        %v3876 = vadd.f32 %v3829, %v3875
        %3877 = vmatmul.f32.gmra.mxu0 %v3838
        %v3878 = vpop.f32.mrf.mxu0
        %v3879 = vadd.f32 %v3829, %v3878
        %3880 = vmatmul.f32.gmra.mxu0 %v3841
        %v3881 = vpop.f32.mrf.mxu0
        %v3882 = vadd.f32 %v3829, %v3881
        %3883 = vmatmul.f32.gmra.mxu0 %v3844
        %v3884 = vpop.f32.mrf.mxu0
        %v3885 = vadd.f32 %v3829, %v3884
        %3886 = vmatmul.f32.gmra.mxu0 %v3847
        %v3887 = vpop.f32.mrf.mxu0
        %v3888 = vadd.f32 %v3829, %v3887
        %3889 = vmatmul.f32.gmra.mxu0 %v3850
        %v3890 = vpop.f32.mrf.mxu0
        %v3891 = vadd.f32 %v3829, %v3890
        %3892 = vmatmul.f32.gmra.mxu0 %v3853
        %v3893 = vpop.f32.mrf.mxu0
        %v3894 = vadd.f32 %v3829, %v3893
        %3895 = vdwg.mxu0
        %v3897 = vrot.slane %v3873, 5
        %v3899 = vadd.f32 %v3812, %v3897
        %v3900 = vadd.f32 %v3813, %v3897
        %vm3901 = vcmask 523267
        %3902 = vst.msk [vmem:[%s548 - $0x3] sm:$0xf8] %vm3901, %v3899
        %vm3903 = vcmask 518144
        %3904 = vst.msk [vmem:[%s548 + $0x5] sm:$0x7] %vm3903, %v3900
        %v3906 = vrot.slane %v3876, 3
        %v3908 = vadd.f32 %v3813, %v3906
        %v3909 = vadd.f32 %v3814, %v3906
        %vm3910 = vcmask 523269
        %3911 = vst.msk [vmem:[%s548 + $0x3] sm:$0xe0] %vm3910, %v3908
        %vm3912 = vcmask 520192
        %3913 = vst.msk [vmem:[%s548 + $0xb] sm:$0x1f] %vm3912, %v3909
        %v3915 = vrot.slane %v3879, 1
        %v3917 = vadd.f32 %v3814, %v3915
        %v3918 = vadd.f32 %v3815, %v3915
        %vm3919 = vcmask 523271
        %3920 = vst.msk [vmem:[%s548 + $0x9] sm:$0x80] %vm3919, %v3917
        %vm3921 = vcmask 522240
        %3922 = vst.msk [vmem:[%s548 + $0x11] sm:$0x7f] %vm3921, %v3918
        %v3924 = vrot.slane %v3882, 7
        %v3926 = vadd.f32 %v3816, %v3924
        %v3927 = vadd.f32 %v3817, %v3924
        %vm3928 = vcmask 523265
        %3929 = vst.msk [vmem:[%s548 + $0x17] sm:$0xfe] %vm3928, %v3926
        %vm3930 = vcmask 516096
        %3931 = vst.msk [vmem:[%s548 + $0x1f] sm:$0x1] %vm3930, %v3927
        %v3933 = vrot.slane %v3885, 5
        %v3935 = vadd.f32 %v3817, %v3933
        %v3936 = vadd.f32 %v3818, %v3933
        %3937 = vst.msk [vmem:[%s548 + $0x1d] sm:$0xf8] %vm3901, %v3935
        %3938 = vst.msk [vmem:[%s548 + $0x25] sm:$0x7] %vm3903, %v3936
        %v3940 = vrot.slane %v3888, 3
        %v3942 = vadd.f32 %v3818, %v3940
        %v3943 = vadd.f32 %v3819, %v3940
        %3944 = vst.msk [vmem:[%s548 + $0x23] sm:$0xe0] %vm3910, %v3942
        %3945 = vst.msk [vmem:[%s548 + $0x2b] sm:$0x1f] %vm3912, %v3943
        %v3947 = vrot.slane %v3891, 1
        %v3949 = vadd.f32 %v3819, %v3947
        %v3950 = vadd.f32 %v3820, %v3947
        %3951 = vst.msk [vmem:[%s548 + $0x29] sm:$0x80] %vm3919, %v3949
        %3952 = vst.msk [vmem:[%s548 + $0x31] sm:$0x7f] %vm3921, %v3950
        %v3954 = vrot.slane %v3894, 7
        %v3956 = vadd.f32 %v3821, %v3954
        %v3957 = vadd.f32 %v3822, %v3954
        %3958 = vst.msk [vmem:[%s548 + $0x37] sm:$0xfe] %vm3928, %v3956
        %3959 = vst.msk [vmem:[%s548 + $0x3f] sm:$0x1] %vm3930, %v3957
        %s3960 = sand.u32 %s381, 1
        %s3961 = scalar_lea.sflag [#allocation6], %s3960
        %s3962 = sand.u32 %s381, 1
        %s3963 = smul.addr %s3962, 64
        %s3964 = scalar_lea.vmem [#allocation9], %s3963
        // Predicated region
        $region93: #{tpu_custom_call.1} parent=83 // pred_check
          %p3965 = pneg %p391
        $region94: #{tpu_custom_call.1} parent=83 // pred_check_branch
          %3967 = sbr.rel (%p3965) target = $region96
        $region95: #{tpu_custom_call.1} parent=83 // pred_region
          %3969 = vsyncadd %s3961, 0
          %s3970 = smul.addr %s32, 8
          %s3971 = smul.addr %s3970, 8
          %s3972 = scalar_lea.hbm %s16, %s3971
          %s3973 = sshll.u32 %s3964, 4
          %s3974 = int_to_ptr.vmem [resolvable:$true] %s3973
          %s3975 = sshll.u32 %s3972, 4
          %s3976 = int_to_ptr.hbm [resolvable:$true] %s3975
          %3981 = dma.vmem_to_hbm [thread:$0]  %s3974, 1024, %s3976, %s3961, 128, 128, 8
        $region96: #{tpu_custom_call.1} parent=83 // pred_fallthru
          _
      $region84: #{tpu_custom_call.1} parent=5 // pred_fallthru
        _
      %p3982 = scmp.le.s32.totalorder 2, %s27
      // Predicated region
      $region97: #{tpu_custom_call.1} parent=5 // pred_check
        %p3983 = pneg %p3982
      $region98: #{tpu_custom_call.1} parent=5 // pred_check_branch
        %3985 = sbr.rel (%p3983) target = $region100
      $region99: #{tpu_custom_call.1} parent=5 // pred_region
        %s3986 = ssub.s32 %s27, 2
        // Predicated region
        $region101: #{tpu_custom_call.1} parent=99 // pred_check
          %p3987 = pneg %p397
        $region102: #{tpu_custom_call.1} parent=99 // pred_check_branch
          %3989 = sbr.rel (%p3987) target = $region104
        $region103: #{tpu_custom_call.1} parent=99 // pred_region
          %s3990 = sand.u32 %s382, 1
          %s3991 = scalar_lea.sflag [#allocation6], %s3990
          %s3992 = sand.u32 %s382, 1
          %s3993 = smul.addr %s3992, 64
          %s3994 = scalar_lea.vmem [#allocation9], %s3993
          %3996 = dma.done %s3991, 1024
        $region104: #{tpu_custom_call.1} parent=99 // pred_fallthru
          _
      $region100: #{tpu_custom_call.1} parent=5 // pred_fallthru
        _
    $region6: #{tpu_custom_call.1} parent=1 // loop_footer
      %s31 = sadd.s32 1, %s27
    $region7: #{tpu_custom_call.1} parent=1 // loop_footer_branch
      %26 = sbr.rel target = $region3
    $region8: #{tpu_custom_call.1} parent=1 // loop_exit
      _
    %3997 = vsyncpa [#allocation5], 1
    %s3998 = scalar_lea.sflag [#allocation5], 1
    %3999 = vsyncpa %s3998, 1
    %4000 = vsyncpa [#allocation8], 1
    %4001 = vsyncpa [#allocation6], 1
    %s4002 = scalar_lea.sflag [#allocation6], 1
    %4003 = vsyncpa %s4002, 1

</llo_original>
